<compile_context>
chip_gen: v5e
topology: v5e:2x2
jax: 0.10.0
libtpu: 0.0.40
codegen_flags: <defaults>
</compile_context>

<pallas_src>
import jax
import jax.numpy as jnp
from jax.experimental import pallas as pl
from jax.experimental.pallas import tpu as pltpu

DIMS = [784, 1024, 512, 256, 128, 10]   # logical (PyTorch) dims
OUT_PAD = 128                           # final layer 10 -> 128 (lane aligned)
BN_EPS = 1e-5
TB_MAX = 512                            # batch-tile sweep parameter (512-1024)


def ffn_kernel(x_ref,
               w1_ref, b1_ref, w2_ref, b2_ref, w3_ref, b3_ref,
               w4_ref, b4_ref, w5_ref, b5_ref,
               out_ref):
    """Fused 5-layer MLP: (Linear + folded-BN + ReLU) x4 + Linear on one batch tile."""
    # f32 input tile -> bf16 on the VPU (fuses the wrapper cast into the kernel).
    h = x_ref[...].astype(jnp.bfloat16)  # (TB, 784)

    def layer(h, w_ref, b_ref):
        # bf16 x bf16 matmul with f32 accumulation on the MXU.
        y = jnp.dot(h, w_ref[...], preferred_element_type=jnp.float32)
        # Bias (BatchNorm already folded in) + ReLU, in f32 (v5e has no bf16 VPU).
        y = jnp.maximum(y + b_ref[...], 0.0)
        # TODO(synk): nn.Dropout(0.3) is identity in eval mode; intentionally not applied.
        return y.astype(jnp.bfloat16)

    h = layer(h, w1_ref, b1_ref)
    h = layer(h, w2_ref, b2_ref)
    h = layer(h, w3_ref, b3_ref)
    h = layer(h, w4_ref, b4_ref)

    out = jnp.dot(h, w5_ref[...], preferred_element_type=jnp.float32) + b5_ref[...]
    out_ref[...] = out.astype(out_ref.dtype)


def init_params(key):
    """Deterministic parameter init mirroring PyTorch shapes/defaults (f32, unpadded)."""
    params = {}
    for i in range(5):
        fan_in, fan_out = DIMS[i], DIMS[i + 1]
        key, kw, kb = jax.random.split(key, 3)
        bound = 1.0 / (fan_in ** 0.5)
        # nn.Linear default: U(-1/sqrt(fan_in), 1/sqrt(fan_in)); stored (in, out)
        params[f"w{i+1}"] = jax.random.uniform(
            kw, (fan_in, fan_out), jnp.float32, -bound, bound)
        params[f"b{i+1}"] = jax.random.uniform(
            kb, (1, fan_out), jnp.float32, -bound, bound)
    for i in range(4):
        n = DIMS[i + 1]
        # BatchNorm1d defaults: gamma=1, beta=0, running_mean=0, running_var=1
        params[f"gamma{i+1}"] = jnp.ones((1, n), jnp.float32)
        params[f"beta{i+1}"] = jnp.zeros((1, n), jnp.float32)
        params[f"rm{i+1}"] = jnp.zeros((1, n), jnp.float32)
        params[f"rv{i+1}"] = jnp.ones((1, n), jnp.float32)
    return params


def fold_bn(params, i):
    scale = params[f"gamma{i}"] / jnp.sqrt(params[f"rv{i}"] + BN_EPS)
    shift = params[f"beta{i}"] - params[f"rm{i}"] * scale
    return scale, shift


def prepare_kernel_params(params):
    """Fold BN into W/b, pad the final layer to 128 lanes, cast weights to bf16.

    Call ONCE at model-load time; the results are reused by every forward call.
    """
    ws, bs = [], []
    for i in range(1, 6):
        w = params[f"w{i}"]
        b = params[f"b{i}"]
        if i <= 4:
            s, t = fold_bn(params, i)
            w = w * s            # (in, out) * (1, out): BN scale folded into weights
            b = b * s + t        # BN shift folded into bias
        else:
            # Final layer: pad 10 -> 128 output lanes for unmasked stores.
            w = jnp.pad(w, ((0, 0), (0, OUT_PAD - w.shape[1])))
            b = jnp.pad(b, ((0, 0), (0, OUT_PAD - b.shape[1])))
        ws.append(jax.device_put(w.astype(jnp.bfloat16)))
        bs.append(jax.device_put(b.astype(jnp.float32)))
    return tuple(ws), tuple(bs)


def _vmem_limit_bytes():
    """Per-generation VMEM limit: half of physical capacity, capped at 64 MiB."""
    try:
        cap = int(pltpu.get_tpu_info().vmem_capacity_bytes)
    except Exception:
        cap = 64 << 20  # conservative fallback (valid on v5e/v6e/v7x)
    return int(min(cap // 2, 64 << 20))


def _pick_tb(batch):
    """Adaptive batch tile: multiple of 8, <= TB_MAX, targets >= 2 grid steps."""
    tb = ((pl.cdiv(batch, 2) + 7) // 8) * 8   # >= 2 steps (v7x: both TCs busy)
    return max(8, min(TB_MAX, tb))


@jax.jit
def ff_net_forward(x, ws, bs):
    """x: (B, 1, 28, 28) float32  ->  logits (B, 10) float32."""
    B = x.shape[0]
    x2 = x.reshape(B, DIMS[0]).astype(jnp.float32)   # same as x.view(-1, 784)

    tb = _pick_tb(B)
    b_pad = pl.cdiv(B, tb) * tb
    if b_pad != B:
        x2 = jnp.pad(x2, ((0, b_pad - B), (0, 0)))

    args = [x2]
    for w, b in zip(ws, bs):
        args += [w, b]

    # x blocks: (tb, 784) f32 — last dim equals the full array dim, so the
    # (8,128) divisibility rule does not apply; the bf16 cast is in-kernel.
    x_spec = pl.BlockSpec((tb, DIMS[0]), lambda i: (i, 0))
    const_map = lambda i: (0, 0)                      # weights resident across grid
    in_specs = [x_spec]
    for w, b in zip(ws, bs):
        in_specs.append(pl.BlockSpec(w.shape, const_map))
        in_specs.append(pl.BlockSpec(b.shape, const_map))

    out = pl.pallas_call(
        ffn_kernel,
        out_shape=jax.ShapeDtypeStruct((b_pad, OUT_PAD), jnp.float32),
        grid=(b_pad // tb,),
        in_specs=in_specs,
        out_specs=pl.BlockSpec((tb, OUT_PAD), lambda i: (i, 0)),
        compiler_params=pltpu.CompilerParams(
            dimension_semantics=("parallel",),        # v7x: shard batch over 2 TCs
            vmem_limit_bytes=_vmem_limit_bytes()),
    )(*args)

    return out[:B, :DIMS[-1]]                         # drop batch/output padding


def ff_net_kernel_mirror(x, ws, bs):
    """Pure-JAX mirror of the kernel's exact numerics (bf16 weights/activations)."""
    B = x.shape[0]
    h = x.reshape(B, DIMS[0]).astype(jnp.float32).astype(jnp.bfloat16)
    for i in range(4):
        y = jnp.dot(h, ws[i], preferred_element_type=jnp.float32) + bs[i]
        h = jnp.maximum(y, 0.0).astype(jnp.bfloat16)
    out = jnp.dot(h, ws[4], preferred_element_type=jnp.float32) + bs[4]
    return out[:, :DIMS[-1]]


def ff_net_reference(x, params):
    """Full-precision f32 reference matching the PyTorch module (eval mode)."""
    h = x.reshape(x.shape[0], DIMS[0])
    for i in range(1, 5):
        s, t = fold_bn(params, i)
        h = h @ params[f"w{i}"] + params[f"b{i}"]
        h = jnp.maximum(h * s + t, 0.0)
    return h @ params["w5"] + params["b5"]


if __name__ == "__main__":
    key = jax.random.PRNGKey(0)
    kx, kp = jax.random.split(key)

    B = 8
    x = jax.random.normal(kx, (B, 1, 28, 28), dtype=jnp.float32)
    params = init_params(kp)

    # BN fold / pad / bf16 cast done ONCE here (model-load time), not per call.
    ws, bs = prepare_kernel_params(params)

    out = jax.block_until_ready(ff_net_forward(x, ws, bs))
    assert out.shape == (B, 10)

    # Tight check vs a pure-JAX mirror of the kernel's bf16/f32-accum numerics.
    mirror = ff_net_kernel_mirror(x, ws, bs)
    assert jnp.allclose(out, mirror, rtol=1e-2, atol=1e-2), "mismatch vs bf16 mirror"

    # Loose check vs the full-precision f32 module reference.
    ref = ff_net_reference(x, params)
    assert jnp.allclose(out, ref, rtol=1e-1, atol=1e-1), "mismatch vs f32 reference"

    print("KERNEL_OK")
</pallas_src>

<mosaic_0001>
module attributes {stable_mosaic.version = 11 : i64} {
  func.func @ffn_kernel(%arg0: i32, %arg1: memref<8x784xf32, #tpu.memory_space<vmem>>, %arg2: memref<784x1024xbf16, #tpu.memory_space<vmem>>, %arg3: memref<1x1024xf32, #tpu.memory_space<vmem>>, %arg4: memref<1024x512xbf16, #tpu.memory_space<vmem>>, %arg5: memref<1x512xf32, #tpu.memory_space<vmem>>, %arg6: memref<512x256xbf16, #tpu.memory_space<vmem>>, %arg7: memref<1x256xf32, #tpu.memory_space<vmem>>, %arg8: memref<256x128xbf16, #tpu.memory_space<vmem>>, %arg9: memref<1x128xf32, #tpu.memory_space<vmem>>, %arg10: memref<128x128xbf16, #tpu.memory_space<vmem>>, %arg11: memref<1x128xf32, #tpu.memory_space<vmem>>, %arg12: memref<8x128xf32, #tpu.memory_space<vmem>>) attributes {dimension_semantics = [#tpu.dimension_semantics<parallel>], iteration_bounds = array<i64: 1>, scalar_prefetch = 0 : i64, scratch_operands = 0 : i64, tpu.core_type = #tpu.core_type<tc>, window_params = [{transform_indices = @transform_0, window_bounds = array<i64: 8, 784>}, {pipeline_mode = #tpu.pipeline_mode<synchronous>, transform_indices = @transform_1, window_bounds = array<i64: 784, 1024>}, {pipeline_mode = #tpu.pipeline_mode<synchronous>, transform_indices = @transform_2, window_bounds = array<i64: 1, 1024>}, {pipeline_mode = #tpu.pipeline_mode<synchronous>, transform_indices = @transform_3, window_bounds = array<i64: 1024, 512>}, {pipeline_mode = #tpu.pipeline_mode<synchronous>, transform_indices = @transform_4, window_bounds = array<i64: 1, 512>}, {pipeline_mode = #tpu.pipeline_mode<synchronous>, transform_indices = @transform_5, window_bounds = array<i64: 512, 256>}, {pipeline_mode = #tpu.pipeline_mode<synchronous>, transform_indices = @transform_6, window_bounds = array<i64: 1, 256>}, {pipeline_mode = #tpu.pipeline_mode<synchronous>, transform_indices = @transform_7, window_bounds = array<i64: 256, 128>}, {pipeline_mode = #tpu.pipeline_mode<synchronous>, transform_indices = @transform_8, window_bounds = array<i64: 1, 128>}, {pipeline_mode = #tpu.pipeline_mode<synchronous>, transform_indices = @transform_9, window_bounds = array<i64: 128, 128>}, {pipeline_mode = #tpu.pipeline_mode<synchronous>, transform_indices = @transform_10, window_bounds = array<i64: 1, 128>}, {transform_indices = @transform_11, window_bounds = array<i64: 8, 128>}]} {
    %c0 = arith.constant 0 : index
    %c0_0 = arith.constant 0 : index
    %0 = vector.load %arg1[%c0, %c0_0] : memref<8x784xf32, #tpu.memory_space<vmem>>, vector<8x784xf32>
    %1 = arith.truncf %0 : vector<8x784xf32> to vector<8x784xbf16>
    %c0_1 = arith.constant 0 : index
    %c0_2 = arith.constant 0 : index
    %2 = vector.load %arg2[%c0_1, %c0_2] : memref<784x1024xbf16, #tpu.memory_space<vmem>>, vector<784x1024xbf16>
    %cst = arith.constant dense<0.000000e+00> : vector<8x1024xf32>
    %3 = tpu.matmul %1, %2, %cst {dimension_numbers = #tpu.dot_dimension_numbers<[1], [0], [0], [1], [0, 0, 1, 1], [], []>} : vector<8x784xbf16>, vector<784x1024xbf16>, vector<8x1024xf32> -> vector<8x1024xf32>
    %c0_3 = arith.constant 0 : index
    %c0_4 = arith.constant 0 : index
    %4 = vector.load %arg3[%c0_3, %c0_4] : memref<1x1024xf32, #tpu.memory_space<vmem>>, vector<1x1024xf32>
    %5 = vector.broadcast %4 : vector<1x1024xf32> to vector<8x1024xf32>
    %6 = arith.addf %3, %5 : vector<8x1024xf32>
    %cst_5 = arith.constant 0.000000e+00 : f32
    %7 = vector.broadcast %cst_5 : f32 to vector<8x1024xf32>
    %8 = arith.maximumf %6, %7 : vector<8x1024xf32>
    %9 = arith.truncf %8 : vector<8x1024xf32> to vector<8x1024xbf16>
    %c0_6 = arith.constant 0 : index
    %c0_7 = arith.constant 0 : index
    %10 = vector.load %arg4[%c0_6, %c0_7] : memref<1024x512xbf16, #tpu.memory_space<vmem>>, vector<1024x512xbf16>
    %cst_8 = arith.constant dense<0.000000e+00> : vector<8x512xf32>
    %11 = tpu.matmul %9, %10, %cst_8 {dimension_numbers = #tpu.dot_dimension_numbers<[1], [0], [0], [1], [0, 0, 1, 1], [], []>} : vector<8x1024xbf16>, vector<1024x512xbf16>, vector<8x512xf32> -> vector<8x512xf32>
    %c0_9 = arith.constant 0 : index
    %c0_10 = arith.constant 0 : index
    %12 = vector.load %arg5[%c0_9, %c0_10] : memref<1x512xf32, #tpu.memory_space<vmem>>, vector<1x512xf32>
    %13 = vector.broadcast %12 : vector<1x512xf32> to vector<8x512xf32>
    %14 = arith.addf %11, %13 : vector<8x512xf32>
    %cst_11 = arith.constant 0.000000e+00 : f32
    %15 = vector.broadcast %cst_11 : f32 to vector<8x512xf32>
    %16 = arith.maximumf %14, %15 : vector<8x512xf32>
    %17 = arith.truncf %16 : vector<8x512xf32> to vector<8x512xbf16>
    %c0_12 = arith.constant 0 : index
    %c0_13 = arith.constant 0 : index
    %18 = vector.load %arg6[%c0_12, %c0_13] : memref<512x256xbf16, #tpu.memory_space<vmem>>, vector<512x256xbf16>
    %cst_14 = arith.constant dense<0.000000e+00> : vector<8x256xf32>
    %19 = tpu.matmul %17, %18, %cst_14 {dimension_numbers = #tpu.dot_dimension_numbers<[1], [0], [0], [1], [0, 0, 1, 1], [], []>} : vector<8x512xbf16>, vector<512x256xbf16>, vector<8x256xf32> -> vector<8x256xf32>
    %c0_15 = arith.constant 0 : index
    %c0_16 = arith.constant 0 : index
    %20 = vector.load %arg7[%c0_15, %c0_16] : memref<1x256xf32, #tpu.memory_space<vmem>>, vector<1x256xf32>
    %21 = vector.broadcast %20 : vector<1x256xf32> to vector<8x256xf32>
    %22 = arith.addf %19, %21 : vector<8x256xf32>
    %cst_17 = arith.constant 0.000000e+00 : f32
    %23 = vector.broadcast %cst_17 : f32 to vector<8x256xf32>
    %24 = arith.maximumf %22, %23 : vector<8x256xf32>
    %25 = arith.truncf %24 : vector<8x256xf32> to vector<8x256xbf16>
    %c0_18 = arith.constant 0 : index
    %c0_19 = arith.constant 0 : index
    %26 = vector.load %arg8[%c0_18, %c0_19] : memref<256x128xbf16, #tpu.memory_space<vmem>>, vector<256x128xbf16>
    %cst_20 = arith.constant dense<0.000000e+00> : vector<8x128xf32>
    %27 = tpu.matmul %25, %26, %cst_20 {dimension_numbers = #tpu.dot_dimension_numbers<[1], [0], [0], [1], [0, 0, 1, 1], [], []>} : vector<8x256xbf16>, vector<256x128xbf16>, vector<8x128xf32> -> vector<8x128xf32>
    %c0_21 = arith.constant 0 : index
    %c0_22 = arith.constant 0 : index
    %28 = vector.load %arg9[%c0_21, %c0_22] : memref<1x128xf32, #tpu.memory_space<vmem>>, vector<1x128xf32>
    %29 = vector.broadcast %28 : vector<1x128xf32> to vector<8x128xf32>
    %30 = arith.addf %27, %29 : vector<8x128xf32>
    %cst_23 = arith.constant 0.000000e+00 : f32
    %31 = vector.broadcast %cst_23 : f32 to vector<8x128xf32>
    %32 = arith.maximumf %30, %31 : vector<8x128xf32>
    %33 = arith.truncf %32 : vector<8x128xf32> to vector<8x128xbf16>
    %c0_24 = arith.constant 0 : index
    %c0_25 = arith.constant 0 : index
    %34 = vector.load %arg10[%c0_24, %c0_25] : memref<128x128xbf16, #tpu.memory_space<vmem>>, vector<128x128xbf16>
    %cst_26 = arith.constant dense<0.000000e+00> : vector<8x128xf32>
    %35 = tpu.matmul %33, %34, %cst_26 {dimension_numbers = #tpu.dot_dimension_numbers<[1], [0], [0], [1], [0, 0, 1, 1], [], []>} : vector<8x128xbf16>, vector<128x128xbf16>, vector<8x128xf32> -> vector<8x128xf32>
    %c0_27 = arith.constant 0 : index
    %c0_28 = arith.constant 0 : index
    %36 = vector.load %arg11[%c0_27, %c0_28] : memref<1x128xf32, #tpu.memory_space<vmem>>, vector<1x128xf32>
    %37 = vector.broadcast %36 : vector<1x128xf32> to vector<8x128xf32>
    %38 = arith.addf %35, %37 : vector<8x128xf32>
    %c0_29 = arith.constant 0 : index
    %c0_30 = arith.constant 0 : index
    %39 = vector.load %arg12[%c0_29, %c0_30] : memref<8x128xf32, #tpu.memory_space<vmem>>, vector<8x128xf32>
    tpu.vector_store %arg12[%c0_29, %c0_30], %38 {strides = array<i32>} : memref<8x128xf32, #tpu.memory_space<vmem>>, vector<8x128xf32>,
    return
  }
  func.func @transform_0(%arg0: i32) -> (i32, i32) {
    %c0_i32 = arith.constant 0 : i32
    %c0_i32_0 = arith.constant 0 : i32
    return %arg0, %c0_i32 : i32, i32
  }
  func.func @transform_1(%arg0: i32) -> (i32, i32) {
    %c0_i32 = arith.constant 0 : i32
    %c0_i32_0 = arith.constant 0 : i32
    %c0_i32_1 = arith.constant 0 : i32
    return %c0_i32, %c0_i32_0 : i32, i32
  }
  func.func @transform_2(%arg0: i32) -> (i32, i32) {
    %c0_i32 = arith.constant 0 : i32
    %c0_i32_0 = arith.constant 0 : i32
    %c0_i32_1 = arith.constant 0 : i32
    return %c0_i32, %c0_i32_0 : i32, i32
  }
  func.func @transform_3(%arg0: i32) -> (i32, i32) {
    %c0_i32 = arith.constant 0 : i32
    %c0_i32_0 = arith.constant 0 : i32
    %c0_i32_1 = arith.constant 0 : i32
    return %c0_i32, %c0_i32_0 : i32, i32
  }
  func.func @transform_4(%arg0: i32) -> (i32, i32) {
    %c0_i32 = arith.constant 0 : i32
    %c0_i32_0 = arith.constant 0 : i32
    %c0_i32_1 = arith.constant 0 : i32
    return %c0_i32, %c0_i32_0 : i32, i32
  }
  func.func @transform_5(%arg0: i32) -> (i32, i32) {
    %c0_i32 = arith.constant 0 : i32
    %c0_i32_0 = arith.constant 0 : i32
    %c0_i32_1 = arith.constant 0 : i32
    return %c0_i32, %c0_i32_0 : i32, i32
  }
  func.func @transform_6(%arg0: i32) -> (i32, i32) {
    %c0_i32 = arith.constant 0 : i32
    %c0_i32_0 = arith.constant 0 : i32
    %c0_i32_1 = arith.constant 0 : i32
    return %c0_i32, %c0_i32_0 : i32, i32
  }
  func.func @transform_7(%arg0: i32) -> (i32, i32) {
    %c0_i32 = arith.constant 0 : i32
    %c0_i32_0 = arith.constant 0 : i32
    %c0_i32_1 = arith.constant 0 : i32
    return %c0_i32, %c0_i32_0 : i32, i32
  }
  func.func @transform_8(%arg0: i32) -> (i32, i32) {
    %c0_i32 = arith.constant 0 : i32
    %c0_i32_0 = arith.constant 0 : i32
    %c0_i32_1 = arith.constant 0 : i32
    return %c0_i32, %c0_i32_0 : i32, i32
  }
  func.func @transform_9(%arg0: i32) -> (i32, i32) {
    %c0_i32 = arith.constant 0 : i32
    %c0_i32_0 = arith.constant 0 : i32
    %c0_i32_1 = arith.constant 0 : i32
    return %c0_i32, %c0_i32_0 : i32, i32
  }
  func.func @transform_10(%arg0: i32) -> (i32, i32) {
    %c0_i32 = arith.constant 0 : i32
    %c0_i32_0 = arith.constant 0 : i32
    %c0_i32_1 = arith.constant 0 : i32
    return %c0_i32, %c0_i32_0 : i32, i32
  }
  func.func @transform_11(%arg0: i32) -> (i32, i32) {
    %c0_i32 = arith.constant 0 : i32
    %c0_i32_0 = arith.constant 0 : i32
    return %arg0, %c0_i32 : i32, i32
  }
}

</mosaic_0001>

<llo_original>
// kernel: ff_net_forward.1
$region0: #{ff_net_forward.1}
  #allocation0 [shape = 'u32[]', space=smem, size = 0x4, offset = 0x4, fixed_abs, tag = 'smem constant byte address 0x4 - core index']
  #allocation1 [shape = 'u32[72,128]{1,0:T(1,128)}', space=vmem, size = 0x9000, scoped, tag = 'internal scratch']
  %s0 = inlined_call_operand.vmem [shape: f32[8,784], index: 0, kind: input, shape index: {}]
  %s1 = inlined_call_operand.hbm [shape: bf16[784,1024], index: 1, kind: input, shape index: {}]
  %s2 = inlined_call_operand.hbm [shape: f32[1,1024], index: 2, kind: input, shape index: {}]
  %s3 = inlined_call_operand.hbm [shape: bf16[1024,512], index: 3, kind: input, shape index: {}]
  %s4 = inlined_call_operand.hbm [shape: f32[1,512], index: 4, kind: input, shape index: {}]
  %s5 = inlined_call_operand.hbm [shape: bf16[512,256], index: 5, kind: input, shape index: {}]
  %s6 = inlined_call_operand.hbm [shape: f32[1,256], index: 6, kind: input, shape index: {}]
  %s7 = inlined_call_operand.hbm [shape: bf16[256,128], index: 7, kind: input, shape index: {}]
  %s8 = inlined_call_operand.hbm [shape: f32[1,128], index: 8, kind: input, shape index: {}]
  %s9 = inlined_call_operand.hbm [shape: bf16[128,128], index: 9, kind: input, shape index: {}]
  %s10 = inlined_call_operand.hbm [shape: f32[1,128], index: 10, kind: input, shape index: {}]
  %s11 = inlined_call_operand.hbm [shape: f32[8,128], index: 11, kind: output, shape index: {}]
  %s12 = sld [smem:[#allocation0]]
  $region94: #{ff_net_forward.1} parent=0
    _
  %s14 = ssub.s32 1, %s12
  %s15 = scalar_select 0, %s14, %s12
  $region1: #{ff_net_forward.1} parent=0
    #allocation2 [shape = 'u8[1605632]{0}', space=vmem, size = 0x188000, scoped, tag = 'input window, operand 1, single buffered']
    #allocation3 [shape = 's32[1]{0}', space=sflag, size = 0x4, scoped, tag = 'scoped memory for ff_net_forward.1']
    #allocation4 [shape = 's32[1]{0}', space=sflag, size = 0x4, scoped, tag = 'scoped memory for ff_net_forward.1']
    #allocation5 [shape = 'u8[4096]{0}', space=vmem, size = 0x1000, scoped, tag = 'input window, operand 2, single buffered']
    #allocation6 [shape = 's32[1]{0}', space=sflag, size = 0x4, scoped, tag = 'scoped memory for ff_net_forward.1']
    #allocation7 [shape = 'u8[1048576]{0}', space=vmem, size = 0x100000, scoped, tag = 'input window, operand 3, single buffered']
    #allocation8 [shape = 'u8[2048]{0}', space=vmem, size = 0x800, scoped, tag = 'input window, operand 4, single buffered']
    #allocation9 [shape = 's32[1]{0}', space=sflag, size = 0x4, scoped, tag = 'scoped memory for ff_net_forward.1']
    #allocation10 [shape = 'u8[262144]{0}', space=vmem, size = 0x40000, scoped, tag = 'input window, operand 5, single buffered']
    #allocation11 [shape = 'u8[1024]{0}', space=vmem, size = 0x400, scoped, tag = 'input window, operand 6, single buffered']
    #allocation12 [shape = 's32[1]{0}', space=sflag, size = 0x4, scoped, tag = 'scoped memory for ff_net_forward.1']
    #allocation13 [shape = 'u8[65536]{0}', space=vmem, size = 0x10000, scoped, tag = 'input window, operand 7, single buffered']
    #allocation14 [shape = 'u8[512]{0}', space=vmem, size = 0x400, scoped, tag = 'input window, operand 8, single buffered']
    #allocation15 [shape = 's32[1]{0}', space=sflag, size = 0x4, scoped, tag = 'scoped memory for ff_net_forward.1']
    #allocation16 [shape = 'u8[32768]{0}', space=vmem, size = 0x8000, scoped, tag = 'input window, operand 9, single buffered']
    #allocation17 [shape = 'u8[512]{0}', space=vmem, size = 0x400, scoped, tag = 'input window, operand 10, single buffered']
    #allocation18 [shape = 's32[1]{0}', space=sflag, size = 0x4, scoped, tag = 'scoped memory for ff_net_forward.1']
    #allocation19 [shape = 'u8[4096]{0}', space=vmem, size = 0x1000, scoped, tag = 'output window, operand 0, single buffered']
    %16 = vsyncpa [#allocation3], 0
    %17 = vsyncpa [#allocation6], 0
    %18 = vsyncpa [#allocation9], 0
    %19 = vsyncpa [#allocation12], 0
    %20 = vsyncpa [#allocation15], 0
    %21 = vsyncpa [#allocation18], 0
    %22 = vsyncpa [#allocation4], 0
    // Predicated region
    $region2: #{ff_net_forward.1} parent=1 // pred_check
      _
    $region3: #{ff_net_forward.1} parent=1 // pred_check_branch
      %24 = sbr.rel (0) target = $region5
    $region4: #{ff_net_forward.1} parent=1 // pred_region
      _
    $region5: #{ff_net_forward.1} parent=1 // pred_fallthru
      _
    // Predicated region
    $region6: #{ff_net_forward.1} parent=1 // pred_check
      _
    $region7: #{ff_net_forward.1} parent=1 // pred_check_branch
      %26 = sbr.rel (0) target = $region9
    $region8: #{ff_net_forward.1} parent=1 // pred_region
      %28 = vsyncadd [#allocation3], 0
      %s29 = sshll.u32 %s1, 4
      %s30 = int_to_ptr.hbm [resolvable:$true] %s29
      %s31 = sshll.u32 [#allocation2], 4
      %s32 = int_to_ptr.vmem [resolvable:$true] %s31
      %37 = dma.hbm_to_vmem [thread:$0]  %s30, 50176, %s32, [#allocation3], 512, 512, 32
    $region9: #{ff_net_forward.1} parent=1 // pred_fallthru
      _
    // Predicated region
    $region10: #{ff_net_forward.1} parent=1 // pred_check
      _
    $region11: #{ff_net_forward.1} parent=1 // pred_check_branch
      %39 = sbr.rel (0) target = $region13
    $region12: #{ff_net_forward.1} parent=1 // pred_region
      %41 = vsyncadd [#allocation6], 0
      %s43 = sshll.u32 %s2, 4
      %s44 = int_to_ptr.hbm [resolvable:$true] %s43
      %s45 = sshll.u32 [#allocation5], 4
      %s46 = int_to_ptr.vmem [resolvable:$true] %s45
      %48 = dma.hbm_to_vmem [thread:$0]  %s44, 128, %s46, [#allocation6]
    $region13: #{ff_net_forward.1} parent=1 // pred_fallthru
      _
    // Predicated region
    $region14: #{ff_net_forward.1} parent=1 // pred_check
      _
    $region15: #{ff_net_forward.1} parent=1 // pred_check_branch
      %50 = sbr.rel (0) target = $region17
    $region16: #{ff_net_forward.1} parent=1 // pred_region
      %52 = vsyncadd [#allocation6], 0
      %s53 = sshll.u32 %s3, 4
      %s54 = int_to_ptr.hbm [resolvable:$true] %s53
      %s55 = sshll.u32 [#allocation7], 4
      %s56 = int_to_ptr.vmem [resolvable:$true] %s55
      %61 = dma.hbm_to_vmem [thread:$0]  %s54, 32768, %s56, [#allocation6], 256, 256, 16
    $region17: #{ff_net_forward.1} parent=1 // pred_fallthru
      _
    // Predicated region
    $region18: #{ff_net_forward.1} parent=1 // pred_check
      _
    $region19: #{ff_net_forward.1} parent=1 // pred_check_branch
      %63 = sbr.rel (0) target = $region21
    $region20: #{ff_net_forward.1} parent=1 // pred_region
      %65 = vsyncadd [#allocation9], 0
      %s67 = sshll.u32 %s4, 4
      %s68 = int_to_ptr.hbm [resolvable:$true] %s67
      %s69 = sshll.u32 [#allocation8], 4
      %s70 = int_to_ptr.vmem [resolvable:$true] %s69
      %72 = dma.hbm_to_vmem [thread:$0]  %s68, 64, %s70, [#allocation9]
    $region21: #{ff_net_forward.1} parent=1 // pred_fallthru
      _
    // Predicated region
    $region22: #{ff_net_forward.1} parent=1 // pred_check
      _
    $region23: #{ff_net_forward.1} parent=1 // pred_check_branch
      %74 = sbr.rel (0) target = $region25
    $region24: #{ff_net_forward.1} parent=1 // pred_region
      %76 = vsyncadd [#allocation9], 0
      %s77 = sshll.u32 %s5, 4
      %s78 = int_to_ptr.hbm [resolvable:$true] %s77
      %s79 = sshll.u32 [#allocation10], 4
      %s80 = int_to_ptr.vmem [resolvable:$true] %s79
      %85 = dma.hbm_to_vmem [thread:$0]  %s78, 8192, %s80, [#allocation9], 128, 128, 8
    $region25: #{ff_net_forward.1} parent=1 // pred_fallthru
      _
    // Predicated region
    $region26: #{ff_net_forward.1} parent=1 // pred_check
      _
    $region27: #{ff_net_forward.1} parent=1 // pred_check_branch
      %87 = sbr.rel (0) target = $region29
    $region28: #{ff_net_forward.1} parent=1 // pred_region
      %89 = vsyncadd [#allocation12], 0
      %s91 = sshll.u32 %s6, 4
      %s92 = int_to_ptr.hbm [resolvable:$true] %s91
      %s93 = sshll.u32 [#allocation11], 4
      %s94 = int_to_ptr.vmem [resolvable:$true] %s93
      %96 = dma.hbm_to_vmem [thread:$0]  %s92, 32, %s94, [#allocation12]
    $region29: #{ff_net_forward.1} parent=1 // pred_fallthru
      _
    // Predicated region
    $region30: #{ff_net_forward.1} parent=1 // pred_check
      _
    $region31: #{ff_net_forward.1} parent=1 // pred_check_branch
      %98 = sbr.rel (0) target = $region33
    $region32: #{ff_net_forward.1} parent=1 // pred_region
      %100 = vsyncadd [#allocation12], 0
      %s101 = sshll.u32 %s7, 4
      %s102 = int_to_ptr.hbm [resolvable:$true] %s101
      %s103 = sshll.u32 [#allocation13], 4
      %s104 = int_to_ptr.vmem [resolvable:$true] %s103
      %109 = dma.hbm_to_vmem [thread:$0]  %s102, 2048, %s104, [#allocation12], 64, 64, 4
    $region33: #{ff_net_forward.1} parent=1 // pred_fallthru
      _
    // Predicated region
    $region34: #{ff_net_forward.1} parent=1 // pred_check
      _
    $region35: #{ff_net_forward.1} parent=1 // pred_check_branch
      %111 = sbr.rel (0) target = $region37
    $region36: #{ff_net_forward.1} parent=1 // pred_region
      %113 = vsyncadd [#allocation15], 0
      %s115 = sshll.u32 %s8, 4
      %s116 = int_to_ptr.hbm [resolvable:$true] %s115
      %s117 = sshll.u32 [#allocation14], 4
      %s118 = int_to_ptr.vmem [resolvable:$true] %s117
      %120 = dma.hbm_to_vmem [thread:$0]  %s116, 16, %s118, [#allocation15]
    $region37: #{ff_net_forward.1} parent=1 // pred_fallthru
      _
    // Predicated region
    $region38: #{ff_net_forward.1} parent=1 // pred_check
      _
    $region39: #{ff_net_forward.1} parent=1 // pred_check_branch
      %122 = sbr.rel (0) target = $region41
    $region40: #{ff_net_forward.1} parent=1 // pred_region
      %124 = vsyncadd [#allocation15], 0
      %s125 = sshll.u32 %s9, 4
      %s126 = int_to_ptr.hbm [resolvable:$true] %s125
      %s127 = sshll.u32 [#allocation16], 4
      %s128 = int_to_ptr.vmem [resolvable:$true] %s127
      %133 = dma.hbm_to_vmem [thread:$0]  %s126, 1024, %s128, [#allocation15], 64, 64, 4
    $region41: #{ff_net_forward.1} parent=1 // pred_fallthru
      _
    // Predicated region
    $region42: #{ff_net_forward.1} parent=1 // pred_check
      _
    $region43: #{ff_net_forward.1} parent=1 // pred_check_branch
      %135 = sbr.rel (0) target = $region45
    $region44: #{ff_net_forward.1} parent=1 // pred_region
      %137 = vsyncadd [#allocation18], 0
      %s139 = sshll.u32 %s10, 4
      %s140 = int_to_ptr.hbm [resolvable:$true] %s139
      %s141 = sshll.u32 [#allocation17], 4
      %s142 = int_to_ptr.vmem [resolvable:$true] %s141
      %144 = dma.hbm_to_vmem [thread:$0]  %s140, 16, %s142, [#allocation18]
    $region45: #{ff_net_forward.1} parent=1 // pred_fallthru
      _
    // Predicated region
    $region46: #{ff_net_forward.1} parent=1 // pred_check
      _
    $region47: #{ff_net_forward.1} parent=1 // pred_check_branch
      %146 = sbr.rel (0) target = $region49
    $region48: #{ff_net_forward.1} parent=1 // pred_region
      %148 = dma.done [#allocation3], 50176
    $region49: #{ff_net_forward.1} parent=1 // pred_fallthru
      _
    // Predicated region
    $region50: #{ff_net_forward.1} parent=1 // pred_check
      _
    $region51: #{ff_net_forward.1} parent=1 // pred_check_branch
      %150 = sbr.rel (0) target = $region53
    $region52: #{ff_net_forward.1} parent=1 // pred_region
      %152 = dma.done [#allocation6], 128
    $region53: #{ff_net_forward.1} parent=1 // pred_fallthru
      _
    // Predicated region
    $region54: #{ff_net_forward.1} parent=1 // pred_check
      _
    $region55: #{ff_net_forward.1} parent=1 // pred_check_branch
      %154 = sbr.rel (0) target = $region57
    $region56: #{ff_net_forward.1} parent=1 // pred_region
      %156 = dma.done [#allocation6], 32768
    $region57: #{ff_net_forward.1} parent=1 // pred_fallthru
      _
    // Predicated region
    $region58: #{ff_net_forward.1} parent=1 // pred_check
      _
    $region59: #{ff_net_forward.1} parent=1 // pred_check_branch
      %158 = sbr.rel (0) target = $region61
    $region60: #{ff_net_forward.1} parent=1 // pred_region
      %160 = dma.done [#allocation9], 64
    $region61: #{ff_net_forward.1} parent=1 // pred_fallthru
      _
    // Predicated region
    $region62: #{ff_net_forward.1} parent=1 // pred_check
      _
    $region63: #{ff_net_forward.1} parent=1 // pred_check_branch
      %162 = sbr.rel (0) target = $region65
    $region64: #{ff_net_forward.1} parent=1 // pred_region
      %164 = dma.done [#allocation9], 8192
    $region65: #{ff_net_forward.1} parent=1 // pred_fallthru
      _
    // Predicated region
    $region66: #{ff_net_forward.1} parent=1 // pred_check
      _
    $region67: #{ff_net_forward.1} parent=1 // pred_check_branch
      %166 = sbr.rel (0) target = $region69
    $region68: #{ff_net_forward.1} parent=1 // pred_region
      %168 = dma.done [#allocation12], 32
    $region69: #{ff_net_forward.1} parent=1 // pred_fallthru
      _
    // Predicated region
    $region70: #{ff_net_forward.1} parent=1 // pred_check
      _
    $region71: #{ff_net_forward.1} parent=1 // pred_check_branch
      %170 = sbr.rel (0) target = $region73
    $region72: #{ff_net_forward.1} parent=1 // pred_region
      %172 = dma.done [#allocation12], 2048
    $region73: #{ff_net_forward.1} parent=1 // pred_fallthru
      _
    // Predicated region
    $region74: #{ff_net_forward.1} parent=1 // pred_check
      _
    $region75: #{ff_net_forward.1} parent=1 // pred_check_branch
      %174 = sbr.rel (0) target = $region77
    $region76: #{ff_net_forward.1} parent=1 // pred_region
      %176 = dma.done [#allocation15], 16
    $region77: #{ff_net_forward.1} parent=1 // pred_fallthru
      _
    // Predicated region
    $region78: #{ff_net_forward.1} parent=1 // pred_check
      _
    $region79: #{ff_net_forward.1} parent=1 // pred_check_branch
      %178 = sbr.rel (0) target = $region81
    $region80: #{ff_net_forward.1} parent=1 // pred_region
      %180 = dma.done [#allocation15], 1024
    $region81: #{ff_net_forward.1} parent=1 // pred_fallthru
      _
    // Predicated region
    $region82: #{ff_net_forward.1} parent=1 // pred_check
      _
    $region83: #{ff_net_forward.1} parent=1 // pred_check_branch
      %182 = sbr.rel (0) target = $region85
    $region84: #{ff_net_forward.1} parent=1 // pred_region
      %184 = dma.done [#allocation18], 16
    $region85: #{ff_net_forward.1} parent=1 // pred_fallthru
      _
    %v186 = vld [vmem:[%s0] sm:$0xff]
    %v187 = vld [vmem:[%s0 + $0x8] sm:$0xff]
    %v188 = vld [vmem:[%s0 + $0x10] sm:$0xff]
    %v189 = vld [vmem:[%s0 + $0x18] sm:$0xff]
    %v190 = vld [vmem:[%s0 + $0x20] sm:$0xff]
    %v191 = vld [vmem:[%s0 + $0x28] sm:$0xff]
    %v192 = vld [vmem:[%s0 + $0x30] sm:$0xff]
    %v193 = vpack.c.bf16 %v186, %v186
    %v194 = vpack.c.bf16 %v187, %v187
    %v195 = vpack.c.bf16 %v188, %v188
    %v196 = vpack.c.bf16 %v189, %v189
    %v197 = vpack.c.bf16 %v190, %v190
    %v198 = vpack.c.bf16 %v191, %v191
    %v199 = vpack.c.bf16 %v192, %v192
    %v200 = vld [vmem:[#allocation2] sm:$0xff]
    %v201 = vld [vmem:[#allocation2 + $0x8] sm:$0xff]
    %v202 = vld [vmem:[#allocation2 + $0x10] sm:$0xff]
    %v203 = vld [vmem:[#allocation2 + $0x18] sm:$0xff]
    %v204 = vld [vmem:[#allocation2 + $0x20] sm:$0xff]
    %v205 = vld [vmem:[#allocation2 + $0x28] sm:$0xff]
    %v206 = vld [vmem:[#allocation2 + $0x30] sm:$0xff]
    %v207 = vld [vmem:[#allocation2 + $0x38] sm:$0xff]
    %v208 = vld [vmem:[#allocation2 + $0x40] sm:$0xff]
    %v209 = vld [vmem:[#allocation2 + $0x48] sm:$0xff]
    %v210 = vld [vmem:[#allocation2 + $0x50] sm:$0xff]
    %v211 = vld [vmem:[#allocation2 + $0x58] sm:$0xff]
    %v212 = vld [vmem:[#allocation2 + $0x60] sm:$0xff]
    %v213 = vld [vmem:[#allocation2 + $0x68] sm:$0xff]
    %v214 = vld [vmem:[#allocation2 + $0x70] sm:$0xff]
    %v215 = vld [vmem:[#allocation2 + $0x78] sm:$0xff]
    %v216 = vld [vmem:[#allocation2 + $0x80] sm:$0xff]
    %v217 = vld [vmem:[#allocation2 + $0x88] sm:$0xff]
    %v218 = vld [vmem:[#allocation2 + $0x90] sm:$0xff]
    %v219 = vld [vmem:[#allocation2 + $0x98] sm:$0xff]
    %v220 = vld [vmem:[#allocation2 + $0xa0] sm:$0xff]
    %v221 = vld [vmem:[#allocation2 + $0xa8] sm:$0xff]
    %v222 = vld [vmem:[#allocation2 + $0xb0] sm:$0xff]
    %v223 = vld [vmem:[#allocation2 + $0xb8] sm:$0xff]
    %v224 = vld [vmem:[#allocation2 + $0xc0] sm:$0xff]
    %v225 = vld [vmem:[#allocation2 + $0xc8] sm:$0xff]
    %v226 = vld [vmem:[#allocation2 + $0xd0] sm:$0xff]
    %v227 = vld [vmem:[#allocation2 + $0xd8] sm:$0xff]
    %v228 = vld [vmem:[#allocation2 + $0xe0] sm:$0xff]
    %v229 = vld [vmem:[#allocation2 + $0xe8] sm:$0xff]
    %v230 = vld [vmem:[#allocation2 + $0xf0] sm:$0xff]
    %v231 = vld [vmem:[#allocation2 + $0xf8] sm:$0xff]
    %v232 = vld [vmem:[#allocation2 + $0x100] sm:$0xff]
    %v233 = vld [vmem:[#allocation2 + $0x108] sm:$0xff]
    %v234 = vld [vmem:[#allocation2 + $0x110] sm:$0xff]
    %v235 = vld [vmem:[#allocation2 + $0x118] sm:$0xff]
    %v236 = vld [vmem:[#allocation2 + $0x120] sm:$0xff]
    %v237 = vld [vmem:[#allocation2 + $0x128] sm:$0xff]
    %v238 = vld [vmem:[#allocation2 + $0x130] sm:$0xff]
    %v239 = vld [vmem:[#allocation2 + $0x138] sm:$0xff]
    %v240 = vld [vmem:[#allocation2 + $0x140] sm:$0xff]
    %v241 = vld [vmem:[#allocation2 + $0x148] sm:$0xff]
    %v242 = vld [vmem:[#allocation2 + $0x150] sm:$0xff]
    %v243 = vld [vmem:[#allocation2 + $0x158] sm:$0xff]
    %v244 = vld [vmem:[#allocation2 + $0x160] sm:$0xff]
    %v245 = vld [vmem:[#allocation2 + $0x168] sm:$0xff]
    %v246 = vld [vmem:[#allocation2 + $0x170] sm:$0xff]
    %v247 = vld [vmem:[#allocation2 + $0x178] sm:$0xff]
    %v248 = vld [vmem:[#allocation2 + $0x180] sm:$0xff]
    %v249 = vld [vmem:[#allocation2 + $0x188] sm:$0xff]
    %v250 = vld [vmem:[#allocation2 + $0x190] sm:$0xff]
    %v251 = vld [vmem:[#allocation2 + $0x198] sm:$0xff]
    %v252 = vld [vmem:[#allocation2 + $0x1a0] sm:$0xff]
    %v253 = vld [vmem:[#allocation2 + $0x1a8] sm:$0xff]
    %v254 = vld [vmem:[#allocation2 + $0x1b0] sm:$0xff]
    %v255 = vld [vmem:[#allocation2 + $0x1b8] sm:$0xff]
    %v256 = vld [vmem:[#allocation2 + $0x1c0] sm:$0xff]
    %v257 = vld [vmem:[#allocation2 + $0x1c8] sm:$0xff]
    %v258 = vld [vmem:[#allocation2 + $0x1d0] sm:$0xff]
    %v259 = vld [vmem:[#allocation2 + $0x1d8] sm:$0xff]
    %v260 = vld [vmem:[#allocation2 + $0x1e0] sm:$0xff]
    %v261 = vld [vmem:[#allocation2 + $0x1e8] sm:$0xff]
    %v262 = vld [vmem:[#allocation2 + $0x1f0] sm:$0xff]
    %v263 = vld [vmem:[#allocation2 + $0x1f8] sm:$0xff]
    %v264 = vld [vmem:[#allocation2 + $0x200] sm:$0xff]
    %v265 = vld [vmem:[#allocation2 + $0x208] sm:$0xff]
    %v266 = vld [vmem:[#allocation2 + $0x210] sm:$0xff]
    %v267 = vld [vmem:[#allocation2 + $0x218] sm:$0xff]
    %v268 = vld [vmem:[#allocation2 + $0x220] sm:$0xff]
    %v269 = vld [vmem:[#allocation2 + $0x228] sm:$0xff]
    %v270 = vld [vmem:[#allocation2 + $0x230] sm:$0xff]
    %v271 = vld [vmem:[#allocation2 + $0x238] sm:$0xff]
    %v272 = vld [vmem:[#allocation2 + $0x240] sm:$0xff]
    %v273 = vld [vmem:[#allocation2 + $0x248] sm:$0xff]
    %v274 = vld [vmem:[#allocation2 + $0x250] sm:$0xff]
    %v275 = vld [vmem:[#allocation2 + $0x258] sm:$0xff]
    %v276 = vld [vmem:[#allocation2 + $0x260] sm:$0xff]
    %v277 = vld [vmem:[#allocation2 + $0x268] sm:$0xff]
    %v278 = vld [vmem:[#allocation2 + $0x270] sm:$0xff]
    %v279 = vld [vmem:[#allocation2 + $0x278] sm:$0xff]
    %v280 = vld [vmem:[#allocation2 + $0x280] sm:$0xff]
    %v281 = vld [vmem:[#allocation2 + $0x288] sm:$0xff]
    %v282 = vld [vmem:[#allocation2 + $0x290] sm:$0xff]
    %v283 = vld [vmem:[#allocation2 + $0x298] sm:$0xff]
    %v284 = vld [vmem:[#allocation2 + $0x2a0] sm:$0xff]
    %v285 = vld [vmem:[#allocation2 + $0x2a8] sm:$0xff]
    %v286 = vld [vmem:[#allocation2 + $0x2b0] sm:$0xff]
    %v287 = vld [vmem:[#allocation2 + $0x2b8] sm:$0xff]
    %v288 = vld [vmem:[#allocation2 + $0x2c0] sm:$0xff]
    %v289 = vld [vmem:[#allocation2 + $0x2c8] sm:$0xff]
    %v290 = vld [vmem:[#allocation2 + $0x2d0] sm:$0xff]
    %v291 = vld [vmem:[#allocation2 + $0x2d8] sm:$0xff]
    %v292 = vld [vmem:[#allocation2 + $0x2e0] sm:$0xff]
    %v293 = vld [vmem:[#allocation2 + $0x2e8] sm:$0xff]
    %v294 = vld [vmem:[#allocation2 + $0x2f0] sm:$0xff]
    %v295 = vld [vmem:[#allocation2 + $0x2f8] sm:$0xff]
    %v296 = vld [vmem:[#allocation2 + $0x300] sm:$0xff]
    %v297 = vld [vmem:[#allocation2 + $0x308] sm:$0xff]
    %v298 = vld [vmem:[#allocation2 + $0x310] sm:$0xff]
    %v299 = vld [vmem:[#allocation2 + $0x318] sm:$0xff]
    %v300 = vld [vmem:[#allocation2 + $0x320] sm:$0xff]
    %v301 = vld [vmem:[#allocation2 + $0x328] sm:$0xff]
    %v302 = vld [vmem:[#allocation2 + $0x330] sm:$0xff]
    %v303 = vld [vmem:[#allocation2 + $0x338] sm:$0xff]
    %v304 = vld [vmem:[#allocation2 + $0x340] sm:$0xff]
    %v305 = vld [vmem:[#allocation2 + $0x348] sm:$0xff]
    %v306 = vld [vmem:[#allocation2 + $0x350] sm:$0xff]
    %v307 = vld [vmem:[#allocation2 + $0x358] sm:$0xff]
    %v308 = vld [vmem:[#allocation2 + $0x360] sm:$0xff]
    %v309 = vld [vmem:[#allocation2 + $0x368] sm:$0xff]
    %v310 = vld [vmem:[#allocation2 + $0x370] sm:$0xff]
    %v311 = vld [vmem:[#allocation2 + $0x378] sm:$0xff]
    %v312 = vld [vmem:[#allocation2 + $0x380] sm:$0xff]
    %v313 = vld [vmem:[#allocation2 + $0x388] sm:$0xff]
    %v314 = vld [vmem:[#allocation2 + $0x390] sm:$0xff]
    %v315 = vld [vmem:[#allocation2 + $0x398] sm:$0xff]
    %v316 = vld [vmem:[#allocation2 + $0x3a0] sm:$0xff]
    %v317 = vld [vmem:[#allocation2 + $0x3a8] sm:$0xff]
    %v318 = vld [vmem:[#allocation2 + $0x3b0] sm:$0xff]
    %v319 = vld [vmem:[#allocation2 + $0x3b8] sm:$0xff]
    %v320 = vld [vmem:[#allocation2 + $0x3c0] sm:$0xff]
    %v321 = vld [vmem:[#allocation2 + $0x3c8] sm:$0xff]
    %v322 = vld [vmem:[#allocation2 + $0x3d0] sm:$0xff]
    %v323 = vld [vmem:[#allocation2 + $0x3d8] sm:$0xff]
    %v324 = vld [vmem:[#allocation2 + $0x3e0] sm:$0xff]
    %v325 = vld [vmem:[#allocation2 + $0x3e8] sm:$0xff]
    %v326 = vld [vmem:[#allocation2 + $0x3f0] sm:$0xff]
    %v327 = vld [vmem:[#allocation2 + $0x3f8] sm:$0xff]
    %v328 = vld [vmem:[#allocation2 + $0x400] sm:$0xff]
    %v329 = vld [vmem:[#allocation2 + $0x408] sm:$0xff]
    %v330 = vld [vmem:[#allocation2 + $0x410] sm:$0xff]
    %v331 = vld [vmem:[#allocation2 + $0x418] sm:$0xff]
    %v332 = vld [vmem:[#allocation2 + $0x420] sm:$0xff]
    %v333 = vld [vmem:[#allocation2 + $0x428] sm:$0xff]
    %v334 = vld [vmem:[#allocation2 + $0x430] sm:$0xff]
    %v335 = vld [vmem:[#allocation2 + $0x438] sm:$0xff]
    %v336 = vld [vmem:[#allocation2 + $0x440] sm:$0xff]
    %v337 = vld [vmem:[#allocation2 + $0x448] sm:$0xff]
    %v338 = vld [vmem:[#allocation2 + $0x450] sm:$0xff]
    %v339 = vld [vmem:[#allocation2 + $0x458] sm:$0xff]
    %v340 = vld [vmem:[#allocation2 + $0x460] sm:$0xff]
    %v341 = vld [vmem:[#allocation2 + $0x468] sm:$0xff]
    %v342 = vld [vmem:[#allocation2 + $0x470] sm:$0xff]
    %v343 = vld [vmem:[#allocation2 + $0x478] sm:$0xff]
    %v344 = vld [vmem:[#allocation2 + $0x480] sm:$0xff]
    %v345 = vld [vmem:[#allocation2 + $0x488] sm:$0xff]
    %v346 = vld [vmem:[#allocation2 + $0x490] sm:$0xff]
    %v347 = vld [vmem:[#allocation2 + $0x498] sm:$0xff]
    %v348 = vld [vmem:[#allocation2 + $0x4a0] sm:$0xff]
    %v349 = vld [vmem:[#allocation2 + $0x4a8] sm:$0xff]
    %v350 = vld [vmem:[#allocation2 + $0x4b0] sm:$0xff]
    %v351 = vld [vmem:[#allocation2 + $0x4b8] sm:$0xff]
    %v352 = vld [vmem:[#allocation2 + $0x4c0] sm:$0xff]
    %v353 = vld [vmem:[#allocation2 + $0x4c8] sm:$0xff]
    %v354 = vld [vmem:[#allocation2 + $0x4d0] sm:$0xff]
    %v355 = vld [vmem:[#allocation2 + $0x4d8] sm:$0xff]
    %v356 = vld [vmem:[#allocation2 + $0x4e0] sm:$0xff]
    %v357 = vld [vmem:[#allocation2 + $0x4e8] sm:$0xff]
    %v358 = vld [vmem:[#allocation2 + $0x4f0] sm:$0xff]
    %v359 = vld [vmem:[#allocation2 + $0x4f8] sm:$0xff]
    %v360 = vld [vmem:[#allocation2 + $0x500] sm:$0xff]
    %v361 = vld [vmem:[#allocation2 + $0x508] sm:$0xff]
    %v362 = vld [vmem:[#allocation2 + $0x510] sm:$0xff]
    %v363 = vld [vmem:[#allocation2 + $0x518] sm:$0xff]
    %v364 = vld [vmem:[#allocation2 + $0x520] sm:$0xff]
    %v365 = vld [vmem:[#allocation2 + $0x528] sm:$0xff]
    %v366 = vld [vmem:[#allocation2 + $0x530] sm:$0xff]
    %v367 = vld [vmem:[#allocation2 + $0x538] sm:$0xff]
    %v368 = vld [vmem:[#allocation2 + $0x540] sm:$0xff]
    %v369 = vld [vmem:[#allocation2 + $0x548] sm:$0xff]
    %v370 = vld [vmem:[#allocation2 + $0x550] sm:$0xff]
    %v371 = vld [vmem:[#allocation2 + $0x558] sm:$0xff]
    %v372 = vld [vmem:[#allocation2 + $0x560] sm:$0xff]
    %v373 = vld [vmem:[#allocation2 + $0x568] sm:$0xff]
    %v374 = vld [vmem:[#allocation2 + $0x570] sm:$0xff]
    %v375 = vld [vmem:[#allocation2 + $0x578] sm:$0xff]
    %v376 = vld [vmem:[#allocation2 + $0x580] sm:$0xff]
    %v377 = vld [vmem:[#allocation2 + $0x588] sm:$0xff]
    %v378 = vld [vmem:[#allocation2 + $0x590] sm:$0xff]
    %v379 = vld [vmem:[#allocation2 + $0x598] sm:$0xff]
    %v380 = vld [vmem:[#allocation2 + $0x5a0] sm:$0xff]
    %v381 = vld [vmem:[#allocation2 + $0x5a8] sm:$0xff]
    %v382 = vld [vmem:[#allocation2 + $0x5b0] sm:$0xff]
    %v383 = vld [vmem:[#allocation2 + $0x5b8] sm:$0xff]
    %v384 = vld [vmem:[#allocation2 + $0x5c0] sm:$0xff]
    %v385 = vld [vmem:[#allocation2 + $0x5c8] sm:$0xff]
    %v386 = vld [vmem:[#allocation2 + $0x5d0] sm:$0xff]
    %v387 = vld [vmem:[#allocation2 + $0x5d8] sm:$0xff]
    %v388 = vld [vmem:[#allocation2 + $0x5e0] sm:$0xff]
    %v389 = vld [vmem:[#allocation2 + $0x5e8] sm:$0xff]
    %v390 = vld [vmem:[#allocation2 + $0x5f0] sm:$0xff]
    %v391 = vld [vmem:[#allocation2 + $0x5f8] sm:$0xff]
    %v392 = vld [vmem:[#allocation2 + $0x600] sm:$0xff]
    %v393 = vld [vmem:[#allocation2 + $0x608] sm:$0xff]
    %v394 = vld [vmem:[#allocation2 + $0x610] sm:$0xff]
    %v395 = vld [vmem:[#allocation2 + $0x618] sm:$0xff]
    %v396 = vld [vmem:[#allocation2 + $0x620] sm:$0xff]
    %v397 = vld [vmem:[#allocation2 + $0x628] sm:$0xff]
    %v398 = vld [vmem:[#allocation2 + $0x630] sm:$0xff]
    %v399 = vld [vmem:[#allocation2 + $0x638] sm:$0xff]
    %v400 = vld [vmem:[#allocation2 + $0x640] sm:$0xff]
    %v401 = vld [vmem:[#allocation2 + $0x648] sm:$0xff]
    %v402 = vld [vmem:[#allocation2 + $0x650] sm:$0xff]
    %v403 = vld [vmem:[#allocation2 + $0x658] sm:$0xff]
    %v404 = vld [vmem:[#allocation2 + $0x660] sm:$0xff]
    %v405 = vld [vmem:[#allocation2 + $0x668] sm:$0xff]
    %v406 = vld [vmem:[#allocation2 + $0x670] sm:$0xff]
    %v407 = vld [vmem:[#allocation2 + $0x678] sm:$0xff]
    %v408 = vld [vmem:[#allocation2 + $0x680] sm:$0xff]
    %v409 = vld [vmem:[#allocation2 + $0x688] sm:$0xff]
    %v410 = vld [vmem:[#allocation2 + $0x690] sm:$0xff]
    %v411 = vld [vmem:[#allocation2 + $0x698] sm:$0xff]
    %v412 = vld [vmem:[#allocation2 + $0x6a0] sm:$0xff]
    %v413 = vld [vmem:[#allocation2 + $0x6a8] sm:$0xff]
    %v414 = vld [vmem:[#allocation2 + $0x6b0] sm:$0xff]
    %v415 = vld [vmem:[#allocation2 + $0x6b8] sm:$0xff]
    %v416 = vld [vmem:[#allocation2 + $0x6c0] sm:$0xff]
    %v417 = vld [vmem:[#allocation2 + $0x6c8] sm:$0xff]
    %v418 = vld [vmem:[#allocation2 + $0x6d0] sm:$0xff]
    %v419 = vld [vmem:[#allocation2 + $0x6d8] sm:$0xff]
    %v420 = vld [vmem:[#allocation2 + $0x6e0] sm:$0xff]
    %v421 = vld [vmem:[#allocation2 + $0x6e8] sm:$0xff]
    %v422 = vld [vmem:[#allocation2 + $0x6f0] sm:$0xff]
    %v423 = vld [vmem:[#allocation2 + $0x6f8] sm:$0xff]
    %v424 = vld [vmem:[#allocation2 + $0x700] sm:$0xff]
    %v425 = vld [vmem:[#allocation2 + $0x708] sm:$0xff]
    %v426 = vld [vmem:[#allocation2 + $0x710] sm:$0xff]
    %v427 = vld [vmem:[#allocation2 + $0x718] sm:$0xff]
    %v428 = vld [vmem:[#allocation2 + $0x720] sm:$0xff]
    %v429 = vld [vmem:[#allocation2 + $0x728] sm:$0xff]
    %v430 = vld [vmem:[#allocation2 + $0x730] sm:$0xff]
    %v431 = vld [vmem:[#allocation2 + $0x738] sm:$0xff]
    %v432 = vld [vmem:[#allocation2 + $0x740] sm:$0xff]
    %v433 = vld [vmem:[#allocation2 + $0x748] sm:$0xff]
    %v434 = vld [vmem:[#allocation2 + $0x750] sm:$0xff]
    %v435 = vld [vmem:[#allocation2 + $0x758] sm:$0xff]
    %v436 = vld [vmem:[#allocation2 + $0x760] sm:$0xff]
    %v437 = vld [vmem:[#allocation2 + $0x768] sm:$0xff]
    %v438 = vld [vmem:[#allocation2 + $0x770] sm:$0xff]
    %v439 = vld [vmem:[#allocation2 + $0x778] sm:$0xff]
    %v440 = vld [vmem:[#allocation2 + $0x780] sm:$0xff]
    %v441 = vld [vmem:[#allocation2 + $0x788] sm:$0xff]
    %v442 = vld [vmem:[#allocation2 + $0x790] sm:$0xff]
    %v443 = vld [vmem:[#allocation2 + $0x798] sm:$0xff]
    %v444 = vld [vmem:[#allocation2 + $0x7a0] sm:$0xff]
    %v445 = vld [vmem:[#allocation2 + $0x7a8] sm:$0xff]
    %v446 = vld [vmem:[#allocation2 + $0x7b0] sm:$0xff]
    %v447 = vld [vmem:[#allocation2 + $0x7b8] sm:$0xff]
    %v448 = vld [vmem:[#allocation2 + $0x7c0] sm:$0xff]
    %v449 = vld [vmem:[#allocation2 + $0x7c8] sm:$0xff]
    %v450 = vld [vmem:[#allocation2 + $0x7d0] sm:$0xff]
    %v451 = vld [vmem:[#allocation2 + $0x7d8] sm:$0xff]
    %v452 = vld [vmem:[#allocation2 + $0x7e0] sm:$0xff]
    %v453 = vld [vmem:[#allocation2 + $0x7e8] sm:$0xff]
    %v454 = vld [vmem:[#allocation2 + $0x7f0] sm:$0xff]
    %v455 = vld [vmem:[#allocation2 + $0x7f8] sm:$0xff]
    %v456 = vld [vmem:[#allocation2 + $0x800] sm:$0xff]
    %v457 = vld [vmem:[#allocation2 + $0x808] sm:$0xff]
    %v458 = vld [vmem:[#allocation2 + $0x810] sm:$0xff]
    %v459 = vld [vmem:[#allocation2 + $0x818] sm:$0xff]
    %v460 = vld [vmem:[#allocation2 + $0x820] sm:$0xff]
    %v461 = vld [vmem:[#allocation2 + $0x828] sm:$0xff]
    %v462 = vld [vmem:[#allocation2 + $0x830] sm:$0xff]
    %v463 = vld [vmem:[#allocation2 + $0x838] sm:$0xff]
    %v464 = vld [vmem:[#allocation2 + $0x840] sm:$0xff]
    %v465 = vld [vmem:[#allocation2 + $0x848] sm:$0xff]
    %v466 = vld [vmem:[#allocation2 + $0x850] sm:$0xff]
    %v467 = vld [vmem:[#allocation2 + $0x858] sm:$0xff]
    %v468 = vld [vmem:[#allocation2 + $0x860] sm:$0xff]
    %v469 = vld [vmem:[#allocation2 + $0x868] sm:$0xff]
    %v470 = vld [vmem:[#allocation2 + $0x870] sm:$0xff]
    %v471 = vld [vmem:[#allocation2 + $0x878] sm:$0xff]
    %v472 = vld [vmem:[#allocation2 + $0x880] sm:$0xff]
    %v473 = vld [vmem:[#allocation2 + $0x888] sm:$0xff]
    %v474 = vld [vmem:[#allocation2 + $0x890] sm:$0xff]
    %v475 = vld [vmem:[#allocation2 + $0x898] sm:$0xff]
    %v476 = vld [vmem:[#allocation2 + $0x8a0] sm:$0xff]
    %v477 = vld [vmem:[#allocation2 + $0x8a8] sm:$0xff]
    %v478 = vld [vmem:[#allocation2 + $0x8b0] sm:$0xff]
    %v479 = vld [vmem:[#allocation2 + $0x8b8] sm:$0xff]
    %v480 = vld [vmem:[#allocation2 + $0x8c0] sm:$0xff]
    %v481 = vld [vmem:[#allocation2 + $0x8c8] sm:$0xff]
    %v482 = vld [vmem:[#allocation2 + $0x8d0] sm:$0xff]
    %v483 = vld [vmem:[#allocation2 + $0x8d8] sm:$0xff]
    %v484 = vld [vmem:[#allocation2 + $0x8e0] sm:$0xff]
    %v485 = vld [vmem:[#allocation2 + $0x8e8] sm:$0xff]
    %v486 = vld [vmem:[#allocation2 + $0x8f0] sm:$0xff]
    %v487 = vld [vmem:[#allocation2 + $0x8f8] sm:$0xff]
    %v488 = vld [vmem:[#allocation2 + $0x900] sm:$0xff]
    %v489 = vld [vmem:[#allocation2 + $0x908] sm:$0xff]
    %v490 = vld [vmem:[#allocation2 + $0x910] sm:$0xff]
    %v491 = vld [vmem:[#allocation2 + $0x918] sm:$0xff]
    %v492 = vld [vmem:[#allocation2 + $0x920] sm:$0xff]
    %v493 = vld [vmem:[#allocation2 + $0x928] sm:$0xff]
    %v494 = vld [vmem:[#allocation2 + $0x930] sm:$0xff]
    %v495 = vld [vmem:[#allocation2 + $0x938] sm:$0xff]
    %v496 = vld [vmem:[#allocation2 + $0x940] sm:$0xff]
    %v497 = vld [vmem:[#allocation2 + $0x948] sm:$0xff]
    %v498 = vld [vmem:[#allocation2 + $0x950] sm:$0xff]
    %v499 = vld [vmem:[#allocation2 + $0x958] sm:$0xff]
    %v500 = vld [vmem:[#allocation2 + $0x960] sm:$0xff]
    %v501 = vld [vmem:[#allocation2 + $0x968] sm:$0xff]
    %v502 = vld [vmem:[#allocation2 + $0x970] sm:$0xff]
    %v503 = vld [vmem:[#allocation2 + $0x978] sm:$0xff]
    %v504 = vld [vmem:[#allocation2 + $0x980] sm:$0xff]
    %v505 = vld [vmem:[#allocation2 + $0x988] sm:$0xff]
    %v506 = vld [vmem:[#allocation2 + $0x990] sm:$0xff]
    %v507 = vld [vmem:[#allocation2 + $0x998] sm:$0xff]
    %v508 = vld [vmem:[#allocation2 + $0x9a0] sm:$0xff]
    %v509 = vld [vmem:[#allocation2 + $0x9a8] sm:$0xff]
    %v510 = vld [vmem:[#allocation2 + $0x9b0] sm:$0xff]
    %v511 = vld [vmem:[#allocation2 + $0x9b8] sm:$0xff]
    %v512 = vld [vmem:[#allocation2 + $0x9c0] sm:$0xff]
    %v513 = vld [vmem:[#allocation2 + $0x9c8] sm:$0xff]
    %v514 = vld [vmem:[#allocation2 + $0x9d0] sm:$0xff]
    %v515 = vld [vmem:[#allocation2 + $0x9d8] sm:$0xff]
    %v516 = vld [vmem:[#allocation2 + $0x9e0] sm:$0xff]
    %v517 = vld [vmem:[#allocation2 + $0x9e8] sm:$0xff]
    %v518 = vld [vmem:[#allocation2 + $0x9f0] sm:$0xff]
    %v519 = vld [vmem:[#allocation2 + $0x9f8] sm:$0xff]
    %v520 = vld [vmem:[#allocation2 + $0xa00] sm:$0xff]
    %v521 = vld [vmem:[#allocation2 + $0xa08] sm:$0xff]
    %v522 = vld [vmem:[#allocation2 + $0xa10] sm:$0xff]
    %v523 = vld [vmem:[#allocation2 + $0xa18] sm:$0xff]
    %v524 = vld [vmem:[#allocation2 + $0xa20] sm:$0xff]
    %v525 = vld [vmem:[#allocation2 + $0xa28] sm:$0xff]
    %v526 = vld [vmem:[#allocation2 + $0xa30] sm:$0xff]
    %v527 = vld [vmem:[#allocation2 + $0xa38] sm:$0xff]
    %v528 = vld [vmem:[#allocation2 + $0xa40] sm:$0xff]
    %v529 = vld [vmem:[#allocation2 + $0xa48] sm:$0xff]
    %v530 = vld [vmem:[#allocation2 + $0xa50] sm:$0xff]
    %v531 = vld [vmem:[#allocation2 + $0xa58] sm:$0xff]
    %v532 = vld [vmem:[#allocation2 + $0xa60] sm:$0xff]
    %v533 = vld [vmem:[#allocation2 + $0xa68] sm:$0xff]
    %v534 = vld [vmem:[#allocation2 + $0xa70] sm:$0xff]
    %v535 = vld [vmem:[#allocation2 + $0xa78] sm:$0xff]
    %v536 = vld [vmem:[#allocation2 + $0xa80] sm:$0xff]
    %v537 = vld [vmem:[#allocation2 + $0xa88] sm:$0xff]
    %v538 = vld [vmem:[#allocation2 + $0xa90] sm:$0xff]
    %v539 = vld [vmem:[#allocation2 + $0xa98] sm:$0xff]
    %v540 = vld [vmem:[#allocation2 + $0xaa0] sm:$0xff]
    %v541 = vld [vmem:[#allocation2 + $0xaa8] sm:$0xff]
    %v542 = vld [vmem:[#allocation2 + $0xab0] sm:$0xff]
    %v543 = vld [vmem:[#allocation2 + $0xab8] sm:$0xff]
    %v544 = vld [vmem:[#allocation2 + $0xac0] sm:$0xff]
    %v545 = vld [vmem:[#allocation2 + $0xac8] sm:$0xff]
    %v546 = vld [vmem:[#allocation2 + $0xad0] sm:$0xff]
    %v547 = vld [vmem:[#allocation2 + $0xad8] sm:$0xff]
    %v548 = vld [vmem:[#allocation2 + $0xae0] sm:$0xff]
    %v549 = vld [vmem:[#allocation2 + $0xae8] sm:$0xff]
    %v550 = vld [vmem:[#allocation2 + $0xaf0] sm:$0xff]
    %v551 = vld [vmem:[#allocation2 + $0xaf8] sm:$0xff]
    %v552 = vld [vmem:[#allocation2 + $0xb00] sm:$0xff]
    %v553 = vld [vmem:[#allocation2 + $0xb08] sm:$0xff]
    %v554 = vld [vmem:[#allocation2 + $0xb10] sm:$0xff]
    %v555 = vld [vmem:[#allocation2 + $0xb18] sm:$0xff]
    %v556 = vld [vmem:[#allocation2 + $0xb20] sm:$0xff]
    %v557 = vld [vmem:[#allocation2 + $0xb28] sm:$0xff]
    %v558 = vld [vmem:[#allocation2 + $0xb30] sm:$0xff]
    %v559 = vld [vmem:[#allocation2 + $0xb38] sm:$0xff]
    %v560 = vld [vmem:[#allocation2 + $0xb40] sm:$0xff]
    %v561 = vld [vmem:[#allocation2 + $0xb48] sm:$0xff]
    %v562 = vld [vmem:[#allocation2 + $0xb50] sm:$0xff]
    %v563 = vld [vmem:[#allocation2 + $0xb58] sm:$0xff]
    %v564 = vld [vmem:[#allocation2 + $0xb60] sm:$0xff]
    %v565 = vld [vmem:[#allocation2 + $0xb68] sm:$0xff]
    %v566 = vld [vmem:[#allocation2 + $0xb70] sm:$0xff]
    %v567 = vld [vmem:[#allocation2 + $0xb78] sm:$0xff]
    %v568 = vld [vmem:[#allocation2 + $0xb80] sm:$0xff]
    %v569 = vld [vmem:[#allocation2 + $0xb88] sm:$0xff]
    %v570 = vld [vmem:[#allocation2 + $0xb90] sm:$0xff]
    %v571 = vld [vmem:[#allocation2 + $0xb98] sm:$0xff]
    %v572 = vld [vmem:[#allocation2 + $0xba0] sm:$0xff]
    %v573 = vld [vmem:[#allocation2 + $0xba8] sm:$0xff]
    %v574 = vld [vmem:[#allocation2 + $0xbb0] sm:$0xff]
    %v575 = vld [vmem:[#allocation2 + $0xbb8] sm:$0xff]
    %v576 = vld [vmem:[#allocation2 + $0xbc0] sm:$0xff]
    %v577 = vld [vmem:[#allocation2 + $0xbc8] sm:$0xff]
    %v578 = vld [vmem:[#allocation2 + $0xbd0] sm:$0xff]
    %v579 = vld [vmem:[#allocation2 + $0xbd8] sm:$0xff]
    %v580 = vld [vmem:[#allocation2 + $0xbe0] sm:$0xff]
    %v581 = vld [vmem:[#allocation2 + $0xbe8] sm:$0xff]
    %v582 = vld [vmem:[#allocation2 + $0xbf0] sm:$0xff]
    %v583 = vld [vmem:[#allocation2 + $0xbf8] sm:$0xff]
    %v584 = vld [vmem:[#allocation2 + $0xc00] sm:$0xff]
    %v585 = vld [vmem:[#allocation2 + $0xc08] sm:$0xff]
    %v586 = vld [vmem:[#allocation2 + $0xc10] sm:$0xff]
    %v587 = vld [vmem:[#allocation2 + $0xc18] sm:$0xff]
    %v588 = vld [vmem:[#allocation2 + $0xc20] sm:$0xff]
    %v589 = vld [vmem:[#allocation2 + $0xc28] sm:$0xff]
    %v590 = vld [vmem:[#allocation2 + $0xc30] sm:$0xff]
    %v591 = vld [vmem:[#allocation2 + $0xc38] sm:$0xff]
    %v592 = vld [vmem:[#allocation5] sm:$0xff]
    %v594 = vperm.slane %v592, 0
    %v595 = vperm.slane %v592, 1
    %v596 = vperm.slane %v592, 2
    %v597 = vperm.slane %v592, 3
    %v598 = vperm.slane %v592, 4
    %v599 = vperm.slane %v592, 5
    %v600 = vperm.slane %v592, 6
    %v601 = vperm.slane %v592, 7
    %v1002 = vunpack.c.l.b16 %v200
    %v1003 = vunpack.c.h.b16 %v200
    %v1004 = vunpack.c.l.b16 %v201
    %v1005 = vunpack.c.h.b16 %v201
    %v1006 = vunpack.c.l.b16 %v202
    %v1007 = vunpack.c.h.b16 %v202
    %v1008 = vunpack.c.l.b16 %v203
    %v1009 = vunpack.c.h.b16 %v203
    %v1010 = vunpack.c.l.b16 %v204
    %v1011 = vunpack.c.h.b16 %v204
    %v1012 = vunpack.c.l.b16 %v205
    %v1013 = vunpack.c.h.b16 %v205
    %v1014 = vunpack.c.l.b16 %v206
    %v1015 = vunpack.c.h.b16 %v206
    %v1016 = vunpack.c.l.b16 %v207
    %v1017 = vunpack.c.h.b16 %v207
    %v1018 = vunpack.c.l.b16 %v208
    %v1019 = vunpack.c.h.b16 %v208
    %v1020 = vunpack.c.l.b16 %v209
    %v1021 = vunpack.c.h.b16 %v209
    %v1022 = vunpack.c.l.b16 %v210
    %v1023 = vunpack.c.h.b16 %v210
    %v1024 = vunpack.c.l.b16 %v211
    %v1025 = vunpack.c.h.b16 %v211
    %v1026 = vunpack.c.l.b16 %v212
    %v1027 = vunpack.c.h.b16 %v212
    %v1028 = vunpack.c.l.b16 %v213
    %v1029 = vunpack.c.h.b16 %v213
    %v1030 = vunpack.c.l.b16 %v214
    %v1031 = vunpack.c.h.b16 %v214
    %v1032 = vunpack.c.l.b16 %v215
    %v1033 = vunpack.c.h.b16 %v215
    %v1034 = vunpack.c.l.b16 %v216
    %v1035 = vunpack.c.h.b16 %v216
    %v1036 = vunpack.c.l.b16 %v217
    %v1037 = vunpack.c.h.b16 %v217
    %v1038 = vunpack.c.l.b16 %v218
    %v1039 = vunpack.c.h.b16 %v218
    %v1040 = vunpack.c.l.b16 %v219
    %v1041 = vunpack.c.h.b16 %v219
    %v1042 = vunpack.c.l.b16 %v220
    %v1043 = vunpack.c.h.b16 %v220
    %v1044 = vunpack.c.l.b16 %v221
    %v1045 = vunpack.c.h.b16 %v221
    %v1046 = vunpack.c.l.b16 %v222
    %v1047 = vunpack.c.h.b16 %v222
    %v1048 = vunpack.c.l.b16 %v223
    %v1049 = vunpack.c.h.b16 %v223
    %v1050 = vunpack.c.l.b16 %v224
    %v1051 = vunpack.c.h.b16 %v224
    %v1052 = vunpack.c.l.b16 %v225
    %v1053 = vunpack.c.h.b16 %v225
    %v1054 = vunpack.c.l.b16 %v226
    %v1055 = vunpack.c.h.b16 %v226
    %v1056 = vunpack.c.l.b16 %v227
    %v1057 = vunpack.c.h.b16 %v227
    %v1058 = vunpack.c.l.b16 %v228
    %v1059 = vunpack.c.h.b16 %v228
    %v1060 = vunpack.c.l.b16 %v229
    %v1061 = vunpack.c.h.b16 %v229
    %v1062 = vunpack.c.l.b16 %v230
    %v1063 = vunpack.c.h.b16 %v230
    %v1064 = vunpack.c.l.b16 %v231
    %v1065 = vunpack.c.h.b16 %v231
    %v1066 = vunpack.c.l.b16 %v232
    %v1067 = vunpack.c.h.b16 %v232
    %v1068 = vunpack.c.l.b16 %v233
    %v1069 = vunpack.c.h.b16 %v233
    %v1070 = vunpack.c.l.b16 %v234
    %v1071 = vunpack.c.h.b16 %v234
    %v1072 = vunpack.c.l.b16 %v235
    %v1073 = vunpack.c.h.b16 %v235
    %v1074 = vunpack.c.l.b16 %v236
    %v1075 = vunpack.c.h.b16 %v236
    %v1076 = vunpack.c.l.b16 %v237
    %v1077 = vunpack.c.h.b16 %v237
    %v1078 = vunpack.c.l.b16 %v238
    %v1079 = vunpack.c.h.b16 %v238
    %v1080 = vunpack.c.l.b16 %v239
    %v1081 = vunpack.c.h.b16 %v239
    %v1082 = vunpack.c.l.b16 %v240
    %v1083 = vunpack.c.h.b16 %v240
    %v1084 = vunpack.c.l.b16 %v241
    %v1085 = vunpack.c.h.b16 %v241
    %v1086 = vunpack.c.l.b16 %v242
    %v1087 = vunpack.c.h.b16 %v242
    %v1088 = vunpack.c.l.b16 %v243
    %v1089 = vunpack.c.h.b16 %v243
    %v1090 = vunpack.c.l.b16 %v244
    %v1091 = vunpack.c.h.b16 %v244
    %v1092 = vunpack.c.l.b16 %v245
    %v1093 = vunpack.c.h.b16 %v245
    %v1094 = vunpack.c.l.b16 %v246
    %v1095 = vunpack.c.h.b16 %v246
    %v1096 = vunpack.c.l.b16 %v247
    %v1097 = vunpack.c.h.b16 %v247
    %v1098 = vunpack.c.l.b16 %v248
    %v1099 = vunpack.c.h.b16 %v248
    %v1100 = vunpack.c.l.b16 %v249
    %v1101 = vunpack.c.h.b16 %v249
    %v1102 = vunpack.c.l.b16 %v250
    %v1103 = vunpack.c.h.b16 %v250
    %v1104 = vunpack.c.l.b16 %v251
    %v1105 = vunpack.c.h.b16 %v251
    %v1106 = vunpack.c.l.b16 %v252
    %v1107 = vunpack.c.h.b16 %v252
    %v1108 = vunpack.c.l.b16 %v253
    %v1109 = vunpack.c.h.b16 %v253
    %v1110 = vunpack.c.l.b16 %v254
    %v1111 = vunpack.c.h.b16 %v254
    %v1112 = vunpack.c.l.b16 %v255
    %v1113 = vunpack.c.h.b16 %v255
    %v1114 = vunpack.c.l.b16 %v256
    %v1115 = vunpack.c.h.b16 %v256
    %v1116 = vunpack.c.l.b16 %v257
    %v1117 = vunpack.c.h.b16 %v257
    %v1118 = vunpack.c.l.b16 %v258
    %v1119 = vunpack.c.h.b16 %v258
    %v1120 = vunpack.c.l.b16 %v259
    %v1121 = vunpack.c.h.b16 %v259
    %v1122 = vunpack.c.l.b16 %v260
    %v1123 = vunpack.c.h.b16 %v260
    %v1124 = vunpack.c.l.b16 %v261
    %v1125 = vunpack.c.h.b16 %v261
    %v1126 = vunpack.c.l.b16 %v262
    %v1127 = vunpack.c.h.b16 %v262
    %v1128 = vunpack.c.l.b16 %v263
    %v1129 = vunpack.c.h.b16 %v263
    %v1130 = vunpack.c.l.b16 %v264
    %v1131 = vunpack.c.h.b16 %v264
    %v1132 = vunpack.c.l.b16 %v265
    %v1133 = vunpack.c.h.b16 %v265
    %v1134 = vunpack.c.l.b16 %v266
    %v1135 = vunpack.c.h.b16 %v266
    %v1136 = vunpack.c.l.b16 %v267
    %v1137 = vunpack.c.h.b16 %v267
    %v1138 = vunpack.c.l.b16 %v268
    %v1139 = vunpack.c.h.b16 %v268
    %v1140 = vunpack.c.l.b16 %v269
    %v1141 = vunpack.c.h.b16 %v269
    %v1142 = vunpack.c.l.b16 %v270
    %v1143 = vunpack.c.h.b16 %v270
    %v1144 = vunpack.c.l.b16 %v271
    %v1145 = vunpack.c.h.b16 %v271
    %v1146 = vunpack.c.l.b16 %v272
    %v1147 = vunpack.c.h.b16 %v272
    %v1148 = vunpack.c.l.b16 %v273
    %v1149 = vunpack.c.h.b16 %v273
    %v1150 = vunpack.c.l.b16 %v274
    %v1151 = vunpack.c.h.b16 %v274
    %v1152 = vunpack.c.l.b16 %v275
    %v1153 = vunpack.c.h.b16 %v275
    %v1154 = vunpack.c.l.b16 %v276
    %v1155 = vunpack.c.h.b16 %v276
    %v1156 = vunpack.c.l.b16 %v277
    %v1157 = vunpack.c.h.b16 %v277
    %v1158 = vunpack.c.l.b16 %v278
    %v1159 = vunpack.c.h.b16 %v278
    %v1160 = vunpack.c.l.b16 %v279
    %v1161 = vunpack.c.h.b16 %v279
    %v1162 = vunpack.c.l.b16 %v280
    %v1163 = vunpack.c.h.b16 %v280
    %v1164 = vunpack.c.l.b16 %v281
    %v1165 = vunpack.c.h.b16 %v281
    %v1166 = vunpack.c.l.b16 %v282
    %v1167 = vunpack.c.h.b16 %v282
    %v1168 = vunpack.c.l.b16 %v283
    %v1169 = vunpack.c.h.b16 %v283
    %v1170 = vunpack.c.l.b16 %v284
    %v1171 = vunpack.c.h.b16 %v284
    %v1172 = vunpack.c.l.b16 %v285
    %v1173 = vunpack.c.h.b16 %v285
    %v1174 = vunpack.c.l.b16 %v286
    %v1175 = vunpack.c.h.b16 %v286
    %v1176 = vunpack.c.l.b16 %v287
    %v1177 = vunpack.c.h.b16 %v287
    %v1178 = vunpack.c.l.b16 %v288
    %v1179 = vunpack.c.h.b16 %v288
    %v1180 = vunpack.c.l.b16 %v289
    %v1181 = vunpack.c.h.b16 %v289
    %v1182 = vunpack.c.l.b16 %v290
    %v1183 = vunpack.c.h.b16 %v290
    %v1184 = vunpack.c.l.b16 %v291
    %v1185 = vunpack.c.h.b16 %v291
    %v1186 = vunpack.c.l.b16 %v292
    %v1187 = vunpack.c.h.b16 %v292
    %v1188 = vunpack.c.l.b16 %v293
    %v1189 = vunpack.c.h.b16 %v293
    %v1190 = vunpack.c.l.b16 %v294
    %v1191 = vunpack.c.h.b16 %v294
    %v1192 = vunpack.c.l.b16 %v295
    %v1193 = vunpack.c.h.b16 %v295
    %v1194 = vunpack.c.l.b16 %v296
    %v1195 = vunpack.c.h.b16 %v296
    %v1196 = vunpack.c.l.b16 %v297
    %v1197 = vunpack.c.h.b16 %v297
    %v1198 = vunpack.c.l.b16 %v298
    %v1199 = vunpack.c.h.b16 %v298
    %v1200 = vunpack.c.l.b16 %v299
    %v1201 = vunpack.c.h.b16 %v299
    %v1202 = vunpack.c.l.b16 %v300
    %v1203 = vunpack.c.h.b16 %v300
    %v1204 = vunpack.c.l.b16 %v301
    %v1205 = vunpack.c.h.b16 %v301
    %v1206 = vunpack.c.l.b16 %v302
    %v1207 = vunpack.c.h.b16 %v302
    %v1208 = vunpack.c.l.b16 %v303
    %v1209 = vunpack.c.h.b16 %v303
    %v1210 = vunpack.c.l.b16 %v304
    %v1211 = vunpack.c.h.b16 %v304
    %v1212 = vunpack.c.l.b16 %v305
    %v1213 = vunpack.c.h.b16 %v305
    %v1214 = vunpack.c.l.b16 %v306
    %v1215 = vunpack.c.h.b16 %v306
    %v1216 = vunpack.c.l.b16 %v307
    %v1217 = vunpack.c.h.b16 %v307
    %v1218 = vunpack.c.l.b16 %v308
    %v1219 = vunpack.c.h.b16 %v308
    %v1220 = vunpack.c.l.b16 %v309
    %v1221 = vunpack.c.h.b16 %v309
    %v1222 = vunpack.c.l.b16 %v310
    %v1223 = vunpack.c.h.b16 %v310
    %v1224 = vunpack.c.l.b16 %v311
    %v1225 = vunpack.c.h.b16 %v311
    %v1226 = vunpack.c.l.b16 %v312
    %v1227 = vunpack.c.h.b16 %v312
    %v1228 = vunpack.c.l.b16 %v313
    %v1229 = vunpack.c.h.b16 %v313
    %v1230 = vunpack.c.l.b16 %v314
    %v1231 = vunpack.c.h.b16 %v314
    %v1232 = vunpack.c.l.b16 %v315
    %v1233 = vunpack.c.h.b16 %v315
    %v1234 = vunpack.c.l.b16 %v316
    %v1235 = vunpack.c.h.b16 %v316
    %v1236 = vunpack.c.l.b16 %v317
    %v1237 = vunpack.c.h.b16 %v317
    %v1238 = vunpack.c.l.b16 %v318
    %v1239 = vunpack.c.h.b16 %v318
    %v1240 = vunpack.c.l.b16 %v319
    %v1241 = vunpack.c.h.b16 %v319
    %v1242 = vunpack.c.l.b16 %v320
    %v1243 = vunpack.c.h.b16 %v320
    %v1244 = vunpack.c.l.b16 %v321
    %v1245 = vunpack.c.h.b16 %v321
    %v1246 = vunpack.c.l.b16 %v322
    %v1247 = vunpack.c.h.b16 %v322
    %v1248 = vunpack.c.l.b16 %v323
    %v1249 = vunpack.c.h.b16 %v323
    %v1250 = vunpack.c.l.b16 %v324
    %v1251 = vunpack.c.h.b16 %v324
    %v1252 = vunpack.c.l.b16 %v325
    %v1253 = vunpack.c.h.b16 %v325
    %v1254 = vunpack.c.l.b16 %v326
    %v1255 = vunpack.c.h.b16 %v326
    %v1256 = vunpack.c.l.b16 %v327
    %v1257 = vunpack.c.h.b16 %v327
    %v1258 = vunpack.c.l.b16 %v328
    %v1259 = vunpack.c.h.b16 %v328
    %v1260 = vunpack.c.l.b16 %v329
    %v1261 = vunpack.c.h.b16 %v329
    %v1262 = vunpack.c.l.b16 %v330
    %v1263 = vunpack.c.h.b16 %v330
    %v1264 = vunpack.c.l.b16 %v331
    %v1265 = vunpack.c.h.b16 %v331
    %v1266 = vunpack.c.l.b16 %v332
    %v1267 = vunpack.c.h.b16 %v332
    %v1268 = vunpack.c.l.b16 %v333
    %v1269 = vunpack.c.h.b16 %v333
    %v1270 = vunpack.c.l.b16 %v334
    %v1271 = vunpack.c.h.b16 %v334
    %v1272 = vunpack.c.l.b16 %v335
    %v1273 = vunpack.c.h.b16 %v335
    %v1274 = vunpack.c.l.b16 %v336
    %v1275 = vunpack.c.h.b16 %v336
    %v1276 = vunpack.c.l.b16 %v337
    %v1277 = vunpack.c.h.b16 %v337
    %v1278 = vunpack.c.l.b16 %v338
    %v1279 = vunpack.c.h.b16 %v338
    %v1280 = vunpack.c.l.b16 %v339
    %v1281 = vunpack.c.h.b16 %v339
    %v1282 = vunpack.c.l.b16 %v340
    %v1283 = vunpack.c.h.b16 %v340
    %v1284 = vunpack.c.l.b16 %v341
    %v1285 = vunpack.c.h.b16 %v341
    %v1286 = vunpack.c.l.b16 %v342
    %v1287 = vunpack.c.h.b16 %v342
    %v1288 = vunpack.c.l.b16 %v343
    %v1289 = vunpack.c.h.b16 %v343
    %v1290 = vunpack.c.l.b16 %v344
    %v1291 = vunpack.c.h.b16 %v344
    %v1292 = vunpack.c.l.b16 %v345
    %v1293 = vunpack.c.h.b16 %v345
    %v1294 = vunpack.c.l.b16 %v346
    %v1295 = vunpack.c.h.b16 %v346
    %v1296 = vunpack.c.l.b16 %v347
    %v1297 = vunpack.c.h.b16 %v347
    %v1298 = vunpack.c.l.b16 %v348
    %v1299 = vunpack.c.h.b16 %v348
    %v1300 = vunpack.c.l.b16 %v349
    %v1301 = vunpack.c.h.b16 %v349
    %v1302 = vunpack.c.l.b16 %v350
    %v1303 = vunpack.c.h.b16 %v350
    %v1304 = vunpack.c.l.b16 %v351
    %v1305 = vunpack.c.h.b16 %v351
    %v1306 = vunpack.c.l.b16 %v352
    %v1307 = vunpack.c.h.b16 %v352
    %v1308 = vunpack.c.l.b16 %v353
    %v1309 = vunpack.c.h.b16 %v353
    %v1310 = vunpack.c.l.b16 %v354
    %v1311 = vunpack.c.h.b16 %v354
    %v1312 = vunpack.c.l.b16 %v355
    %v1313 = vunpack.c.h.b16 %v355
    %v1314 = vunpack.c.l.b16 %v356
    %v1315 = vunpack.c.h.b16 %v356
    %v1316 = vunpack.c.l.b16 %v357
    %v1317 = vunpack.c.h.b16 %v357
    %v1318 = vunpack.c.l.b16 %v358
    %v1319 = vunpack.c.h.b16 %v358
    %v1320 = vunpack.c.l.b16 %v359
    %v1321 = vunpack.c.h.b16 %v359
    %v1322 = vunpack.c.l.b16 %v360
    %v1323 = vunpack.c.h.b16 %v360
    %v1324 = vunpack.c.l.b16 %v361
    %v1325 = vunpack.c.h.b16 %v361
    %v1326 = vunpack.c.l.b16 %v362
    %v1327 = vunpack.c.h.b16 %v362
    %v1328 = vunpack.c.l.b16 %v363
    %v1329 = vunpack.c.h.b16 %v363
    %v1330 = vunpack.c.l.b16 %v364
    %v1331 = vunpack.c.h.b16 %v364
    %v1332 = vunpack.c.l.b16 %v365
    %v1333 = vunpack.c.h.b16 %v365
    %v1334 = vunpack.c.l.b16 %v366
    %v1335 = vunpack.c.h.b16 %v366
    %v1336 = vunpack.c.l.b16 %v367
    %v1337 = vunpack.c.h.b16 %v367
    %v1338 = vunpack.c.l.b16 %v368
    %v1339 = vunpack.c.h.b16 %v368
    %v1340 = vunpack.c.l.b16 %v369
    %v1341 = vunpack.c.h.b16 %v369
    %v1342 = vunpack.c.l.b16 %v370
    %v1343 = vunpack.c.h.b16 %v370
    %v1344 = vunpack.c.l.b16 %v371
    %v1345 = vunpack.c.h.b16 %v371
    %v1346 = vunpack.c.l.b16 %v372
    %v1347 = vunpack.c.h.b16 %v372
    %v1348 = vunpack.c.l.b16 %v373
    %v1349 = vunpack.c.h.b16 %v373
    %v1350 = vunpack.c.l.b16 %v374
    %v1351 = vunpack.c.h.b16 %v374
    %v1352 = vunpack.c.l.b16 %v375
    %v1353 = vunpack.c.h.b16 %v375
    %v1354 = vunpack.c.l.b16 %v376
    %v1355 = vunpack.c.h.b16 %v376
    %v1356 = vunpack.c.l.b16 %v377
    %v1357 = vunpack.c.h.b16 %v377
    %v1358 = vunpack.c.l.b16 %v378
    %v1359 = vunpack.c.h.b16 %v378
    %v1360 = vunpack.c.l.b16 %v379
    %v1361 = vunpack.c.h.b16 %v379
    %v1362 = vunpack.c.l.b16 %v380
    %v1363 = vunpack.c.h.b16 %v380
    %v1364 = vunpack.c.l.b16 %v381
    %v1365 = vunpack.c.h.b16 %v381
    %v1366 = vunpack.c.l.b16 %v382
    %v1367 = vunpack.c.h.b16 %v382
    %v1368 = vunpack.c.l.b16 %v383
    %v1369 = vunpack.c.h.b16 %v383
    %v1370 = vunpack.c.l.b16 %v384
    %v1371 = vunpack.c.h.b16 %v384
    %v1372 = vunpack.c.l.b16 %v385
    %v1373 = vunpack.c.h.b16 %v385
    %v1374 = vunpack.c.l.b16 %v386
    %v1375 = vunpack.c.h.b16 %v386
    %v1376 = vunpack.c.l.b16 %v387
    %v1377 = vunpack.c.h.b16 %v387
    %v1378 = vunpack.c.l.b16 %v388
    %v1379 = vunpack.c.h.b16 %v388
    %v1380 = vunpack.c.l.b16 %v389
    %v1381 = vunpack.c.h.b16 %v389
    %v1382 = vunpack.c.l.b16 %v390
    %v1383 = vunpack.c.h.b16 %v390
    %v1384 = vunpack.c.l.b16 %v391
    %v1385 = vunpack.c.h.b16 %v391
    %v1386 = vunpack.c.l.b16 %v392
    %v1387 = vunpack.c.h.b16 %v392
    %v1388 = vunpack.c.l.b16 %v393
    %v1389 = vunpack.c.h.b16 %v393
    %v1390 = vunpack.c.l.b16 %v394
    %v1391 = vunpack.c.h.b16 %v394
    %v1392 = vunpack.c.l.b16 %v395
    %v1393 = vunpack.c.h.b16 %v395
    %v1394 = vunpack.c.l.b16 %v396
    %v1395 = vunpack.c.h.b16 %v396
    %v1396 = vunpack.c.l.b16 %v397
    %v1397 = vunpack.c.h.b16 %v397
    %v1398 = vunpack.c.l.b16 %v398
    %v1399 = vunpack.c.h.b16 %v398
    %v1400 = vunpack.c.l.b16 %v399
    %v1401 = vunpack.c.h.b16 %v399
    %v1402 = vunpack.c.l.b16 %v400
    %v1403 = vunpack.c.h.b16 %v400
    %v1404 = vunpack.c.l.b16 %v401
    %v1405 = vunpack.c.h.b16 %v401
    %v1406 = vunpack.c.l.b16 %v402
    %v1407 = vunpack.c.h.b16 %v402
    %v1408 = vunpack.c.l.b16 %v403
    %v1409 = vunpack.c.h.b16 %v403
    %v1410 = vunpack.c.l.b16 %v404
    %v1411 = vunpack.c.h.b16 %v404
    %v1412 = vunpack.c.l.b16 %v405
    %v1413 = vunpack.c.h.b16 %v405
    %v1414 = vunpack.c.l.b16 %v406
    %v1415 = vunpack.c.h.b16 %v406
    %v1416 = vunpack.c.l.b16 %v407
    %v1417 = vunpack.c.h.b16 %v407
    %v1418 = vunpack.c.l.b16 %v408
    %v1419 = vunpack.c.h.b16 %v408
    %v1420 = vunpack.c.l.b16 %v409
    %v1421 = vunpack.c.h.b16 %v409
    %v1422 = vunpack.c.l.b16 %v410
    %v1423 = vunpack.c.h.b16 %v410
    %v1424 = vunpack.c.l.b16 %v411
    %v1425 = vunpack.c.h.b16 %v411
    %v1426 = vunpack.c.l.b16 %v412
    %v1427 = vunpack.c.h.b16 %v412
    %v1428 = vunpack.c.l.b16 %v413
    %v1429 = vunpack.c.h.b16 %v413
    %v1430 = vunpack.c.l.b16 %v414
    %v1431 = vunpack.c.h.b16 %v414
    %v1432 = vunpack.c.l.b16 %v415
    %v1433 = vunpack.c.h.b16 %v415
    %v1434 = vunpack.c.l.b16 %v416
    %v1435 = vunpack.c.h.b16 %v416
    %v1436 = vunpack.c.l.b16 %v417
    %v1437 = vunpack.c.h.b16 %v417
    %v1438 = vunpack.c.l.b16 %v418
    %v1439 = vunpack.c.h.b16 %v418
    %v1440 = vunpack.c.l.b16 %v419
    %v1441 = vunpack.c.h.b16 %v419
    %v1442 = vunpack.c.l.b16 %v420
    %v1443 = vunpack.c.h.b16 %v420
    %v1444 = vunpack.c.l.b16 %v421
    %v1445 = vunpack.c.h.b16 %v421
    %v1446 = vunpack.c.l.b16 %v422
    %v1447 = vunpack.c.h.b16 %v422
    %v1448 = vunpack.c.l.b16 %v423
    %v1449 = vunpack.c.h.b16 %v423
    %v1450 = vunpack.c.l.b16 %v424
    %v1451 = vunpack.c.h.b16 %v424
    %v1452 = vunpack.c.l.b16 %v425
    %v1453 = vunpack.c.h.b16 %v425
    %v1454 = vunpack.c.l.b16 %v426
    %v1455 = vunpack.c.h.b16 %v426
    %v1456 = vunpack.c.l.b16 %v427
    %v1457 = vunpack.c.h.b16 %v427
    %v1458 = vunpack.c.l.b16 %v428
    %v1459 = vunpack.c.h.b16 %v428
    %v1460 = vunpack.c.l.b16 %v429
    %v1461 = vunpack.c.h.b16 %v429
    %v1462 = vunpack.c.l.b16 %v430
    %v1463 = vunpack.c.h.b16 %v430
    %v1464 = vunpack.c.l.b16 %v431
    %v1465 = vunpack.c.h.b16 %v431
    %v1466 = vunpack.c.l.b16 %v432
    %v1467 = vunpack.c.h.b16 %v432
    %v1468 = vunpack.c.l.b16 %v433
    %v1469 = vunpack.c.h.b16 %v433
    %v1470 = vunpack.c.l.b16 %v434
    %v1471 = vunpack.c.h.b16 %v434
    %v1472 = vunpack.c.l.b16 %v435
    %v1473 = vunpack.c.h.b16 %v435
    %v1474 = vunpack.c.l.b16 %v436
    %v1475 = vunpack.c.h.b16 %v436
    %v1476 = vunpack.c.l.b16 %v437
    %v1477 = vunpack.c.h.b16 %v437
    %v1478 = vunpack.c.l.b16 %v438
    %v1479 = vunpack.c.h.b16 %v438
    %v1480 = vunpack.c.l.b16 %v439
    %v1481 = vunpack.c.h.b16 %v439
    %v1482 = vunpack.c.l.b16 %v440
    %v1483 = vunpack.c.h.b16 %v440
    %v1484 = vunpack.c.l.b16 %v441
    %v1485 = vunpack.c.h.b16 %v441
    %v1486 = vunpack.c.l.b16 %v442
    %v1487 = vunpack.c.h.b16 %v442
    %v1488 = vunpack.c.l.b16 %v443
    %v1489 = vunpack.c.h.b16 %v443
    %v1490 = vunpack.c.l.b16 %v444
    %v1491 = vunpack.c.h.b16 %v444
    %v1492 = vunpack.c.l.b16 %v445
    %v1493 = vunpack.c.h.b16 %v445
    %v1494 = vunpack.c.l.b16 %v446
    %v1495 = vunpack.c.h.b16 %v446
    %v1496 = vunpack.c.l.b16 %v447
    %v1497 = vunpack.c.h.b16 %v447
    %v1498 = vunpack.c.l.b16 %v448
    %v1499 = vunpack.c.h.b16 %v448
    %v1500 = vunpack.c.l.b16 %v449
    %v1501 = vunpack.c.h.b16 %v449
    %v1502 = vunpack.c.l.b16 %v450
    %v1503 = vunpack.c.h.b16 %v450
    %v1504 = vunpack.c.l.b16 %v451
    %v1505 = vunpack.c.h.b16 %v451
    %v1506 = vunpack.c.l.b16 %v452
    %v1507 = vunpack.c.h.b16 %v452
    %v1508 = vunpack.c.l.b16 %v453
    %v1509 = vunpack.c.h.b16 %v453
    %v1510 = vunpack.c.l.b16 %v454
    %v1511 = vunpack.c.h.b16 %v454
    %v1512 = vunpack.c.l.b16 %v455
    %v1513 = vunpack.c.h.b16 %v455
    %v1514 = vunpack.c.l.b16 %v456
    %v1515 = vunpack.c.h.b16 %v456
    %v1516 = vunpack.c.l.b16 %v457
    %v1517 = vunpack.c.h.b16 %v457
    %v1518 = vunpack.c.l.b16 %v458
    %v1519 = vunpack.c.h.b16 %v458
    %v1520 = vunpack.c.l.b16 %v459
    %v1521 = vunpack.c.h.b16 %v459
    %v1522 = vunpack.c.l.b16 %v460
    %v1523 = vunpack.c.h.b16 %v460
    %v1524 = vunpack.c.l.b16 %v461
    %v1525 = vunpack.c.h.b16 %v461
    %v1526 = vunpack.c.l.b16 %v462
    %v1527 = vunpack.c.h.b16 %v462
    %v1528 = vunpack.c.l.b16 %v463
    %v1529 = vunpack.c.h.b16 %v463
    %v1530 = vunpack.c.l.b16 %v464
    %v1531 = vunpack.c.h.b16 %v464
    %v1532 = vunpack.c.l.b16 %v465
    %v1533 = vunpack.c.h.b16 %v465
    %v1534 = vunpack.c.l.b16 %v466
    %v1535 = vunpack.c.h.b16 %v466
    %v1536 = vunpack.c.l.b16 %v467
    %v1537 = vunpack.c.h.b16 %v467
    %v1538 = vunpack.c.l.b16 %v468
    %v1539 = vunpack.c.h.b16 %v468
    %v1540 = vunpack.c.l.b16 %v469
    %v1541 = vunpack.c.h.b16 %v469
    %v1542 = vunpack.c.l.b16 %v470
    %v1543 = vunpack.c.h.b16 %v470
    %v1544 = vunpack.c.l.b16 %v471
    %v1545 = vunpack.c.h.b16 %v471
    %v1546 = vunpack.c.l.b16 %v472
    %v1547 = vunpack.c.h.b16 %v472
    %v1548 = vunpack.c.l.b16 %v473
    %v1549 = vunpack.c.h.b16 %v473
    %v1550 = vunpack.c.l.b16 %v474
    %v1551 = vunpack.c.h.b16 %v474
    %v1552 = vunpack.c.l.b16 %v475
    %v1553 = vunpack.c.h.b16 %v475
    %v1554 = vunpack.c.l.b16 %v476
    %v1555 = vunpack.c.h.b16 %v476
    %v1556 = vunpack.c.l.b16 %v477
    %v1557 = vunpack.c.h.b16 %v477
    %v1558 = vunpack.c.l.b16 %v478
    %v1559 = vunpack.c.h.b16 %v478
    %v1560 = vunpack.c.l.b16 %v479
    %v1561 = vunpack.c.h.b16 %v479
    %v1562 = vunpack.c.l.b16 %v480
    %v1563 = vunpack.c.h.b16 %v480
    %v1564 = vunpack.c.l.b16 %v481
    %v1565 = vunpack.c.h.b16 %v481
    %v1566 = vunpack.c.l.b16 %v482
    %v1567 = vunpack.c.h.b16 %v482
    %v1568 = vunpack.c.l.b16 %v483
    %v1569 = vunpack.c.h.b16 %v483
    %v1570 = vunpack.c.l.b16 %v484
    %v1571 = vunpack.c.h.b16 %v484
    %v1572 = vunpack.c.l.b16 %v485
    %v1573 = vunpack.c.h.b16 %v485
    %v1574 = vunpack.c.l.b16 %v486
    %v1575 = vunpack.c.h.b16 %v486
    %v1576 = vunpack.c.l.b16 %v487
    %v1577 = vunpack.c.h.b16 %v487
    %v1578 = vunpack.c.l.b16 %v488
    %v1579 = vunpack.c.h.b16 %v488
    %v1580 = vunpack.c.l.b16 %v489
    %v1581 = vunpack.c.h.b16 %v489
    %v1582 = vunpack.c.l.b16 %v490
    %v1583 = vunpack.c.h.b16 %v490
    %v1584 = vunpack.c.l.b16 %v491
    %v1585 = vunpack.c.h.b16 %v491
    %v1586 = vunpack.c.l.b16 %v492
    %v1587 = vunpack.c.h.b16 %v492
    %v1588 = vunpack.c.l.b16 %v493
    %v1589 = vunpack.c.h.b16 %v493
    %v1590 = vunpack.c.l.b16 %v494
    %v1591 = vunpack.c.h.b16 %v494
    %v1592 = vunpack.c.l.b16 %v495
    %v1593 = vunpack.c.h.b16 %v495
    %v1594 = vunpack.c.l.b16 %v496
    %v1595 = vunpack.c.h.b16 %v496
    %v1596 = vunpack.c.l.b16 %v497
    %v1597 = vunpack.c.h.b16 %v497
    %v1598 = vunpack.c.l.b16 %v498
    %v1599 = vunpack.c.h.b16 %v498
    %v1600 = vunpack.c.l.b16 %v499
    %v1601 = vunpack.c.h.b16 %v499
    %v1602 = vunpack.c.l.b16 %v500
    %v1603 = vunpack.c.h.b16 %v500
    %v1604 = vunpack.c.l.b16 %v501
    %v1605 = vunpack.c.h.b16 %v501
    %v1606 = vunpack.c.l.b16 %v502
    %v1607 = vunpack.c.h.b16 %v502
    %v1608 = vunpack.c.l.b16 %v503
    %v1609 = vunpack.c.h.b16 %v503
    %v1610 = vunpack.c.l.b16 %v504
    %v1611 = vunpack.c.h.b16 %v504
    %v1612 = vunpack.c.l.b16 %v505
    %v1613 = vunpack.c.h.b16 %v505
    %v1614 = vunpack.c.l.b16 %v506
    %v1615 = vunpack.c.h.b16 %v506
    %v1616 = vunpack.c.l.b16 %v507
    %v1617 = vunpack.c.h.b16 %v507
    %v1618 = vunpack.c.l.b16 %v508
    %v1619 = vunpack.c.h.b16 %v508
    %v1620 = vunpack.c.l.b16 %v509
    %v1621 = vunpack.c.h.b16 %v509
    %v1622 = vunpack.c.l.b16 %v510
    %v1623 = vunpack.c.h.b16 %v510
    %v1624 = vunpack.c.l.b16 %v511
    %v1625 = vunpack.c.h.b16 %v511
    %v1626 = vunpack.c.l.b16 %v512
    %v1627 = vunpack.c.h.b16 %v512
    %v1628 = vunpack.c.l.b16 %v513
    %v1629 = vunpack.c.h.b16 %v513
    %v1630 = vunpack.c.l.b16 %v514
    %v1631 = vunpack.c.h.b16 %v514
    %v1632 = vunpack.c.l.b16 %v515
    %v1633 = vunpack.c.h.b16 %v515
    %v1634 = vunpack.c.l.b16 %v516
    %v1635 = vunpack.c.h.b16 %v516
    %v1636 = vunpack.c.l.b16 %v517
    %v1637 = vunpack.c.h.b16 %v517
    %v1638 = vunpack.c.l.b16 %v518
    %v1639 = vunpack.c.h.b16 %v518
    %v1640 = vunpack.c.l.b16 %v519
    %v1641 = vunpack.c.h.b16 %v519
    %v1642 = vunpack.c.l.b16 %v520
    %v1643 = vunpack.c.h.b16 %v520
    %v1644 = vunpack.c.l.b16 %v521
    %v1645 = vunpack.c.h.b16 %v521
    %v1646 = vunpack.c.l.b16 %v522
    %v1647 = vunpack.c.h.b16 %v522
    %v1648 = vunpack.c.l.b16 %v523
    %v1649 = vunpack.c.h.b16 %v523
    %v1650 = vunpack.c.l.b16 %v524
    %v1651 = vunpack.c.h.b16 %v524
    %v1652 = vunpack.c.l.b16 %v525
    %v1653 = vunpack.c.h.b16 %v525
    %v1654 = vunpack.c.l.b16 %v526
    %v1655 = vunpack.c.h.b16 %v526
    %v1656 = vunpack.c.l.b16 %v527
    %v1657 = vunpack.c.h.b16 %v527
    %v1658 = vunpack.c.l.b16 %v528
    %v1659 = vunpack.c.h.b16 %v528
    %v1660 = vunpack.c.l.b16 %v529
    %v1661 = vunpack.c.h.b16 %v529
    %v1662 = vunpack.c.l.b16 %v530
    %v1663 = vunpack.c.h.b16 %v530
    %v1664 = vunpack.c.l.b16 %v531
    %v1665 = vunpack.c.h.b16 %v531
    %v1666 = vunpack.c.l.b16 %v532
    %v1667 = vunpack.c.h.b16 %v532
    %v1668 = vunpack.c.l.b16 %v533
    %v1669 = vunpack.c.h.b16 %v533
    %v1670 = vunpack.c.l.b16 %v534
    %v1671 = vunpack.c.h.b16 %v534
    %v1672 = vunpack.c.l.b16 %v535
    %v1673 = vunpack.c.h.b16 %v535
    %v1674 = vunpack.c.l.b16 %v536
    %v1675 = vunpack.c.h.b16 %v536
    %v1676 = vunpack.c.l.b16 %v537
    %v1677 = vunpack.c.h.b16 %v537
    %v1678 = vunpack.c.l.b16 %v538
    %v1679 = vunpack.c.h.b16 %v538
    %v1680 = vunpack.c.l.b16 %v539
    %v1681 = vunpack.c.h.b16 %v539
    %v1682 = vunpack.c.l.b16 %v540
    %v1683 = vunpack.c.h.b16 %v540
    %v1684 = vunpack.c.l.b16 %v541
    %v1685 = vunpack.c.h.b16 %v541
    %v1686 = vunpack.c.l.b16 %v542
    %v1687 = vunpack.c.h.b16 %v542
    %v1688 = vunpack.c.l.b16 %v543
    %v1689 = vunpack.c.h.b16 %v543
    %v1690 = vunpack.c.l.b16 %v544
    %v1691 = vunpack.c.h.b16 %v544
    %v1692 = vunpack.c.l.b16 %v545
    %v1693 = vunpack.c.h.b16 %v545
    %v1694 = vunpack.c.l.b16 %v546
    %v1695 = vunpack.c.h.b16 %v546
    %v1696 = vunpack.c.l.b16 %v547
    %v1697 = vunpack.c.h.b16 %v547
    %v1698 = vunpack.c.l.b16 %v548
    %v1699 = vunpack.c.h.b16 %v548
    %v1700 = vunpack.c.l.b16 %v549
    %v1701 = vunpack.c.h.b16 %v549
    %v1702 = vunpack.c.l.b16 %v550
    %v1703 = vunpack.c.h.b16 %v550
    %v1704 = vunpack.c.l.b16 %v551
    %v1705 = vunpack.c.h.b16 %v551
    %v1706 = vunpack.c.l.b16 %v552
    %v1707 = vunpack.c.h.b16 %v552
    %v1708 = vunpack.c.l.b16 %v553
    %v1709 = vunpack.c.h.b16 %v553
    %v1710 = vunpack.c.l.b16 %v554
    %v1711 = vunpack.c.h.b16 %v554
    %v1712 = vunpack.c.l.b16 %v555
    %v1713 = vunpack.c.h.b16 %v555
    %v1714 = vunpack.c.l.b16 %v556
    %v1715 = vunpack.c.h.b16 %v556
    %v1716 = vunpack.c.l.b16 %v557
    %v1717 = vunpack.c.h.b16 %v557
    %v1718 = vunpack.c.l.b16 %v558
    %v1719 = vunpack.c.h.b16 %v558
    %v1720 = vunpack.c.l.b16 %v559
    %v1721 = vunpack.c.h.b16 %v559
    %v1722 = vunpack.c.l.b16 %v560
    %v1723 = vunpack.c.h.b16 %v560
    %v1724 = vunpack.c.l.b16 %v561
    %v1725 = vunpack.c.h.b16 %v561
    %v1726 = vunpack.c.l.b16 %v562
    %v1727 = vunpack.c.h.b16 %v562
    %v1728 = vunpack.c.l.b16 %v563
    %v1729 = vunpack.c.h.b16 %v563
    %v1730 = vunpack.c.l.b16 %v564
    %v1731 = vunpack.c.h.b16 %v564
    %v1732 = vunpack.c.l.b16 %v565
    %v1733 = vunpack.c.h.b16 %v565
    %v1734 = vunpack.c.l.b16 %v566
    %v1735 = vunpack.c.h.b16 %v566
    %v1736 = vunpack.c.l.b16 %v567
    %v1737 = vunpack.c.h.b16 %v567
    %v1738 = vunpack.c.l.b16 %v568
    %v1739 = vunpack.c.h.b16 %v568
    %v1740 = vunpack.c.l.b16 %v569
    %v1741 = vunpack.c.h.b16 %v569
    %v1742 = vunpack.c.l.b16 %v570
    %v1743 = vunpack.c.h.b16 %v570
    %v1744 = vunpack.c.l.b16 %v571
    %v1745 = vunpack.c.h.b16 %v571
    %v1746 = vunpack.c.l.b16 %v572
    %v1747 = vunpack.c.h.b16 %v572
    %v1748 = vunpack.c.l.b16 %v573
    %v1749 = vunpack.c.h.b16 %v573
    %v1750 = vunpack.c.l.b16 %v574
    %v1751 = vunpack.c.h.b16 %v574
    %v1752 = vunpack.c.l.b16 %v575
    %v1753 = vunpack.c.h.b16 %v575
    %v1754 = vunpack.c.l.b16 %v576
    %v1755 = vunpack.c.h.b16 %v576
    %v1756 = vunpack.c.l.b16 %v577
    %v1757 = vunpack.c.h.b16 %v577
    %v1758 = vunpack.c.l.b16 %v578
    %v1759 = vunpack.c.h.b16 %v578
    %v1760 = vunpack.c.l.b16 %v579
    %v1761 = vunpack.c.h.b16 %v579
    %v1762 = vunpack.c.l.b16 %v580
    %v1763 = vunpack.c.h.b16 %v580
    %v1764 = vunpack.c.l.b16 %v581
    %v1765 = vunpack.c.h.b16 %v581
    %v1766 = vunpack.c.l.b16 %v582
    %v1767 = vunpack.c.h.b16 %v582
    %v1768 = vunpack.c.l.b16 %v583
    %v1769 = vunpack.c.h.b16 %v583
    %v1770 = vunpack.c.l.b16 %v584
    %v1771 = vunpack.c.h.b16 %v584
    %v1772 = vunpack.c.l.b16 %v585
    %v1773 = vunpack.c.h.b16 %v585
    %v1774 = vunpack.c.l.b16 %v586
    %v1775 = vunpack.c.h.b16 %v586
    %v1776 = vunpack.c.l.b16 %v587
    %v1777 = vunpack.c.h.b16 %v587
    %v1778 = vunpack.c.l.b16 %v588
    %v1779 = vunpack.c.h.b16 %v588
    %v1780 = vunpack.c.l.b16 %v589
    %v1781 = vunpack.c.h.b16 %v589
    %v1782 = vunpack.c.l.b16 %v590
    %v1783 = vunpack.c.h.b16 %v590
    %v1784 = vunpack.c.l.b16 %v591
    %v1785 = vunpack.c.h.b16 %v591
    %v1786 = vpack.c.b16 %v1010, %v1002
    %v1787 = vpack.c.b16 %v1011, %v1003
    %v1788 = vpack.c.b16 %v1012, %v1004
    %v1789 = vpack.c.b16 %v1013, %v1005
    %v1790 = vpack.c.b16 %v1014, %v1006
    %v1791 = vpack.c.b16 %v1015, %v1007
    %v1792 = vpack.c.b16 %v1016, %v1008
    %v1793 = vpack.c.b16 %v1017, %v1009
    %v1794 = vpack.c.b16 %v1026, %v1018
    %v1795 = vpack.c.b16 %v1027, %v1019
    %v1796 = vpack.c.b16 %v1028, %v1020
    %v1797 = vpack.c.b16 %v1029, %v1021
    %v1798 = vpack.c.b16 %v1030, %v1022
    %v1799 = vpack.c.b16 %v1031, %v1023
    %v1800 = vpack.c.b16 %v1032, %v1024
    %v1801 = vpack.c.b16 %v1033, %v1025
    %v1802 = vpack.c.b16 %v1042, %v1034
    %v1803 = vpack.c.b16 %v1043, %v1035
    %v1804 = vpack.c.b16 %v1044, %v1036
    %v1805 = vpack.c.b16 %v1045, %v1037
    %v1806 = vpack.c.b16 %v1046, %v1038
    %v1807 = vpack.c.b16 %v1047, %v1039
    %v1808 = vpack.c.b16 %v1048, %v1040
    %v1809 = vpack.c.b16 %v1049, %v1041
    %v1810 = vpack.c.b16 %v1058, %v1050
    %v1811 = vpack.c.b16 %v1059, %v1051
    %v1812 = vpack.c.b16 %v1060, %v1052
    %v1813 = vpack.c.b16 %v1061, %v1053
    %v1814 = vpack.c.b16 %v1062, %v1054
    %v1815 = vpack.c.b16 %v1063, %v1055
    %v1816 = vpack.c.b16 %v1064, %v1056
    %v1817 = vpack.c.b16 %v1065, %v1057
    %v1818 = vpack.c.b16 %v1074, %v1066
    %v1819 = vpack.c.b16 %v1075, %v1067
    %v1820 = vpack.c.b16 %v1076, %v1068
    %v1821 = vpack.c.b16 %v1077, %v1069
    %v1822 = vpack.c.b16 %v1078, %v1070
    %v1823 = vpack.c.b16 %v1079, %v1071
    %v1824 = vpack.c.b16 %v1080, %v1072
    %v1825 = vpack.c.b16 %v1081, %v1073
    %v1826 = vpack.c.b16 %v1090, %v1082
    %v1827 = vpack.c.b16 %v1091, %v1083
    %v1828 = vpack.c.b16 %v1092, %v1084
    %v1829 = vpack.c.b16 %v1093, %v1085
    %v1830 = vpack.c.b16 %v1094, %v1086
    %v1831 = vpack.c.b16 %v1095, %v1087
    %v1832 = vpack.c.b16 %v1096, %v1088
    %v1833 = vpack.c.b16 %v1097, %v1089
    %v1834 = vpack.c.b16 %v1106, %v1098
    %v1835 = vpack.c.b16 %v1107, %v1099
    %v1836 = vpack.c.b16 %v1108, %v1100
    %v1837 = vpack.c.b16 %v1109, %v1101
    %v1838 = vpack.c.b16 %v1110, %v1102
    %v1839 = vpack.c.b16 %v1111, %v1103
    %v1840 = vpack.c.b16 %v1112, %v1104
    %v1841 = vpack.c.b16 %v1113, %v1105
    %v1842 = vpack.c.b16 %v1122, %v1114
    %v1843 = vpack.c.b16 %v1123, %v1115
    %v1844 = vpack.c.b16 %v1124, %v1116
    %v1845 = vpack.c.b16 %v1125, %v1117
    %v1846 = vpack.c.b16 %v1126, %v1118
    %v1847 = vpack.c.b16 %v1127, %v1119
    %v1848 = vpack.c.b16 %v1128, %v1120
    %v1849 = vpack.c.b16 %v1129, %v1121
    %v1850 = vpack.c.b16 %v1138, %v1130
    %v1851 = vpack.c.b16 %v1139, %v1131
    %v1852 = vpack.c.b16 %v1140, %v1132
    %v1853 = vpack.c.b16 %v1141, %v1133
    %v1854 = vpack.c.b16 %v1142, %v1134
    %v1855 = vpack.c.b16 %v1143, %v1135
    %v1856 = vpack.c.b16 %v1144, %v1136
    %v1857 = vpack.c.b16 %v1145, %v1137
    %v1858 = vpack.c.b16 %v1154, %v1146
    %v1859 = vpack.c.b16 %v1155, %v1147
    %v1860 = vpack.c.b16 %v1156, %v1148
    %v1861 = vpack.c.b16 %v1157, %v1149
    %v1862 = vpack.c.b16 %v1158, %v1150
    %v1863 = vpack.c.b16 %v1159, %v1151
    %v1864 = vpack.c.b16 %v1160, %v1152
    %v1865 = vpack.c.b16 %v1161, %v1153
    %v1866 = vpack.c.b16 %v1170, %v1162
    %v1867 = vpack.c.b16 %v1171, %v1163
    %v1868 = vpack.c.b16 %v1172, %v1164
    %v1869 = vpack.c.b16 %v1173, %v1165
    %v1870 = vpack.c.b16 %v1174, %v1166
    %v1871 = vpack.c.b16 %v1175, %v1167
    %v1872 = vpack.c.b16 %v1176, %v1168
    %v1873 = vpack.c.b16 %v1177, %v1169
    %v1874 = vpack.c.b16 %v1186, %v1178
    %v1875 = vpack.c.b16 %v1187, %v1179
    %v1876 = vpack.c.b16 %v1188, %v1180
    %v1877 = vpack.c.b16 %v1189, %v1181
    %v1878 = vpack.c.b16 %v1190, %v1182
    %v1879 = vpack.c.b16 %v1191, %v1183
    %v1880 = vpack.c.b16 %v1192, %v1184
    %v1881 = vpack.c.b16 %v1193, %v1185
    %v1882 = vpack.c.b16 %v1202, %v1194
    %v1883 = vpack.c.b16 %v1203, %v1195
    %v1884 = vpack.c.b16 %v1204, %v1196
    %v1885 = vpack.c.b16 %v1205, %v1197
    %v1886 = vpack.c.b16 %v1206, %v1198
    %v1887 = vpack.c.b16 %v1207, %v1199
    %v1888 = vpack.c.b16 %v1208, %v1200
    %v1889 = vpack.c.b16 %v1209, %v1201
    %v1890 = vpack.c.b16 %v1218, %v1210
    %v1891 = vpack.c.b16 %v1219, %v1211
    %v1892 = vpack.c.b16 %v1220, %v1212
    %v1893 = vpack.c.b16 %v1221, %v1213
    %v1894 = vpack.c.b16 %v1222, %v1214
    %v1895 = vpack.c.b16 %v1223, %v1215
    %v1896 = vpack.c.b16 %v1224, %v1216
    %v1897 = vpack.c.b16 %v1225, %v1217
    %v1898 = vpack.c.b16 %v1234, %v1226
    %v1899 = vpack.c.b16 %v1235, %v1227
    %v1900 = vpack.c.b16 %v1236, %v1228
    %v1901 = vpack.c.b16 %v1237, %v1229
    %v1902 = vpack.c.b16 %v1238, %v1230
    %v1903 = vpack.c.b16 %v1239, %v1231
    %v1904 = vpack.c.b16 %v1240, %v1232
    %v1905 = vpack.c.b16 %v1241, %v1233
    %v1906 = vpack.c.b16 %v1250, %v1242
    %v1907 = vpack.c.b16 %v1251, %v1243
    %v1908 = vpack.c.b16 %v1252, %v1244
    %v1909 = vpack.c.b16 %v1253, %v1245
    %v1910 = vpack.c.b16 %v1254, %v1246
    %v1911 = vpack.c.b16 %v1255, %v1247
    %v1912 = vpack.c.b16 %v1256, %v1248
    %v1913 = vpack.c.b16 %v1257, %v1249
    %v1914 = vpack.c.b16 %v1266, %v1258
    %v1915 = vpack.c.b16 %v1267, %v1259
    %v1916 = vpack.c.b16 %v1268, %v1260
    %v1917 = vpack.c.b16 %v1269, %v1261
    %v1918 = vpack.c.b16 %v1270, %v1262
    %v1919 = vpack.c.b16 %v1271, %v1263
    %v1920 = vpack.c.b16 %v1272, %v1264
    %v1921 = vpack.c.b16 %v1273, %v1265
    %v1922 = vpack.c.b16 %v1282, %v1274
    %v1923 = vpack.c.b16 %v1283, %v1275
    %v1924 = vpack.c.b16 %v1284, %v1276
    %v1925 = vpack.c.b16 %v1285, %v1277
    %v1926 = vpack.c.b16 %v1286, %v1278
    %v1927 = vpack.c.b16 %v1287, %v1279
    %v1928 = vpack.c.b16 %v1288, %v1280
    %v1929 = vpack.c.b16 %v1289, %v1281
    %v1930 = vpack.c.b16 %v1298, %v1290
    %v1931 = vpack.c.b16 %v1299, %v1291
    %v1932 = vpack.c.b16 %v1300, %v1292
    %v1933 = vpack.c.b16 %v1301, %v1293
    %v1934 = vpack.c.b16 %v1302, %v1294
    %v1935 = vpack.c.b16 %v1303, %v1295
    %v1936 = vpack.c.b16 %v1304, %v1296
    %v1937 = vpack.c.b16 %v1305, %v1297
    %v1938 = vpack.c.b16 %v1314, %v1306
    %v1939 = vpack.c.b16 %v1315, %v1307
    %v1940 = vpack.c.b16 %v1316, %v1308
    %v1941 = vpack.c.b16 %v1317, %v1309
    %v1942 = vpack.c.b16 %v1318, %v1310
    %v1943 = vpack.c.b16 %v1319, %v1311
    %v1944 = vpack.c.b16 %v1320, %v1312
    %v1945 = vpack.c.b16 %v1321, %v1313
    %v1946 = vpack.c.b16 %v1330, %v1322
    %v1947 = vpack.c.b16 %v1331, %v1323
    %v1948 = vpack.c.b16 %v1332, %v1324
    %v1949 = vpack.c.b16 %v1333, %v1325
    %v1950 = vpack.c.b16 %v1334, %v1326
    %v1951 = vpack.c.b16 %v1335, %v1327
    %v1952 = vpack.c.b16 %v1336, %v1328
    %v1953 = vpack.c.b16 %v1337, %v1329
    %v1954 = vpack.c.b16 %v1346, %v1338
    %v1955 = vpack.c.b16 %v1347, %v1339
    %v1956 = vpack.c.b16 %v1348, %v1340
    %v1957 = vpack.c.b16 %v1349, %v1341
    %v1958 = vpack.c.b16 %v1350, %v1342
    %v1959 = vpack.c.b16 %v1351, %v1343
    %v1960 = vpack.c.b16 %v1352, %v1344
    %v1961 = vpack.c.b16 %v1353, %v1345
    %v1962 = vpack.c.b16 %v1362, %v1354
    %v1963 = vpack.c.b16 %v1363, %v1355
    %v1964 = vpack.c.b16 %v1364, %v1356
    %v1965 = vpack.c.b16 %v1365, %v1357
    %v1966 = vpack.c.b16 %v1366, %v1358
    %v1967 = vpack.c.b16 %v1367, %v1359
    %v1968 = vpack.c.b16 %v1368, %v1360
    %v1969 = vpack.c.b16 %v1369, %v1361
    %v1970 = vpack.c.b16 %v1378, %v1370
    %v1971 = vpack.c.b16 %v1379, %v1371
    %v1972 = vpack.c.b16 %v1380, %v1372
    %v1973 = vpack.c.b16 %v1381, %v1373
    %v1974 = vpack.c.b16 %v1382, %v1374
    %v1975 = vpack.c.b16 %v1383, %v1375
    %v1976 = vpack.c.b16 %v1384, %v1376
    %v1977 = vpack.c.b16 %v1385, %v1377
    %v1978 = vpack.c.b16 %v1394, %v1386
    %v1979 = vpack.c.b16 %v1395, %v1387
    %v1980 = vpack.c.b16 %v1396, %v1388
    %v1981 = vpack.c.b16 %v1397, %v1389
    %v1982 = vpack.c.b16 %v1398, %v1390
    %v1983 = vpack.c.b16 %v1399, %v1391
    %v1984 = vpack.c.b16 %v1400, %v1392
    %v1985 = vpack.c.b16 %v1401, %v1393
    %v1986 = vpack.c.b16 %v1410, %v1402
    %v1987 = vpack.c.b16 %v1411, %v1403
    %v1988 = vpack.c.b16 %v1412, %v1404
    %v1989 = vpack.c.b16 %v1413, %v1405
    %v1990 = vpack.c.b16 %v1414, %v1406
    %v1991 = vpack.c.b16 %v1415, %v1407
    %v1992 = vpack.c.b16 %v1416, %v1408
    %v1993 = vpack.c.b16 %v1417, %v1409
    %v1994 = vpack.c.b16 %v1426, %v1418
    %v1995 = vpack.c.b16 %v1427, %v1419
    %v1996 = vpack.c.b16 %v1428, %v1420
    %v1997 = vpack.c.b16 %v1429, %v1421
    %v1998 = vpack.c.b16 %v1430, %v1422
    %v1999 = vpack.c.b16 %v1431, %v1423
    %v2000 = vpack.c.b16 %v1432, %v1424
    %v2001 = vpack.c.b16 %v1433, %v1425
    %v2002 = vpack.c.b16 %v1442, %v1434
    %v2003 = vpack.c.b16 %v1443, %v1435
    %v2004 = vpack.c.b16 %v1444, %v1436
    %v2005 = vpack.c.b16 %v1445, %v1437
    %v2006 = vpack.c.b16 %v1446, %v1438
    %v2007 = vpack.c.b16 %v1447, %v1439
    %v2008 = vpack.c.b16 %v1448, %v1440
    %v2009 = vpack.c.b16 %v1449, %v1441
    %v2010 = vpack.c.b16 %v1458, %v1450
    %v2011 = vpack.c.b16 %v1459, %v1451
    %v2012 = vpack.c.b16 %v1460, %v1452
    %v2013 = vpack.c.b16 %v1461, %v1453
    %v2014 = vpack.c.b16 %v1462, %v1454
    %v2015 = vpack.c.b16 %v1463, %v1455
    %v2016 = vpack.c.b16 %v1464, %v1456
    %v2017 = vpack.c.b16 %v1465, %v1457
    %v2018 = vpack.c.b16 %v1474, %v1466
    %v2019 = vpack.c.b16 %v1475, %v1467
    %v2020 = vpack.c.b16 %v1476, %v1468
    %v2021 = vpack.c.b16 %v1477, %v1469
    %v2022 = vpack.c.b16 %v1478, %v1470
    %v2023 = vpack.c.b16 %v1479, %v1471
    %v2024 = vpack.c.b16 %v1480, %v1472
    %v2025 = vpack.c.b16 %v1481, %v1473
    %v2026 = vpack.c.b16 %v1490, %v1482
    %v2027 = vpack.c.b16 %v1491, %v1483
    %v2028 = vpack.c.b16 %v1492, %v1484
    %v2029 = vpack.c.b16 %v1493, %v1485
    %v2030 = vpack.c.b16 %v1494, %v1486
    %v2031 = vpack.c.b16 %v1495, %v1487
    %v2032 = vpack.c.b16 %v1496, %v1488
    %v2033 = vpack.c.b16 %v1497, %v1489
    %v2034 = vpack.c.b16 %v1506, %v1498
    %v2035 = vpack.c.b16 %v1507, %v1499
    %v2036 = vpack.c.b16 %v1508, %v1500
    %v2037 = vpack.c.b16 %v1509, %v1501
    %v2038 = vpack.c.b16 %v1510, %v1502
    %v2039 = vpack.c.b16 %v1511, %v1503
    %v2040 = vpack.c.b16 %v1512, %v1504
    %v2041 = vpack.c.b16 %v1513, %v1505
    %v2042 = vpack.c.b16 %v1522, %v1514
    %v2043 = vpack.c.b16 %v1523, %v1515
    %v2044 = vpack.c.b16 %v1524, %v1516
    %v2045 = vpack.c.b16 %v1525, %v1517
    %v2046 = vpack.c.b16 %v1526, %v1518
    %v2047 = vpack.c.b16 %v1527, %v1519
    %v2048 = vpack.c.b16 %v1528, %v1520
    %v2049 = vpack.c.b16 %v1529, %v1521
    %v2050 = vpack.c.b16 %v1538, %v1530
    %v2051 = vpack.c.b16 %v1539, %v1531
    %v2052 = vpack.c.b16 %v1540, %v1532
    %v2053 = vpack.c.b16 %v1541, %v1533
    %v2054 = vpack.c.b16 %v1542, %v1534
    %v2055 = vpack.c.b16 %v1543, %v1535
    %v2056 = vpack.c.b16 %v1544, %v1536
    %v2057 = vpack.c.b16 %v1545, %v1537
    %v2058 = vpack.c.b16 %v1554, %v1546
    %v2059 = vpack.c.b16 %v1555, %v1547
    %v2060 = vpack.c.b16 %v1556, %v1548
    %v2061 = vpack.c.b16 %v1557, %v1549
    %v2062 = vpack.c.b16 %v1558, %v1550
    %v2063 = vpack.c.b16 %v1559, %v1551
    %v2064 = vpack.c.b16 %v1560, %v1552
    %v2065 = vpack.c.b16 %v1561, %v1553
    %v2066 = vpack.c.b16 %v1570, %v1562
    %v2067 = vpack.c.b16 %v1571, %v1563
    %v2068 = vpack.c.b16 %v1572, %v1564
    %v2069 = vpack.c.b16 %v1573, %v1565
    %v2070 = vpack.c.b16 %v1574, %v1566
    %v2071 = vpack.c.b16 %v1575, %v1567
    %v2072 = vpack.c.b16 %v1576, %v1568
    %v2073 = vpack.c.b16 %v1577, %v1569
    %v2074 = vpack.c.b16 %v1586, %v1578
    %v2075 = vpack.c.b16 %v1587, %v1579
    %v2076 = vpack.c.b16 %v1588, %v1580
    %v2077 = vpack.c.b16 %v1589, %v1581
    %v2078 = vpack.c.b16 %v1590, %v1582
    %v2079 = vpack.c.b16 %v1591, %v1583
    %v2080 = vpack.c.b16 %v1592, %v1584
    %v2081 = vpack.c.b16 %v1593, %v1585
    %v2082 = vpack.c.b16 %v1602, %v1594
    %v2083 = vpack.c.b16 %v1603, %v1595
    %v2084 = vpack.c.b16 %v1604, %v1596
    %v2085 = vpack.c.b16 %v1605, %v1597
    %v2086 = vpack.c.b16 %v1606, %v1598
    %v2087 = vpack.c.b16 %v1607, %v1599
    %v2088 = vpack.c.b16 %v1608, %v1600
    %v2089 = vpack.c.b16 %v1609, %v1601
    %v2090 = vpack.c.b16 %v1618, %v1610
    %v2091 = vpack.c.b16 %v1619, %v1611
    %v2092 = vpack.c.b16 %v1620, %v1612
    %v2093 = vpack.c.b16 %v1621, %v1613
    %v2094 = vpack.c.b16 %v1622, %v1614
    %v2095 = vpack.c.b16 %v1623, %v1615
    %v2096 = vpack.c.b16 %v1624, %v1616
    %v2097 = vpack.c.b16 %v1625, %v1617
    %v2098 = vpack.c.b16 %v1634, %v1626
    %v2099 = vpack.c.b16 %v1635, %v1627
    %v2100 = vpack.c.b16 %v1636, %v1628
    %v2101 = vpack.c.b16 %v1637, %v1629
    %v2102 = vpack.c.b16 %v1638, %v1630
    %v2103 = vpack.c.b16 %v1639, %v1631
    %v2104 = vpack.c.b16 %v1640, %v1632
    %v2105 = vpack.c.b16 %v1641, %v1633
    %v2106 = vpack.c.b16 %v1650, %v1642
    %v2107 = vpack.c.b16 %v1651, %v1643
    %v2108 = vpack.c.b16 %v1652, %v1644
    %v2109 = vpack.c.b16 %v1653, %v1645
    %v2110 = vpack.c.b16 %v1654, %v1646
    %v2111 = vpack.c.b16 %v1655, %v1647
    %v2112 = vpack.c.b16 %v1656, %v1648
    %v2113 = vpack.c.b16 %v1657, %v1649
    %v2114 = vpack.c.b16 %v1666, %v1658
    %v2115 = vpack.c.b16 %v1667, %v1659
    %v2116 = vpack.c.b16 %v1668, %v1660
    %v2117 = vpack.c.b16 %v1669, %v1661
    %v2118 = vpack.c.b16 %v1670, %v1662
    %v2119 = vpack.c.b16 %v1671, %v1663
    %v2120 = vpack.c.b16 %v1672, %v1664
    %v2121 = vpack.c.b16 %v1673, %v1665
    %v2122 = vpack.c.b16 %v1682, %v1674
    %v2123 = vpack.c.b16 %v1683, %v1675
    %v2124 = vpack.c.b16 %v1684, %v1676
    %v2125 = vpack.c.b16 %v1685, %v1677
    %v2126 = vpack.c.b16 %v1686, %v1678
    %v2127 = vpack.c.b16 %v1687, %v1679
    %v2128 = vpack.c.b16 %v1688, %v1680
    %v2129 = vpack.c.b16 %v1689, %v1681
    %v2130 = vpack.c.b16 %v1698, %v1690
    %v2131 = vpack.c.b16 %v1699, %v1691
    %v2132 = vpack.c.b16 %v1700, %v1692
    %v2133 = vpack.c.b16 %v1701, %v1693
    %v2134 = vpack.c.b16 %v1702, %v1694
    %v2135 = vpack.c.b16 %v1703, %v1695
    %v2136 = vpack.c.b16 %v1704, %v1696
    %v2137 = vpack.c.b16 %v1705, %v1697
    %v2138 = vpack.c.b16 %v1714, %v1706
    %v2139 = vpack.c.b16 %v1715, %v1707
    %v2140 = vpack.c.b16 %v1716, %v1708
    %v2141 = vpack.c.b16 %v1717, %v1709
    %v2142 = vpack.c.b16 %v1718, %v1710
    %v2143 = vpack.c.b16 %v1719, %v1711
    %v2144 = vpack.c.b16 %v1720, %v1712
    %v2145 = vpack.c.b16 %v1721, %v1713
    %v2146 = vpack.c.b16 %v1730, %v1722
    %v2147 = vpack.c.b16 %v1731, %v1723
    %v2148 = vpack.c.b16 %v1732, %v1724
    %v2149 = vpack.c.b16 %v1733, %v1725
    %v2150 = vpack.c.b16 %v1734, %v1726
    %v2151 = vpack.c.b16 %v1735, %v1727
    %v2152 = vpack.c.b16 %v1736, %v1728
    %v2153 = vpack.c.b16 %v1737, %v1729
    %v2154 = vpack.c.b16 %v1746, %v1738
    %v2155 = vpack.c.b16 %v1747, %v1739
    %v2156 = vpack.c.b16 %v1748, %v1740
    %v2157 = vpack.c.b16 %v1749, %v1741
    %v2158 = vpack.c.b16 %v1750, %v1742
    %v2159 = vpack.c.b16 %v1751, %v1743
    %v2160 = vpack.c.b16 %v1752, %v1744
    %v2161 = vpack.c.b16 %v1753, %v1745
    %v2162 = vpack.c.b16 %v1762, %v1754
    %v2163 = vpack.c.b16 %v1763, %v1755
    %v2164 = vpack.c.b16 %v1764, %v1756
    %v2165 = vpack.c.b16 %v1765, %v1757
    %v2166 = vpack.c.b16 %v1766, %v1758
    %v2167 = vpack.c.b16 %v1767, %v1759
    %v2168 = vpack.c.b16 %v1768, %v1760
    %v2169 = vpack.c.b16 %v1769, %v1761
    %v2170 = vpack.c.b16 %v1778, %v1770
    %v2171 = vpack.c.b16 %v1779, %v1771
    %v2172 = vpack.c.b16 %v1780, %v1772
    %v2173 = vpack.c.b16 %v1781, %v1773
    %v2174 = vpack.c.b16 %v1782, %v1774
    %v2175 = vpack.c.b16 %v1783, %v1775
    %v2176 = vpack.c.b16 %v1784, %v1776
    %v2177 = vpack.c.b16 %v1785, %v1777
    %vm2570 = vcmask 130048
    %v2572 = vsel %vm2570, %v199, 0
    %2574 = vmatpush.bf16.msra.mxu0 %v1842
    %2575 = vmatpush.bf16.msra.mxu0 %v1834
    %2576 = vmatpush.bf16.msra.mxu0 %v1826
    %2577 = vmatpush.bf16.msra.mxu0 %v1818
    %2578 = vmatpush.bf16.msra.mxu0 %v1810
    %2579 = vmatpush.bf16.msra.mxu0 %v1802
    %2580 = vmatpush.bf16.msra.mxu0 %v1794
    %2581 = vmatpush.bf16.msra.mxu0 %v1786
    %2582 = vmatmul.bf16.gmra.mxu0 %v193
    %v2583 = vpop.f32.mrf.mxu0
    %v2584 = vadd.f32 %v594, %v2583
    %v2585 = vpop.f32.mrf.mxu0
    %2586 = vdwg.mxu0
    %2587 = vmatpush.bf16.msra.mxu0 %v1906
    %2588 = vmatpush.bf16.msra.mxu0 %v1898
    %2589 = vmatpush.bf16.msra.mxu0 %v1890
    %2590 = vmatpush.bf16.msra.mxu0 %v1882
    %2591 = vmatpush.bf16.msra.mxu0 %v1874
    %2592 = vmatpush.bf16.msra.mxu0 %v1866
    %2593 = vmatpush.bf16.msra.mxu0 %v1858
    %2594 = vmatpush.bf16.msra.mxu0 %v1850
    %2595 = vmatmul.bf16.gmra.mxu0 %v194
    %v2596 = vpop.f32.mrf.mxu0
    %v2597 = vadd.f32 %v2584, %v2596
    %v2598 = vpop.f32.mrf.mxu0
    %2599 = vdwg.mxu0
    %2600 = vmatpush.bf16.msra.mxu0 %v1970
    %2601 = vmatpush.bf16.msra.mxu0 %v1962
    %2602 = vmatpush.bf16.msra.mxu0 %v1954
    %2603 = vmatpush.bf16.msra.mxu0 %v1946
    %2604 = vmatpush.bf16.msra.mxu0 %v1938
    %2605 = vmatpush.bf16.msra.mxu0 %v1930
    %2606 = vmatpush.bf16.msra.mxu0 %v1922
    %2607 = vmatpush.bf16.msra.mxu0 %v1914
    %2608 = vmatmul.bf16.gmra.mxu0 %v195
    %v2609 = vpop.f32.mrf.mxu0
    %v2610 = vadd.f32 %v2597, %v2609
    %v2611 = vpop.f32.mrf.mxu0
    %2612 = vdwg.mxu0
    %2613 = vmatpush.bf16.msra.mxu0 %v2034
    %2614 = vmatpush.bf16.msra.mxu0 %v2026
    %2615 = vmatpush.bf16.msra.mxu0 %v2018
    %2616 = vmatpush.bf16.msra.mxu0 %v2010
    %2617 = vmatpush.bf16.msra.mxu0 %v2002
    %2618 = vmatpush.bf16.msra.mxu0 %v1994
    %2619 = vmatpush.bf16.msra.mxu0 %v1986
    %2620 = vmatpush.bf16.msra.mxu0 %v1978
    %2621 = vmatmul.bf16.gmra.mxu0 %v196
    %v2622 = vpop.f32.mrf.mxu0
    %v2623 = vadd.f32 %v2610, %v2622
    %v2624 = vpop.f32.mrf.mxu0
    %2625 = vdwg.mxu0
    %2626 = vmatpush.bf16.msra.mxu0 %v2098
    %2627 = vmatpush.bf16.msra.mxu0 %v2090
    %2628 = vmatpush.bf16.msra.mxu0 %v2082
    %2629 = vmatpush.bf16.msra.mxu0 %v2074
    %2630 = vmatpush.bf16.msra.mxu0 %v2066
    %2631 = vmatpush.bf16.msra.mxu0 %v2058
    %2632 = vmatpush.bf16.msra.mxu0 %v2050
    %2633 = vmatpush.bf16.msra.mxu0 %v2042
    %2634 = vmatmul.bf16.gmra.mxu0 %v197
    %v2635 = vpop.f32.mrf.mxu0
    %v2636 = vadd.f32 %v2623, %v2635
    %v2637 = vpop.f32.mrf.mxu0
    %2638 = vdwg.mxu0
    %2639 = vmatpush.bf16.msra.mxu0 %v2162
    %2640 = vmatpush.bf16.msra.mxu0 %v2154
    %2641 = vmatpush.bf16.msra.mxu0 %v2146
    %2642 = vmatpush.bf16.msra.mxu0 %v2138
    %2643 = vmatpush.bf16.msra.mxu0 %v2130
    %2644 = vmatpush.bf16.msra.mxu0 %v2122
    %2645 = vmatpush.bf16.msra.mxu0 %v2114
    %2646 = vmatpush.bf16.msra.mxu0 %v2106
    %2647 = vmatmul.bf16.gmra.mxu0 %v198
    %v2648 = vpop.f32.mrf.mxu0
    %v2649 = vadd.f32 %v2636, %v2648
    %v2650 = vpop.f32.mrf.mxu0
    %2651 = vdwg.mxu0
    %2652 = vmatpush.bf16.msra.mxu0 0
    %2653 = vmatpush.bf16.msra.mxu0 0
    %2654 = vmatpush.bf16.msra.mxu0 0
    %2655 = vmatpush.bf16.msra.mxu0 0
    %2656 = vmatpush.bf16.msra.mxu0 0
    %2657 = vmatpush.bf16.msra.mxu0 0
    %2658 = vmatpush.bf16.msra.mxu0 0
    %2659 = vmatpush.bf16.msra.mxu0 %v2170
    %2660 = vmatmul.bf16.gmra.mxu0 %v2572
    %v2661 = vpop.f32.mrf.mxu0
    %v2662 = vadd.f32 %v2649, %v2661
    %v2663 = vpop.f32.mrf.mxu0
    %2664 = vdwg.mxu0
    %2665 = vmatpush.bf16.msra.mxu0 %v1843
    %2666 = vmatpush.bf16.msra.mxu0 %v1835
    %2667 = vmatpush.bf16.msra.mxu0 %v1827
    %2668 = vmatpush.bf16.msra.mxu0 %v1819
    %2669 = vmatpush.bf16.msra.mxu0 %v1811
    %2670 = vmatpush.bf16.msra.mxu0 %v1803
    %2671 = vmatpush.bf16.msra.mxu0 %v1795
    %2672 = vmatpush.bf16.msra.mxu0 %v1787
    %2673 = vmatmul.bf16.gmra.mxu0 %v193
    %v2674 = vpop.f32.mrf.mxu0
    %v2675 = vadd.f32 %v595, %v2674
    %v2676 = vpop.f32.mrf.mxu0
    %2677 = vdwg.mxu0
    %2678 = vmatpush.bf16.msra.mxu0 %v1907
    %2679 = vmatpush.bf16.msra.mxu0 %v1899
    %2680 = vmatpush.bf16.msra.mxu0 %v1891
    %2681 = vmatpush.bf16.msra.mxu0 %v1883
    %2682 = vmatpush.bf16.msra.mxu0 %v1875
    %2683 = vmatpush.bf16.msra.mxu0 %v1867
    %2684 = vmatpush.bf16.msra.mxu0 %v1859
    %2685 = vmatpush.bf16.msra.mxu0 %v1851
    %2686 = vmatmul.bf16.gmra.mxu0 %v194
    %v2687 = vpop.f32.mrf.mxu0
    %v2688 = vadd.f32 %v2675, %v2687
    %v2689 = vpop.f32.mrf.mxu0
    %2690 = vdwg.mxu0
    %2691 = vmatpush.bf16.msra.mxu0 %v1971
    %2692 = vmatpush.bf16.msra.mxu0 %v1963
    %2693 = vmatpush.bf16.msra.mxu0 %v1955
    %2694 = vmatpush.bf16.msra.mxu0 %v1947
    %2695 = vmatpush.bf16.msra.mxu0 %v1939
    %2696 = vmatpush.bf16.msra.mxu0 %v1931
    %2697 = vmatpush.bf16.msra.mxu0 %v1923
    %2698 = vmatpush.bf16.msra.mxu0 %v1915
    %2699 = vmatmul.bf16.gmra.mxu0 %v195
    %v2700 = vpop.f32.mrf.mxu0
    %v2701 = vadd.f32 %v2688, %v2700
    %v2702 = vpop.f32.mrf.mxu0
    %2703 = vdwg.mxu0
    %2704 = vmatpush.bf16.msra.mxu0 %v2035
    %2705 = vmatpush.bf16.msra.mxu0 %v2027
    %2706 = vmatpush.bf16.msra.mxu0 %v2019
    %2707 = vmatpush.bf16.msra.mxu0 %v2011
    %2708 = vmatpush.bf16.msra.mxu0 %v2003
    %2709 = vmatpush.bf16.msra.mxu0 %v1995
    %2710 = vmatpush.bf16.msra.mxu0 %v1987
    %2711 = vmatpush.bf16.msra.mxu0 %v1979
    %2712 = vmatmul.bf16.gmra.mxu0 %v196
    %v2713 = vpop.f32.mrf.mxu0
    %v2714 = vadd.f32 %v2701, %v2713
    %v2715 = vpop.f32.mrf.mxu0
    %2716 = vdwg.mxu0
    %2717 = vmatpush.bf16.msra.mxu0 %v2099
    %2718 = vmatpush.bf16.msra.mxu0 %v2091
    %2719 = vmatpush.bf16.msra.mxu0 %v2083
    %2720 = vmatpush.bf16.msra.mxu0 %v2075
    %2721 = vmatpush.bf16.msra.mxu0 %v2067
    %2722 = vmatpush.bf16.msra.mxu0 %v2059
    %2723 = vmatpush.bf16.msra.mxu0 %v2051
    %2724 = vmatpush.bf16.msra.mxu0 %v2043
    %2725 = vmatmul.bf16.gmra.mxu0 %v197
    %v2726 = vpop.f32.mrf.mxu0
    %v2727 = vadd.f32 %v2714, %v2726
    %v2728 = vpop.f32.mrf.mxu0
    %2729 = vdwg.mxu0
    %2730 = vmatpush.bf16.msra.mxu0 %v2163
    %2731 = vmatpush.bf16.msra.mxu0 %v2155
    %2732 = vmatpush.bf16.msra.mxu0 %v2147
    %2733 = vmatpush.bf16.msra.mxu0 %v2139
    %2734 = vmatpush.bf16.msra.mxu0 %v2131
    %2735 = vmatpush.bf16.msra.mxu0 %v2123
    %2736 = vmatpush.bf16.msra.mxu0 %v2115
    %2737 = vmatpush.bf16.msra.mxu0 %v2107
    %2738 = vmatmul.bf16.gmra.mxu0 %v198
    %v2739 = vpop.f32.mrf.mxu0
    %v2740 = vadd.f32 %v2727, %v2739
    %v2741 = vpop.f32.mrf.mxu0
    %2742 = vdwg.mxu0
    %2743 = vmatpush.bf16.msra.mxu0 0
    %2744 = vmatpush.bf16.msra.mxu0 0
    %2745 = vmatpush.bf16.msra.mxu0 0
    %2746 = vmatpush.bf16.msra.mxu0 0
    %2747 = vmatpush.bf16.msra.mxu0 0
    %2748 = vmatpush.bf16.msra.mxu0 0
    %2749 = vmatpush.bf16.msra.mxu0 0
    %2750 = vmatpush.bf16.msra.mxu0 %v2171
    %2751 = vmatmul.bf16.gmra.mxu0 %v2572
    %v2752 = vpop.f32.mrf.mxu0
    %v2753 = vadd.f32 %v2740, %v2752
    %v2754 = vpop.f32.mrf.mxu0
    %2755 = vdwg.mxu0
    %2756 = vmatpush.bf16.msra.mxu0 %v1844
    %2757 = vmatpush.bf16.msra.mxu0 %v1836
    %2758 = vmatpush.bf16.msra.mxu0 %v1828
    %2759 = vmatpush.bf16.msra.mxu0 %v1820
    %2760 = vmatpush.bf16.msra.mxu0 %v1812
    %2761 = vmatpush.bf16.msra.mxu0 %v1804
    %2762 = vmatpush.bf16.msra.mxu0 %v1796
    %2763 = vmatpush.bf16.msra.mxu0 %v1788
    %2764 = vmatmul.bf16.gmra.mxu0 %v193
    %v2765 = vpop.f32.mrf.mxu0
    %v2766 = vadd.f32 %v596, %v2765
    %v2767 = vpop.f32.mrf.mxu0
    %2768 = vdwg.mxu0
    %2769 = vmatpush.bf16.msra.mxu0 %v1908
    %2770 = vmatpush.bf16.msra.mxu0 %v1900
    %2771 = vmatpush.bf16.msra.mxu0 %v1892
    %2772 = vmatpush.bf16.msra.mxu0 %v1884
    %2773 = vmatpush.bf16.msra.mxu0 %v1876
    %2774 = vmatpush.bf16.msra.mxu0 %v1868
    %2775 = vmatpush.bf16.msra.mxu0 %v1860
    %2776 = vmatpush.bf16.msra.mxu0 %v1852
    %2777 = vmatmul.bf16.gmra.mxu0 %v194
    %v2778 = vpop.f32.mrf.mxu0
    %v2779 = vadd.f32 %v2766, %v2778
    %v2780 = vpop.f32.mrf.mxu0
    %2781 = vdwg.mxu0
    %2782 = vmatpush.bf16.msra.mxu0 %v1972
    %2783 = vmatpush.bf16.msra.mxu0 %v1964
    %2784 = vmatpush.bf16.msra.mxu0 %v1956
    %2785 = vmatpush.bf16.msra.mxu0 %v1948
    %2786 = vmatpush.bf16.msra.mxu0 %v1940
    %2787 = vmatpush.bf16.msra.mxu0 %v1932
    %2788 = vmatpush.bf16.msra.mxu0 %v1924
    %2789 = vmatpush.bf16.msra.mxu0 %v1916
    %2790 = vmatmul.bf16.gmra.mxu0 %v195
    %v2791 = vpop.f32.mrf.mxu0
    %v2792 = vadd.f32 %v2779, %v2791
    %v2793 = vpop.f32.mrf.mxu0
    %2794 = vdwg.mxu0
    %2795 = vmatpush.bf16.msra.mxu0 %v2036
    %2796 = vmatpush.bf16.msra.mxu0 %v2028
    %2797 = vmatpush.bf16.msra.mxu0 %v2020
    %2798 = vmatpush.bf16.msra.mxu0 %v2012
    %2799 = vmatpush.bf16.msra.mxu0 %v2004
    %2800 = vmatpush.bf16.msra.mxu0 %v1996
    %2801 = vmatpush.bf16.msra.mxu0 %v1988
    %2802 = vmatpush.bf16.msra.mxu0 %v1980
    %2803 = vmatmul.bf16.gmra.mxu0 %v196
    %v2804 = vpop.f32.mrf.mxu0
    %v2805 = vadd.f32 %v2792, %v2804
    %v2806 = vpop.f32.mrf.mxu0
    %2807 = vdwg.mxu0
    %2808 = vmatpush.bf16.msra.mxu0 %v2100
    %2809 = vmatpush.bf16.msra.mxu0 %v2092
    %2810 = vmatpush.bf16.msra.mxu0 %v2084
    %2811 = vmatpush.bf16.msra.mxu0 %v2076
    %2812 = vmatpush.bf16.msra.mxu0 %v2068
    %2813 = vmatpush.bf16.msra.mxu0 %v2060
    %2814 = vmatpush.bf16.msra.mxu0 %v2052
    %2815 = vmatpush.bf16.msra.mxu0 %v2044
    %2816 = vmatmul.bf16.gmra.mxu0 %v197
    %v2817 = vpop.f32.mrf.mxu0
    %v2818 = vadd.f32 %v2805, %v2817
    %v2819 = vpop.f32.mrf.mxu0
    %2820 = vdwg.mxu0
    %2821 = vmatpush.bf16.msra.mxu0 %v2164
    %2822 = vmatpush.bf16.msra.mxu0 %v2156
    %2823 = vmatpush.bf16.msra.mxu0 %v2148
    %2824 = vmatpush.bf16.msra.mxu0 %v2140
    %2825 = vmatpush.bf16.msra.mxu0 %v2132
    %2826 = vmatpush.bf16.msra.mxu0 %v2124
    %2827 = vmatpush.bf16.msra.mxu0 %v2116
    %2828 = vmatpush.bf16.msra.mxu0 %v2108
    %2829 = vmatmul.bf16.gmra.mxu0 %v198
    %v2830 = vpop.f32.mrf.mxu0
    %v2831 = vadd.f32 %v2818, %v2830
    %v2832 = vpop.f32.mrf.mxu0
    %2833 = vdwg.mxu0
    %2834 = vmatpush.bf16.msra.mxu0 0
    %2835 = vmatpush.bf16.msra.mxu0 0
    %2836 = vmatpush.bf16.msra.mxu0 0
    %2837 = vmatpush.bf16.msra.mxu0 0
    %2838 = vmatpush.bf16.msra.mxu0 0
    %2839 = vmatpush.bf16.msra.mxu0 0
    %2840 = vmatpush.bf16.msra.mxu0 0
    %2841 = vmatpush.bf16.msra.mxu0 %v2172
    %2842 = vmatmul.bf16.gmra.mxu0 %v2572
    %v2843 = vpop.f32.mrf.mxu0
    %v2844 = vadd.f32 %v2831, %v2843
    %v2845 = vpop.f32.mrf.mxu0
    %2846 = vdwg.mxu0
    %2847 = vmatpush.bf16.msra.mxu0 %v1845
    %2848 = vmatpush.bf16.msra.mxu0 %v1837
    %2849 = vmatpush.bf16.msra.mxu0 %v1829
    %2850 = vmatpush.bf16.msra.mxu0 %v1821
    %2851 = vmatpush.bf16.msra.mxu0 %v1813
    %2852 = vmatpush.bf16.msra.mxu0 %v1805
    %2853 = vmatpush.bf16.msra.mxu0 %v1797
    %2854 = vmatpush.bf16.msra.mxu0 %v1789
    %2855 = vmatmul.bf16.gmra.mxu0 %v193
    %v2856 = vpop.f32.mrf.mxu0
    %v2857 = vadd.f32 %v597, %v2856
    %v2858 = vpop.f32.mrf.mxu0
    %2859 = vdwg.mxu0
    %2860 = vmatpush.bf16.msra.mxu0 %v1909
    %2861 = vmatpush.bf16.msra.mxu0 %v1901
    %2862 = vmatpush.bf16.msra.mxu0 %v1893
    %2863 = vmatpush.bf16.msra.mxu0 %v1885
    %2864 = vmatpush.bf16.msra.mxu0 %v1877
    %2865 = vmatpush.bf16.msra.mxu0 %v1869
    %2866 = vmatpush.bf16.msra.mxu0 %v1861
    %2867 = vmatpush.bf16.msra.mxu0 %v1853
    %2868 = vmatmul.bf16.gmra.mxu0 %v194
    %v2869 = vpop.f32.mrf.mxu0
    %v2870 = vadd.f32 %v2857, %v2869
    %v2871 = vpop.f32.mrf.mxu0
    %2872 = vdwg.mxu0
    %2873 = vmatpush.bf16.msra.mxu0 %v1973
    %2874 = vmatpush.bf16.msra.mxu0 %v1965
    %2875 = vmatpush.bf16.msra.mxu0 %v1957
    %2876 = vmatpush.bf16.msra.mxu0 %v1949
    %2877 = vmatpush.bf16.msra.mxu0 %v1941
    %2878 = vmatpush.bf16.msra.mxu0 %v1933
    %2879 = vmatpush.bf16.msra.mxu0 %v1925
    %2880 = vmatpush.bf16.msra.mxu0 %v1917
    %2881 = vmatmul.bf16.gmra.mxu0 %v195
    %v2882 = vpop.f32.mrf.mxu0
    %v2883 = vadd.f32 %v2870, %v2882
    %v2884 = vpop.f32.mrf.mxu0
    %2885 = vdwg.mxu0
    %2886 = vmatpush.bf16.msra.mxu0 %v2037
    %2887 = vmatpush.bf16.msra.mxu0 %v2029
    %2888 = vmatpush.bf16.msra.mxu0 %v2021
    %2889 = vmatpush.bf16.msra.mxu0 %v2013
    %2890 = vmatpush.bf16.msra.mxu0 %v2005
    %2891 = vmatpush.bf16.msra.mxu0 %v1997
    %2892 = vmatpush.bf16.msra.mxu0 %v1989
    %2893 = vmatpush.bf16.msra.mxu0 %v1981
    %2894 = vmatmul.bf16.gmra.mxu0 %v196
    %v2895 = vpop.f32.mrf.mxu0
    %v2896 = vadd.f32 %v2883, %v2895
    %v2897 = vpop.f32.mrf.mxu0
    %2898 = vdwg.mxu0
    %2899 = vmatpush.bf16.msra.mxu0 %v2101
    %2900 = vmatpush.bf16.msra.mxu0 %v2093
    %2901 = vmatpush.bf16.msra.mxu0 %v2085
    %2902 = vmatpush.bf16.msra.mxu0 %v2077
    %2903 = vmatpush.bf16.msra.mxu0 %v2069
    %2904 = vmatpush.bf16.msra.mxu0 %v2061
    %2905 = vmatpush.bf16.msra.mxu0 %v2053
    %2906 = vmatpush.bf16.msra.mxu0 %v2045
    %2907 = vmatmul.bf16.gmra.mxu0 %v197
    %v2908 = vpop.f32.mrf.mxu0
    %v2909 = vadd.f32 %v2896, %v2908
    %v2910 = vpop.f32.mrf.mxu0
    %2911 = vdwg.mxu0
    %2912 = vmatpush.bf16.msra.mxu0 %v2165
    %2913 = vmatpush.bf16.msra.mxu0 %v2157
    %2914 = vmatpush.bf16.msra.mxu0 %v2149
    %2915 = vmatpush.bf16.msra.mxu0 %v2141
    %2916 = vmatpush.bf16.msra.mxu0 %v2133
    %2917 = vmatpush.bf16.msra.mxu0 %v2125
    %2918 = vmatpush.bf16.msra.mxu0 %v2117
    %2919 = vmatpush.bf16.msra.mxu0 %v2109
    %2920 = vmatmul.bf16.gmra.mxu0 %v198
    %v2921 = vpop.f32.mrf.mxu0
    %v2922 = vadd.f32 %v2909, %v2921
    %v2923 = vpop.f32.mrf.mxu0
    %2924 = vdwg.mxu0
    %2925 = vmatpush.bf16.msra.mxu0 0
    %2926 = vmatpush.bf16.msra.mxu0 0
    %2927 = vmatpush.bf16.msra.mxu0 0
    %2928 = vmatpush.bf16.msra.mxu0 0
    %2929 = vmatpush.bf16.msra.mxu0 0
    %2930 = vmatpush.bf16.msra.mxu0 0
    %2931 = vmatpush.bf16.msra.mxu0 0
    %2932 = vmatpush.bf16.msra.mxu0 %v2173
    %2933 = vmatmul.bf16.gmra.mxu0 %v2572
    %v2934 = vpop.f32.mrf.mxu0
    %v2935 = vadd.f32 %v2922, %v2934
    %v2936 = vpop.f32.mrf.mxu0
    %2937 = vdwg.mxu0
    %2938 = vmatpush.bf16.msra.mxu0 %v1846
    %2939 = vmatpush.bf16.msra.mxu0 %v1838
    %2940 = vmatpush.bf16.msra.mxu0 %v1830
    %2941 = vmatpush.bf16.msra.mxu0 %v1822
    %2942 = vmatpush.bf16.msra.mxu0 %v1814
    %2943 = vmatpush.bf16.msra.mxu0 %v1806
    %2944 = vmatpush.bf16.msra.mxu0 %v1798
    %2945 = vmatpush.bf16.msra.mxu0 %v1790
    %2946 = vmatmul.bf16.gmra.mxu0 %v193
    %v2947 = vpop.f32.mrf.mxu0
    %v2948 = vadd.f32 %v598, %v2947
    %v2949 = vpop.f32.mrf.mxu0
    %2950 = vdwg.mxu0
    %2951 = vmatpush.bf16.msra.mxu0 %v1910
    %2952 = vmatpush.bf16.msra.mxu0 %v1902
    %2953 = vmatpush.bf16.msra.mxu0 %v1894
    %2954 = vmatpush.bf16.msra.mxu0 %v1886
    %2955 = vmatpush.bf16.msra.mxu0 %v1878
    %2956 = vmatpush.bf16.msra.mxu0 %v1870
    %2957 = vmatpush.bf16.msra.mxu0 %v1862
    %2958 = vmatpush.bf16.msra.mxu0 %v1854
    %2959 = vmatmul.bf16.gmra.mxu0 %v194
    %v2960 = vpop.f32.mrf.mxu0
    %v2961 = vadd.f32 %v2948, %v2960
    %v2962 = vpop.f32.mrf.mxu0
    %2963 = vdwg.mxu0
    %2964 = vmatpush.bf16.msra.mxu0 %v1974
    %2965 = vmatpush.bf16.msra.mxu0 %v1966
    %2966 = vmatpush.bf16.msra.mxu0 %v1958
    %2967 = vmatpush.bf16.msra.mxu0 %v1950
    %2968 = vmatpush.bf16.msra.mxu0 %v1942
    %2969 = vmatpush.bf16.msra.mxu0 %v1934
    %2970 = vmatpush.bf16.msra.mxu0 %v1926
    %2971 = vmatpush.bf16.msra.mxu0 %v1918
    %2972 = vmatmul.bf16.gmra.mxu0 %v195
    %v2973 = vpop.f32.mrf.mxu0
    %v2974 = vadd.f32 %v2961, %v2973
    %v2975 = vpop.f32.mrf.mxu0
    %2976 = vdwg.mxu0
    %2977 = vmatpush.bf16.msra.mxu0 %v2038
    %2978 = vmatpush.bf16.msra.mxu0 %v2030
    %2979 = vmatpush.bf16.msra.mxu0 %v2022
    %2980 = vmatpush.bf16.msra.mxu0 %v2014
    %2981 = vmatpush.bf16.msra.mxu0 %v2006
    %2982 = vmatpush.bf16.msra.mxu0 %v1998
    %2983 = vmatpush.bf16.msra.mxu0 %v1990
    %2984 = vmatpush.bf16.msra.mxu0 %v1982
    %2985 = vmatmul.bf16.gmra.mxu0 %v196
    %v2986 = vpop.f32.mrf.mxu0
    %v2987 = vadd.f32 %v2974, %v2986
    %v2988 = vpop.f32.mrf.mxu0
    %2989 = vdwg.mxu0
    %2990 = vmatpush.bf16.msra.mxu0 %v2102
    %2991 = vmatpush.bf16.msra.mxu0 %v2094
    %2992 = vmatpush.bf16.msra.mxu0 %v2086
    %2993 = vmatpush.bf16.msra.mxu0 %v2078
    %2994 = vmatpush.bf16.msra.mxu0 %v2070
    %2995 = vmatpush.bf16.msra.mxu0 %v2062
    %2996 = vmatpush.bf16.msra.mxu0 %v2054
    %2997 = vmatpush.bf16.msra.mxu0 %v2046
    %2998 = vmatmul.bf16.gmra.mxu0 %v197
    %v2999 = vpop.f32.mrf.mxu0
    %v3000 = vadd.f32 %v2987, %v2999
    %v3001 = vpop.f32.mrf.mxu0
    %3002 = vdwg.mxu0
    %3003 = vmatpush.bf16.msra.mxu0 %v2166
    %3004 = vmatpush.bf16.msra.mxu0 %v2158
    %3005 = vmatpush.bf16.msra.mxu0 %v2150
    %3006 = vmatpush.bf16.msra.mxu0 %v2142
    %3007 = vmatpush.bf16.msra.mxu0 %v2134
    %3008 = vmatpush.bf16.msra.mxu0 %v2126
    %3009 = vmatpush.bf16.msra.mxu0 %v2118
    %3010 = vmatpush.bf16.msra.mxu0 %v2110
    %3011 = vmatmul.bf16.gmra.mxu0 %v198
    %v3012 = vpop.f32.mrf.mxu0
    %v3013 = vadd.f32 %v3000, %v3012
    %v3014 = vpop.f32.mrf.mxu0
    %3015 = vdwg.mxu0
    %3016 = vmatpush.bf16.msra.mxu0 0
    %3017 = vmatpush.bf16.msra.mxu0 0
    %3018 = vmatpush.bf16.msra.mxu0 0
    %3019 = vmatpush.bf16.msra.mxu0 0
    %3020 = vmatpush.bf16.msra.mxu0 0
    %3021 = vmatpush.bf16.msra.mxu0 0
    %3022 = vmatpush.bf16.msra.mxu0 0
    %3023 = vmatpush.bf16.msra.mxu0 %v2174
    %3024 = vmatmul.bf16.gmra.mxu0 %v2572
    %v3025 = vpop.f32.mrf.mxu0
    %v3026 = vadd.f32 %v3013, %v3025
    %v3027 = vpop.f32.mrf.mxu0
    %3028 = vdwg.mxu0
    %3029 = vmatpush.bf16.msra.mxu0 %v1847
    %3030 = vmatpush.bf16.msra.mxu0 %v1839
    %3031 = vmatpush.bf16.msra.mxu0 %v1831
    %3032 = vmatpush.bf16.msra.mxu0 %v1823
    %3033 = vmatpush.bf16.msra.mxu0 %v1815
    %3034 = vmatpush.bf16.msra.mxu0 %v1807
    %3035 = vmatpush.bf16.msra.mxu0 %v1799
    %3036 = vmatpush.bf16.msra.mxu0 %v1791
    %3037 = vmatmul.bf16.gmra.mxu0 %v193
    %v3038 = vpop.f32.mrf.mxu0
    %v3039 = vadd.f32 %v599, %v3038
    %v3040 = vpop.f32.mrf.mxu0
    %3041 = vdwg.mxu0
    %3042 = vmatpush.bf16.msra.mxu0 %v1911
    %3043 = vmatpush.bf16.msra.mxu0 %v1903
    %3044 = vmatpush.bf16.msra.mxu0 %v1895
    %3045 = vmatpush.bf16.msra.mxu0 %v1887
    %3046 = vmatpush.bf16.msra.mxu0 %v1879
    %3047 = vmatpush.bf16.msra.mxu0 %v1871
    %3048 = vmatpush.bf16.msra.mxu0 %v1863
    %3049 = vmatpush.bf16.msra.mxu0 %v1855
    %3050 = vmatmul.bf16.gmra.mxu0 %v194
    %v3051 = vpop.f32.mrf.mxu0
    %v3052 = vadd.f32 %v3039, %v3051
    %v3053 = vpop.f32.mrf.mxu0
    %3054 = vdwg.mxu0
    %3055 = vmatpush.bf16.msra.mxu0 %v1975
    %3056 = vmatpush.bf16.msra.mxu0 %v1967
    %3057 = vmatpush.bf16.msra.mxu0 %v1959
    %3058 = vmatpush.bf16.msra.mxu0 %v1951
    %3059 = vmatpush.bf16.msra.mxu0 %v1943
    %3060 = vmatpush.bf16.msra.mxu0 %v1935
    %3061 = vmatpush.bf16.msra.mxu0 %v1927
    %3062 = vmatpush.bf16.msra.mxu0 %v1919
    %3063 = vmatmul.bf16.gmra.mxu0 %v195
    %v3064 = vpop.f32.mrf.mxu0
    %v3065 = vadd.f32 %v3052, %v3064
    %v3066 = vpop.f32.mrf.mxu0
    %3067 = vdwg.mxu0
    %3068 = vmatpush.bf16.msra.mxu0 %v2039
    %3069 = vmatpush.bf16.msra.mxu0 %v2031
    %3070 = vmatpush.bf16.msra.mxu0 %v2023
    %3071 = vmatpush.bf16.msra.mxu0 %v2015
    %3072 = vmatpush.bf16.msra.mxu0 %v2007
    %3073 = vmatpush.bf16.msra.mxu0 %v1999
    %3074 = vmatpush.bf16.msra.mxu0 %v1991
    %3075 = vmatpush.bf16.msra.mxu0 %v1983
    %3076 = vmatmul.bf16.gmra.mxu0 %v196
    %v3077 = vpop.f32.mrf.mxu0
    %v3078 = vadd.f32 %v3065, %v3077
    %v3079 = vpop.f32.mrf.mxu0
    %3080 = vdwg.mxu0
    %3081 = vmatpush.bf16.msra.mxu0 %v2103
    %3082 = vmatpush.bf16.msra.mxu0 %v2095
    %3083 = vmatpush.bf16.msra.mxu0 %v2087
    %3084 = vmatpush.bf16.msra.mxu0 %v2079
    %3085 = vmatpush.bf16.msra.mxu0 %v2071
    %3086 = vmatpush.bf16.msra.mxu0 %v2063
    %3087 = vmatpush.bf16.msra.mxu0 %v2055
    %3088 = vmatpush.bf16.msra.mxu0 %v2047
    %3089 = vmatmul.bf16.gmra.mxu0 %v197
    %v3090 = vpop.f32.mrf.mxu0
    %v3091 = vadd.f32 %v3078, %v3090
    %v3092 = vpop.f32.mrf.mxu0
    %3093 = vdwg.mxu0
    %3094 = vmatpush.bf16.msra.mxu0 %v2167
    %3095 = vmatpush.bf16.msra.mxu0 %v2159
    %3096 = vmatpush.bf16.msra.mxu0 %v2151
    %3097 = vmatpush.bf16.msra.mxu0 %v2143
    %3098 = vmatpush.bf16.msra.mxu0 %v2135
    %3099 = vmatpush.bf16.msra.mxu0 %v2127
    %3100 = vmatpush.bf16.msra.mxu0 %v2119
    %3101 = vmatpush.bf16.msra.mxu0 %v2111
    %3102 = vmatmul.bf16.gmra.mxu0 %v198
    %v3103 = vpop.f32.mrf.mxu0
    %v3104 = vadd.f32 %v3091, %v3103
    %v3105 = vpop.f32.mrf.mxu0
    %3106 = vdwg.mxu0
    %3107 = vmatpush.bf16.msra.mxu0 0
    %3108 = vmatpush.bf16.msra.mxu0 0
    %3109 = vmatpush.bf16.msra.mxu0 0
    %3110 = vmatpush.bf16.msra.mxu0 0
    %3111 = vmatpush.bf16.msra.mxu0 0
    %3112 = vmatpush.bf16.msra.mxu0 0
    %3113 = vmatpush.bf16.msra.mxu0 0
    %3114 = vmatpush.bf16.msra.mxu0 %v2175
    %3115 = vmatmul.bf16.gmra.mxu0 %v2572
    %v3116 = vpop.f32.mrf.mxu0
    %v3117 = vadd.f32 %v3104, %v3116
    %v3118 = vpop.f32.mrf.mxu0
    %3119 = vdwg.mxu0
    %3120 = vmatpush.bf16.msra.mxu0 %v1848
    %3121 = vmatpush.bf16.msra.mxu0 %v1840
    %3122 = vmatpush.bf16.msra.mxu0 %v1832
    %3123 = vmatpush.bf16.msra.mxu0 %v1824
    %3124 = vmatpush.bf16.msra.mxu0 %v1816
    %3125 = vmatpush.bf16.msra.mxu0 %v1808
    %3126 = vmatpush.bf16.msra.mxu0 %v1800
    %3127 = vmatpush.bf16.msra.mxu0 %v1792
    %3128 = vmatmul.bf16.gmra.mxu0 %v193
    %v3129 = vpop.f32.mrf.mxu0
    %v3130 = vadd.f32 %v600, %v3129
    %v3131 = vpop.f32.mrf.mxu0
    %3132 = vdwg.mxu0
    %3133 = vmatpush.bf16.msra.mxu0 %v1912
    %3134 = vmatpush.bf16.msra.mxu0 %v1904
    %3135 = vmatpush.bf16.msra.mxu0 %v1896
    %3136 = vmatpush.bf16.msra.mxu0 %v1888
    %3137 = vmatpush.bf16.msra.mxu0 %v1880
    %3138 = vmatpush.bf16.msra.mxu0 %v1872
    %3139 = vmatpush.bf16.msra.mxu0 %v1864
    %3140 = vmatpush.bf16.msra.mxu0 %v1856
    %3141 = vmatmul.bf16.gmra.mxu0 %v194
    %v3142 = vpop.f32.mrf.mxu0
    %v3143 = vadd.f32 %v3130, %v3142
    %v3144 = vpop.f32.mrf.mxu0
    %3145 = vdwg.mxu0
    %3146 = vmatpush.bf16.msra.mxu0 %v1976
    %3147 = vmatpush.bf16.msra.mxu0 %v1968
    %3148 = vmatpush.bf16.msra.mxu0 %v1960
    %3149 = vmatpush.bf16.msra.mxu0 %v1952
    %3150 = vmatpush.bf16.msra.mxu0 %v1944
    %3151 = vmatpush.bf16.msra.mxu0 %v1936
    %3152 = vmatpush.bf16.msra.mxu0 %v1928
    %3153 = vmatpush.bf16.msra.mxu0 %v1920
    %3154 = vmatmul.bf16.gmra.mxu0 %v195
    %v3155 = vpop.f32.mrf.mxu0
    %v3156 = vadd.f32 %v3143, %v3155
    %v3157 = vpop.f32.mrf.mxu0
    %3158 = vdwg.mxu0
    %3159 = vmatpush.bf16.msra.mxu0 %v2040
    %3160 = vmatpush.bf16.msra.mxu0 %v2032
    %3161 = vmatpush.bf16.msra.mxu0 %v2024
    %3162 = vmatpush.bf16.msra.mxu0 %v2016
    %3163 = vmatpush.bf16.msra.mxu0 %v2008
    %3164 = vmatpush.bf16.msra.mxu0 %v2000
    %3165 = vmatpush.bf16.msra.mxu0 %v1992
    %3166 = vmatpush.bf16.msra.mxu0 %v1984
    %3167 = vmatmul.bf16.gmra.mxu0 %v196
    %v3168 = vpop.f32.mrf.mxu0
    %v3169 = vadd.f32 %v3156, %v3168
    %v3170 = vpop.f32.mrf.mxu0
    %3171 = vdwg.mxu0
    %3172 = vmatpush.bf16.msra.mxu0 %v2104
    %3173 = vmatpush.bf16.msra.mxu0 %v2096
    %3174 = vmatpush.bf16.msra.mxu0 %v2088
    %3175 = vmatpush.bf16.msra.mxu0 %v2080
    %3176 = vmatpush.bf16.msra.mxu0 %v2072
    %3177 = vmatpush.bf16.msra.mxu0 %v2064
    %3178 = vmatpush.bf16.msra.mxu0 %v2056
    %3179 = vmatpush.bf16.msra.mxu0 %v2048
    %3180 = vmatmul.bf16.gmra.mxu0 %v197
    %v3181 = vpop.f32.mrf.mxu0
    %v3182 = vadd.f32 %v3169, %v3181
    %v3183 = vpop.f32.mrf.mxu0
    %3184 = vdwg.mxu0
    %3185 = vmatpush.bf16.msra.mxu0 %v2168
    %3186 = vmatpush.bf16.msra.mxu0 %v2160
    %3187 = vmatpush.bf16.msra.mxu0 %v2152
    %3188 = vmatpush.bf16.msra.mxu0 %v2144
    %3189 = vmatpush.bf16.msra.mxu0 %v2136
    %3190 = vmatpush.bf16.msra.mxu0 %v2128
    %3191 = vmatpush.bf16.msra.mxu0 %v2120
    %3192 = vmatpush.bf16.msra.mxu0 %v2112
    %3193 = vmatmul.bf16.gmra.mxu0 %v198
    %v3194 = vpop.f32.mrf.mxu0
    %v3195 = vadd.f32 %v3182, %v3194
    %v3196 = vpop.f32.mrf.mxu0
    %3197 = vdwg.mxu0
    %3198 = vmatpush.bf16.msra.mxu0 0
    %3199 = vmatpush.bf16.msra.mxu0 0
    %3200 = vmatpush.bf16.msra.mxu0 0
    %3201 = vmatpush.bf16.msra.mxu0 0
    %3202 = vmatpush.bf16.msra.mxu0 0
    %3203 = vmatpush.bf16.msra.mxu0 0
    %3204 = vmatpush.bf16.msra.mxu0 0
    %3205 = vmatpush.bf16.msra.mxu0 %v2176
    %3206 = vmatmul.bf16.gmra.mxu0 %v2572
    %v3207 = vpop.f32.mrf.mxu0
    %v3208 = vadd.f32 %v3195, %v3207
    %v3209 = vpop.f32.mrf.mxu0
    %3210 = vdwg.mxu0
    %3211 = vmatpush.bf16.msra.mxu0 %v1849
    %3212 = vmatpush.bf16.msra.mxu0 %v1841
    %3213 = vmatpush.bf16.msra.mxu0 %v1833
    %3214 = vmatpush.bf16.msra.mxu0 %v1825
    %3215 = vmatpush.bf16.msra.mxu0 %v1817
    %3216 = vmatpush.bf16.msra.mxu0 %v1809
    %3217 = vmatpush.bf16.msra.mxu0 %v1801
    %3218 = vmatpush.bf16.msra.mxu0 %v1793
    %3219 = vmatmul.bf16.gmra.mxu0 %v193
    %v3220 = vpop.f32.mrf.mxu0
    %v3221 = vadd.f32 %v601, %v3220
    %v3222 = vpop.f32.mrf.mxu0
    %3223 = vdwg.mxu0
    %3224 = vmatpush.bf16.msra.mxu0 %v1913
    %3225 = vmatpush.bf16.msra.mxu0 %v1905
    %3226 = vmatpush.bf16.msra.mxu0 %v1897
    %3227 = vmatpush.bf16.msra.mxu0 %v1889
    %3228 = vmatpush.bf16.msra.mxu0 %v1881
    %3229 = vmatpush.bf16.msra.mxu0 %v1873
    %3230 = vmatpush.bf16.msra.mxu0 %v1865
    %3231 = vmatpush.bf16.msra.mxu0 %v1857
    %3232 = vmatmul.bf16.gmra.mxu0 %v194
    %v3233 = vpop.f32.mrf.mxu0
    %v3234 = vadd.f32 %v3221, %v3233
    %v3235 = vpop.f32.mrf.mxu0
    %3236 = vdwg.mxu0
    %3237 = vmatpush.bf16.msra.mxu0 %v1977
    %3238 = vmatpush.bf16.msra.mxu0 %v1969
    %3239 = vmatpush.bf16.msra.mxu0 %v1961
    %3240 = vmatpush.bf16.msra.mxu0 %v1953
    %3241 = vmatpush.bf16.msra.mxu0 %v1945
    %3242 = vmatpush.bf16.msra.mxu0 %v1937
    %3243 = vmatpush.bf16.msra.mxu0 %v1929
    %3244 = vmatpush.bf16.msra.mxu0 %v1921
    %3245 = vmatmul.bf16.gmra.mxu0 %v195
    %v3246 = vpop.f32.mrf.mxu0
    %v3247 = vadd.f32 %v3234, %v3246
    %v3248 = vpop.f32.mrf.mxu0
    %3249 = vdwg.mxu0
    %3250 = vmatpush.bf16.msra.mxu0 %v2041
    %3251 = vmatpush.bf16.msra.mxu0 %v2033
    %3252 = vmatpush.bf16.msra.mxu0 %v2025
    %3253 = vmatpush.bf16.msra.mxu0 %v2017
    %3254 = vmatpush.bf16.msra.mxu0 %v2009
    %3255 = vmatpush.bf16.msra.mxu0 %v2001
    %3256 = vmatpush.bf16.msra.mxu0 %v1993
    %3257 = vmatpush.bf16.msra.mxu0 %v1985
    %3258 = vmatmul.bf16.gmra.mxu0 %v196
    %v3259 = vpop.f32.mrf.mxu0
    %v3260 = vadd.f32 %v3247, %v3259
    %v3261 = vpop.f32.mrf.mxu0
    %3262 = vdwg.mxu0
    %3263 = vmatpush.bf16.msra.mxu0 %v2105
    %3264 = vmatpush.bf16.msra.mxu0 %v2097
    %3265 = vmatpush.bf16.msra.mxu0 %v2089
    %3266 = vmatpush.bf16.msra.mxu0 %v2081
    %3267 = vmatpush.bf16.msra.mxu0 %v2073
    %3268 = vmatpush.bf16.msra.mxu0 %v2065
    %3269 = vmatpush.bf16.msra.mxu0 %v2057
    %3270 = vmatpush.bf16.msra.mxu0 %v2049
    %3271 = vmatmul.bf16.gmra.mxu0 %v197
    %v3272 = vpop.f32.mrf.mxu0
    %v3273 = vadd.f32 %v3260, %v3272
    %v3274 = vpop.f32.mrf.mxu0
    %3275 = vdwg.mxu0
    %3276 = vmatpush.bf16.msra.mxu0 %v2169
    %3277 = vmatpush.bf16.msra.mxu0 %v2161
    %3278 = vmatpush.bf16.msra.mxu0 %v2153
    %3279 = vmatpush.bf16.msra.mxu0 %v2145
    %3280 = vmatpush.bf16.msra.mxu0 %v2137
    %3281 = vmatpush.bf16.msra.mxu0 %v2129
    %3282 = vmatpush.bf16.msra.mxu0 %v2121
    %3283 = vmatpush.bf16.msra.mxu0 %v2113
    %3284 = vmatmul.bf16.gmra.mxu0 %v198
    %v3285 = vpop.f32.mrf.mxu0
    %v3286 = vadd.f32 %v3273, %v3285
    %v3287 = vpop.f32.mrf.mxu0
    %3288 = vdwg.mxu0
    %3289 = vmatpush.bf16.msra.mxu0 0
    %3290 = vmatpush.bf16.msra.mxu0 0
    %3291 = vmatpush.bf16.msra.mxu0 0
    %3292 = vmatpush.bf16.msra.mxu0 0
    %3293 = vmatpush.bf16.msra.mxu0 0
    %3294 = vmatpush.bf16.msra.mxu0 0
    %3295 = vmatpush.bf16.msra.mxu0 0
    %3296 = vmatpush.bf16.msra.mxu0 %v2177
    %3297 = vmatmul.bf16.gmra.mxu0 %v2572
    %v3298 = vpop.f32.mrf.mxu0
    %v3299 = vadd.f32 %v3286, %v3298
    %v3300 = vpop.f32.mrf.mxu0
    %3301 = vdwg.mxu0
    %v3302 = vmax.f32 %v2662, 0.0
    %v3303 = vmax.f32 %v2753, 0.0
    %v3304 = vmax.f32 %v2844, 0.0
    %v3305 = vmax.f32 %v2935, 0.0
    %v3306 = vmax.f32 %v3026, 0.0
    %v3307 = vmax.f32 %v3117, 0.0
    %v3308 = vmax.f32 %v3208, 0.0
    %v3309 = vmax.f32 %v3299, 0.0
    %v3310 = vpack.c.bf16 %v3302, %v3302
    %v3311 = vpack.c.bf16 %v3303, %v3303
    %v3312 = vpack.c.bf16 %v3304, %v3304
    %v3313 = vpack.c.bf16 %v3305, %v3305
    %v3314 = vpack.c.bf16 %v3306, %v3306
    %v3315 = vpack.c.bf16 %v3307, %v3307
    %v3316 = vpack.c.bf16 %v3308, %v3308
    %v3317 = vpack.c.bf16 %v3309, %v3309
    %v3318 = vld [vmem:[#allocation7] sm:$0xff]
    %v3319 = vld [vmem:[#allocation7 + $0x8] sm:$0xff]
    %v3320 = vld [vmem:[#allocation7 + $0x10] sm:$0xff]
    %v3321 = vld [vmem:[#allocation7 + $0x18] sm:$0xff]
    %v3322 = vld [vmem:[#allocation7 + $0x20] sm:$0xff]
    %v3323 = vld [vmem:[#allocation7 + $0x28] sm:$0xff]
    %v3324 = vld [vmem:[#allocation7 + $0x30] sm:$0xff]
    %v3325 = vld [vmem:[#allocation7 + $0x38] sm:$0xff]
    %v3326 = vld [vmem:[#allocation7 + $0x40] sm:$0xff]
    %v3327 = vld [vmem:[#allocation7 + $0x48] sm:$0xff]
    %v3328 = vld [vmem:[#allocation7 + $0x50] sm:$0xff]
    %v3329 = vld [vmem:[#allocation7 + $0x58] sm:$0xff]
    %v3330 = vld [vmem:[#allocation7 + $0x60] sm:$0xff]
    %v3331 = vld [vmem:[#allocation7 + $0x68] sm:$0xff]
    %v3332 = vld [vmem:[#allocation7 + $0x70] sm:$0xff]
    %v3333 = vld [vmem:[#allocation7 + $0x78] sm:$0xff]
    %v3334 = vld [vmem:[#allocation7 + $0x80] sm:$0xff]
    %v3335 = vld [vmem:[#allocation7 + $0x88] sm:$0xff]
    %v3336 = vld [vmem:[#allocation7 + $0x90] sm:$0xff]
    %v3337 = vld [vmem:[#allocation7 + $0x98] sm:$0xff]
    %v3338 = vld [vmem:[#allocation7 + $0xa0] sm:$0xff]
    %v3339 = vld [vmem:[#allocation7 + $0xa8] sm:$0xff]
    %v3340 = vld [vmem:[#allocation7 + $0xb0] sm:$0xff]
    %v3341 = vld [vmem:[#allocation7 + $0xb8] sm:$0xff]
    %v3342 = vld [vmem:[#allocation7 + $0xc0] sm:$0xff]
    %v3343 = vld [vmem:[#allocation7 + $0xc8] sm:$0xff]
    %v3344 = vld [vmem:[#allocation7 + $0xd0] sm:$0xff]
    %v3345 = vld [vmem:[#allocation7 + $0xd8] sm:$0xff]
    %v3346 = vld [vmem:[#allocation7 + $0xe0] sm:$0xff]
    %v3347 = vld [vmem:[#allocation7 + $0xe8] sm:$0xff]
    %v3348 = vld [vmem:[#allocation7 + $0xf0] sm:$0xff]
    %v3349 = vld [vmem:[#allocation7 + $0xf8] sm:$0xff]
    %v3350 = vld [vmem:[#allocation7 + $0x100] sm:$0xff]
    %v3351 = vld [vmem:[#allocation7 + $0x108] sm:$0xff]
    %v3352 = vld [vmem:[#allocation7 + $0x110] sm:$0xff]
    %v3353 = vld [vmem:[#allocation7 + $0x118] sm:$0xff]
    %v3354 = vld [vmem:[#allocation7 + $0x120] sm:$0xff]
    %v3355 = vld [vmem:[#allocation7 + $0x128] sm:$0xff]
    %v3356 = vld [vmem:[#allocation7 + $0x130] sm:$0xff]
    %v3357 = vld [vmem:[#allocation7 + $0x138] sm:$0xff]
    %v3358 = vld [vmem:[#allocation7 + $0x140] sm:$0xff]
    %v3359 = vld [vmem:[#allocation7 + $0x148] sm:$0xff]
    %v3360 = vld [vmem:[#allocation7 + $0x150] sm:$0xff]
    %v3361 = vld [vmem:[#allocation7 + $0x158] sm:$0xff]
    %v3362 = vld [vmem:[#allocation7 + $0x160] sm:$0xff]
    %v3363 = vld [vmem:[#allocation7 + $0x168] sm:$0xff]
    %v3364 = vld [vmem:[#allocation7 + $0x170] sm:$0xff]
    %v3365 = vld [vmem:[#allocation7 + $0x178] sm:$0xff]
    %v3366 = vld [vmem:[#allocation7 + $0x180] sm:$0xff]
    %v3367 = vld [vmem:[#allocation7 + $0x188] sm:$0xff]
    %v3368 = vld [vmem:[#allocation7 + $0x190] sm:$0xff]
    %v3369 = vld [vmem:[#allocation7 + $0x198] sm:$0xff]
    %v3370 = vld [vmem:[#allocation7 + $0x1a0] sm:$0xff]
    %v3371 = vld [vmem:[#allocation7 + $0x1a8] sm:$0xff]
    %v3372 = vld [vmem:[#allocation7 + $0x1b0] sm:$0xff]
    %v3373 = vld [vmem:[#allocation7 + $0x1b8] sm:$0xff]
    %v3374 = vld [vmem:[#allocation7 + $0x1c0] sm:$0xff]
    %v3375 = vld [vmem:[#allocation7 + $0x1c8] sm:$0xff]
    %v3376 = vld [vmem:[#allocation7 + $0x1d0] sm:$0xff]
    %v3377 = vld [vmem:[#allocation7 + $0x1d8] sm:$0xff]
    %v3378 = vld [vmem:[#allocation7 + $0x1e0] sm:$0xff]
    %v3379 = vld [vmem:[#allocation7 + $0x1e8] sm:$0xff]
    %v3380 = vld [vmem:[#allocation7 + $0x1f0] sm:$0xff]
    %v3381 = vld [vmem:[#allocation7 + $0x1f8] sm:$0xff]
    %v3382 = vld [vmem:[#allocation7 + $0x200] sm:$0xff]
    %v3383 = vld [vmem:[#allocation7 + $0x208] sm:$0xff]
    %v3384 = vld [vmem:[#allocation7 + $0x210] sm:$0xff]
    %v3385 = vld [vmem:[#allocation7 + $0x218] sm:$0xff]
    %v3386 = vld [vmem:[#allocation7 + $0x220] sm:$0xff]
    %v3387 = vld [vmem:[#allocation7 + $0x228] sm:$0xff]
    %v3388 = vld [vmem:[#allocation7 + $0x230] sm:$0xff]
    %v3389 = vld [vmem:[#allocation7 + $0x238] sm:$0xff]
    %v3390 = vld [vmem:[#allocation7 + $0x240] sm:$0xff]
    %v3391 = vld [vmem:[#allocation7 + $0x248] sm:$0xff]
    %v3392 = vld [vmem:[#allocation7 + $0x250] sm:$0xff]
    %v3393 = vld [vmem:[#allocation7 + $0x258] sm:$0xff]
    %v3394 = vld [vmem:[#allocation7 + $0x260] sm:$0xff]
    %v3395 = vld [vmem:[#allocation7 + $0x268] sm:$0xff]
    %v3396 = vld [vmem:[#allocation7 + $0x270] sm:$0xff]
    %v3397 = vld [vmem:[#allocation7 + $0x278] sm:$0xff]
    %v3398 = vld [vmem:[#allocation7 + $0x280] sm:$0xff]
    %v3399 = vld [vmem:[#allocation7 + $0x288] sm:$0xff]
    %v3400 = vld [vmem:[#allocation7 + $0x290] sm:$0xff]
    %v3401 = vld [vmem:[#allocation7 + $0x298] sm:$0xff]
    %v3402 = vld [vmem:[#allocation7 + $0x2a0] sm:$0xff]
    %v3403 = vld [vmem:[#allocation7 + $0x2a8] sm:$0xff]
    %v3404 = vld [vmem:[#allocation7 + $0x2b0] sm:$0xff]
    %v3405 = vld [vmem:[#allocation7 + $0x2b8] sm:$0xff]
    %v3406 = vld [vmem:[#allocation7 + $0x2c0] sm:$0xff]
    %v3407 = vld [vmem:[#allocation7 + $0x2c8] sm:$0xff]
    %v3408 = vld [vmem:[#allocation7 + $0x2d0] sm:$0xff]
    %v3409 = vld [vmem:[#allocation7 + $0x2d8] sm:$0xff]
    %v3410 = vld [vmem:[#allocation7 + $0x2e0] sm:$0xff]
    %v3411 = vld [vmem:[#allocation7 + $0x2e8] sm:$0xff]
    %v3412 = vld [vmem:[#allocation7 + $0x2f0] sm:$0xff]
    %v3413 = vld [vmem:[#allocation7 + $0x2f8] sm:$0xff]
    %v3414 = vld [vmem:[#allocation7 + $0x300] sm:$0xff]
    %v3415 = vld [vmem:[#allocation7 + $0x308] sm:$0xff]
    %v3416 = vld [vmem:[#allocation7 + $0x310] sm:$0xff]
    %v3417 = vld [vmem:[#allocation7 + $0x318] sm:$0xff]
    %v3418 = vld [vmem:[#allocation7 + $0x320] sm:$0xff]
    %v3419 = vld [vmem:[#allocation7 + $0x328] sm:$0xff]
    %v3420 = vld [vmem:[#allocation7 + $0x330] sm:$0xff]
    %v3421 = vld [vmem:[#allocation7 + $0x338] sm:$0xff]
    %v3422 = vld [vmem:[#allocation7 + $0x340] sm:$0xff]
    %v3423 = vld [vmem:[#allocation7 + $0x348] sm:$0xff]
    %v3424 = vld [vmem:[#allocation7 + $0x350] sm:$0xff]
    %v3425 = vld [vmem:[#allocation7 + $0x358] sm:$0xff]
    %v3426 = vld [vmem:[#allocation7 + $0x360] sm:$0xff]
    %v3427 = vld [vmem:[#allocation7 + $0x368] sm:$0xff]
    %v3428 = vld [vmem:[#allocation7 + $0x370] sm:$0xff]
    %v3429 = vld [vmem:[#allocation7 + $0x378] sm:$0xff]
    %v3430 = vld [vmem:[#allocation7 + $0x380] sm:$0xff]
    %v3431 = vld [vmem:[#allocation7 + $0x388] sm:$0xff]
    %v3432 = vld [vmem:[#allocation7 + $0x390] sm:$0xff]
    %v3433 = vld [vmem:[#allocation7 + $0x398] sm:$0xff]
    %v3434 = vld [vmem:[#allocation7 + $0x3a0] sm:$0xff]
    %v3435 = vld [vmem:[#allocation7 + $0x3a8] sm:$0xff]
    %v3436 = vld [vmem:[#allocation7 + $0x3b0] sm:$0xff]
    %v3437 = vld [vmem:[#allocation7 + $0x3b8] sm:$0xff]
    %v3438 = vld [vmem:[#allocation7 + $0x3c0] sm:$0xff]
    %v3439 = vld [vmem:[#allocation7 + $0x3c8] sm:$0xff]
    %v3440 = vld [vmem:[#allocation7 + $0x3d0] sm:$0xff]
    %v3441 = vld [vmem:[#allocation7 + $0x3d8] sm:$0xff]
    %v3442 = vld [vmem:[#allocation7 + $0x3e0] sm:$0xff]
    %v3443 = vld [vmem:[#allocation7 + $0x3e8] sm:$0xff]
    %v3444 = vld [vmem:[#allocation7 + $0x3f0] sm:$0xff]
    %v3445 = vld [vmem:[#allocation7 + $0x3f8] sm:$0xff]
    %v3446 = vld [vmem:[#allocation7 + $0x400] sm:$0xff]
    %v3447 = vld [vmem:[#allocation7 + $0x408] sm:$0xff]
    %v3448 = vld [vmem:[#allocation7 + $0x410] sm:$0xff]
    %v3449 = vld [vmem:[#allocation7 + $0x418] sm:$0xff]
    %v3450 = vld [vmem:[#allocation7 + $0x420] sm:$0xff]
    %v3451 = vld [vmem:[#allocation7 + $0x428] sm:$0xff]
    %v3452 = vld [vmem:[#allocation7 + $0x430] sm:$0xff]
    %v3453 = vld [vmem:[#allocation7 + $0x438] sm:$0xff]
    %v3454 = vld [vmem:[#allocation7 + $0x440] sm:$0xff]
    %v3455 = vld [vmem:[#allocation7 + $0x448] sm:$0xff]
    %v3456 = vld [vmem:[#allocation7 + $0x450] sm:$0xff]
    %v3457 = vld [vmem:[#allocation7 + $0x458] sm:$0xff]
    %v3458 = vld [vmem:[#allocation7 + $0x460] sm:$0xff]
    %v3459 = vld [vmem:[#allocation7 + $0x468] sm:$0xff]
    %v3460 = vld [vmem:[#allocation7 + $0x470] sm:$0xff]
    %v3461 = vld [vmem:[#allocation7 + $0x478] sm:$0xff]
    %v3462 = vld [vmem:[#allocation7 + $0x480] sm:$0xff]
    %v3463 = vld [vmem:[#allocation7 + $0x488] sm:$0xff]
    %v3464 = vld [vmem:[#allocation7 + $0x490] sm:$0xff]
    %v3465 = vld [vmem:[#allocation7 + $0x498] sm:$0xff]
    %v3466 = vld [vmem:[#allocation7 + $0x4a0] sm:$0xff]
    %v3467 = vld [vmem:[#allocation7 + $0x4a8] sm:$0xff]
    %v3468 = vld [vmem:[#allocation7 + $0x4b0] sm:$0xff]
    %v3469 = vld [vmem:[#allocation7 + $0x4b8] sm:$0xff]
    %v3470 = vld [vmem:[#allocation7 + $0x4c0] sm:$0xff]
    %v3471 = vld [vmem:[#allocation7 + $0x4c8] sm:$0xff]
    %v3472 = vld [vmem:[#allocation7 + $0x4d0] sm:$0xff]
    %v3473 = vld [vmem:[#allocation7 + $0x4d8] sm:$0xff]
    %v3474 = vld [vmem:[#allocation7 + $0x4e0] sm:$0xff]
    %v3475 = vld [vmem:[#allocation7 + $0x4e8] sm:$0xff]
    %v3476 = vld [vmem:[#allocation7 + $0x4f0] sm:$0xff]
    %v3477 = vld [vmem:[#allocation7 + $0x4f8] sm:$0xff]
    %v3478 = vld [vmem:[#allocation7 + $0x500] sm:$0xff]
    %v3479 = vld [vmem:[#allocation7 + $0x508] sm:$0xff]
    %v3480 = vld [vmem:[#allocation7 + $0x510] sm:$0xff]
    %v3481 = vld [vmem:[#allocation7 + $0x518] sm:$0xff]
    %v3482 = vld [vmem:[#allocation7 + $0x520] sm:$0xff]
    %v3483 = vld [vmem:[#allocation7 + $0x528] sm:$0xff]
    %v3484 = vld [vmem:[#allocation7 + $0x530] sm:$0xff]
    %v3485 = vld [vmem:[#allocation7 + $0x538] sm:$0xff]
    %v3486 = vld [vmem:[#allocation7 + $0x540] sm:$0xff]
    %v3487 = vld [vmem:[#allocation7 + $0x548] sm:$0xff]
    %v3488 = vld [vmem:[#allocation7 + $0x550] sm:$0xff]
    %v3489 = vld [vmem:[#allocation7 + $0x558] sm:$0xff]
    %v3490 = vld [vmem:[#allocation7 + $0x560] sm:$0xff]
    %v3491 = vld [vmem:[#allocation7 + $0x568] sm:$0xff]
    %v3492 = vld [vmem:[#allocation7 + $0x570] sm:$0xff]
    %v3493 = vld [vmem:[#allocation7 + $0x578] sm:$0xff]
    %v3494 = vld [vmem:[#allocation7 + $0x580] sm:$0xff]
    %v3495 = vld [vmem:[#allocation7 + $0x588] sm:$0xff]
    %v3496 = vld [vmem:[#allocation7 + $0x590] sm:$0xff]
    %v3497 = vld [vmem:[#allocation7 + $0x598] sm:$0xff]
    %v3498 = vld [vmem:[#allocation7 + $0x5a0] sm:$0xff]
    %v3499 = vld [vmem:[#allocation7 + $0x5a8] sm:$0xff]
    %v3500 = vld [vmem:[#allocation7 + $0x5b0] sm:$0xff]
    %v3501 = vld [vmem:[#allocation7 + $0x5b8] sm:$0xff]
    %v3502 = vld [vmem:[#allocation7 + $0x5c0] sm:$0xff]
    %v3503 = vld [vmem:[#allocation7 + $0x5c8] sm:$0xff]
    %v3504 = vld [vmem:[#allocation7 + $0x5d0] sm:$0xff]
    %v3505 = vld [vmem:[#allocation7 + $0x5d8] sm:$0xff]
    %v3506 = vld [vmem:[#allocation7 + $0x5e0] sm:$0xff]
    %v3507 = vld [vmem:[#allocation7 + $0x5e8] sm:$0xff]
    %v3508 = vld [vmem:[#allocation7 + $0x5f0] sm:$0xff]
    %v3509 = vld [vmem:[#allocation7 + $0x5f8] sm:$0xff]
    %v3510 = vld [vmem:[#allocation7 + $0x600] sm:$0xff]
    %v3511 = vld [vmem:[#allocation7 + $0x608] sm:$0xff]
    %v3512 = vld [vmem:[#allocation7 + $0x610] sm:$0xff]
    %v3513 = vld [vmem:[#allocation7 + $0x618] sm:$0xff]
    %v3514 = vld [vmem:[#allocation7 + $0x620] sm:$0xff]
    %v3515 = vld [vmem:[#allocation7 + $0x628] sm:$0xff]
    %v3516 = vld [vmem:[#allocation7 + $0x630] sm:$0xff]
    %v3517 = vld [vmem:[#allocation7 + $0x638] sm:$0xff]
    %v3518 = vld [vmem:[#allocation7 + $0x640] sm:$0xff]
    %v3519 = vld [vmem:[#allocation7 + $0x648] sm:$0xff]
    %v3520 = vld [vmem:[#allocation7 + $0x650] sm:$0xff]
    %v3521 = vld [vmem:[#allocation7 + $0x658] sm:$0xff]
    %v3522 = vld [vmem:[#allocation7 + $0x660] sm:$0xff]
    %v3523 = vld [vmem:[#allocation7 + $0x668] sm:$0xff]
    %v3524 = vld [vmem:[#allocation7 + $0x670] sm:$0xff]
    %v3525 = vld [vmem:[#allocation7 + $0x678] sm:$0xff]
    %v3526 = vld [vmem:[#allocation7 + $0x680] sm:$0xff]
    %v3527 = vld [vmem:[#allocation7 + $0x688] sm:$0xff]
    %v3528 = vld [vmem:[#allocation7 + $0x690] sm:$0xff]
    %v3529 = vld [vmem:[#allocation7 + $0x698] sm:$0xff]
    %v3530 = vld [vmem:[#allocation7 + $0x6a0] sm:$0xff]
    %v3531 = vld [vmem:[#allocation7 + $0x6a8] sm:$0xff]
    %v3532 = vld [vmem:[#allocation7 + $0x6b0] sm:$0xff]
    %v3533 = vld [vmem:[#allocation7 + $0x6b8] sm:$0xff]
    %v3534 = vld [vmem:[#allocation7 + $0x6c0] sm:$0xff]
    %v3535 = vld [vmem:[#allocation7 + $0x6c8] sm:$0xff]
    %v3536 = vld [vmem:[#allocation7 + $0x6d0] sm:$0xff]
    %v3537 = vld [vmem:[#allocation7 + $0x6d8] sm:$0xff]
    %v3538 = vld [vmem:[#allocation7 + $0x6e0] sm:$0xff]
    %v3539 = vld [vmem:[#allocation7 + $0x6e8] sm:$0xff]
    %v3540 = vld [vmem:[#allocation7 + $0x6f0] sm:$0xff]
    %v3541 = vld [vmem:[#allocation7 + $0x6f8] sm:$0xff]
    %v3542 = vld [vmem:[#allocation7 + $0x700] sm:$0xff]
    %v3543 = vld [vmem:[#allocation7 + $0x708] sm:$0xff]
    %v3544 = vld [vmem:[#allocation7 + $0x710] sm:$0xff]
    %v3545 = vld [vmem:[#allocation7 + $0x718] sm:$0xff]
    %v3546 = vld [vmem:[#allocation7 + $0x720] sm:$0xff]
    %v3547 = vld [vmem:[#allocation7 + $0x728] sm:$0xff]
    %v3548 = vld [vmem:[#allocation7 + $0x730] sm:$0xff]
    %v3549 = vld [vmem:[#allocation7 + $0x738] sm:$0xff]
    %v3550 = vld [vmem:[#allocation7 + $0x740] sm:$0xff]
    %v3551 = vld [vmem:[#allocation7 + $0x748] sm:$0xff]
    %v3552 = vld [vmem:[#allocation7 + $0x750] sm:$0xff]
    %v3553 = vld [vmem:[#allocation7 + $0x758] sm:$0xff]
    %v3554 = vld [vmem:[#allocation7 + $0x760] sm:$0xff]
    %v3555 = vld [vmem:[#allocation7 + $0x768] sm:$0xff]
    %v3556 = vld [vmem:[#allocation7 + $0x770] sm:$0xff]
    %v3557 = vld [vmem:[#allocation7 + $0x778] sm:$0xff]
    %v3558 = vld [vmem:[#allocation7 + $0x780] sm:$0xff]
    %v3559 = vld [vmem:[#allocation7 + $0x788] sm:$0xff]
    %v3560 = vld [vmem:[#allocation7 + $0x790] sm:$0xff]
    %v3561 = vld [vmem:[#allocation7 + $0x798] sm:$0xff]
    %v3562 = vld [vmem:[#allocation7 + $0x7a0] sm:$0xff]
    %v3563 = vld [vmem:[#allocation7 + $0x7a8] sm:$0xff]
    %v3564 = vld [vmem:[#allocation7 + $0x7b0] sm:$0xff]
    %v3565 = vld [vmem:[#allocation7 + $0x7b8] sm:$0xff]
    %v3566 = vld [vmem:[#allocation7 + $0x7c0] sm:$0xff]
    %v3567 = vld [vmem:[#allocation7 + $0x7c8] sm:$0xff]
    %v3568 = vld [vmem:[#allocation7 + $0x7d0] sm:$0xff]
    %v3569 = vld [vmem:[#allocation7 + $0x7d8] sm:$0xff]
    %v3570 = vld [vmem:[#allocation7 + $0x7e0] sm:$0xff]
    %v3571 = vld [vmem:[#allocation7 + $0x7e8] sm:$0xff]
    %v3572 = vld [vmem:[#allocation7 + $0x7f0] sm:$0xff]
    %v3573 = vld [vmem:[#allocation7 + $0x7f8] sm:$0xff]
    %v3574 = vld [vmem:[#allocation8] sm:$0xf]
    %v3576 = vperm.slane %v3574, 0
    %v3577 = vperm.slane %v3574, 1
    %v3578 = vperm.slane %v3574, 2
    %v3579 = vperm.slane %v3574, 3
    %v3840 = vunpack.c.l.b16 %v3318
    %v3841 = vunpack.c.h.b16 %v3318
    %v3842 = vunpack.c.l.b16 %v3319
    %v3843 = vunpack.c.h.b16 %v3319
    %v3844 = vunpack.c.l.b16 %v3320
    %v3845 = vunpack.c.h.b16 %v3320
    %v3846 = vunpack.c.l.b16 %v3321
    %v3847 = vunpack.c.h.b16 %v3321
    %v3848 = vunpack.c.l.b16 %v3322
    %v3849 = vunpack.c.h.b16 %v3322
    %v3850 = vunpack.c.l.b16 %v3323
    %v3851 = vunpack.c.h.b16 %v3323
    %v3852 = vunpack.c.l.b16 %v3324
    %v3853 = vunpack.c.h.b16 %v3324
    %v3854 = vunpack.c.l.b16 %v3325
    %v3855 = vunpack.c.h.b16 %v3325
    %v3856 = vunpack.c.l.b16 %v3326
    %v3857 = vunpack.c.h.b16 %v3326
    %v3858 = vunpack.c.l.b16 %v3327
    %v3859 = vunpack.c.h.b16 %v3327
    %v3860 = vunpack.c.l.b16 %v3328
    %v3861 = vunpack.c.h.b16 %v3328
    %v3862 = vunpack.c.l.b16 %v3329
    %v3863 = vunpack.c.h.b16 %v3329
    %v3864 = vunpack.c.l.b16 %v3330
    %v3865 = vunpack.c.h.b16 %v3330
    %v3866 = vunpack.c.l.b16 %v3331
    %v3867 = vunpack.c.h.b16 %v3331
    %v3868 = vunpack.c.l.b16 %v3332
    %v3869 = vunpack.c.h.b16 %v3332
    %v3870 = vunpack.c.l.b16 %v3333
    %v3871 = vunpack.c.h.b16 %v3333
    %v3872 = vunpack.c.l.b16 %v3334
    %v3873 = vunpack.c.h.b16 %v3334
    %v3874 = vunpack.c.l.b16 %v3335
    %v3875 = vunpack.c.h.b16 %v3335
    %v3876 = vunpack.c.l.b16 %v3336
    %v3877 = vunpack.c.h.b16 %v3336
    %v3878 = vunpack.c.l.b16 %v3337
    %v3879 = vunpack.c.h.b16 %v3337
    %v3880 = vunpack.c.l.b16 %v3338
    %v3881 = vunpack.c.h.b16 %v3338
    %v3882 = vunpack.c.l.b16 %v3339
    %v3883 = vunpack.c.h.b16 %v3339
    %v3884 = vunpack.c.l.b16 %v3340
    %v3885 = vunpack.c.h.b16 %v3340
    %v3886 = vunpack.c.l.b16 %v3341
    %v3887 = vunpack.c.h.b16 %v3341
    %v3888 = vunpack.c.l.b16 %v3342
    %v3889 = vunpack.c.h.b16 %v3342
    %v3890 = vunpack.c.l.b16 %v3343
    %v3891 = vunpack.c.h.b16 %v3343
    %v3892 = vunpack.c.l.b16 %v3344
    %v3893 = vunpack.c.h.b16 %v3344
    %v3894 = vunpack.c.l.b16 %v3345
    %v3895 = vunpack.c.h.b16 %v3345
    %v3896 = vunpack.c.l.b16 %v3346
    %v3897 = vunpack.c.h.b16 %v3346
    %v3898 = vunpack.c.l.b16 %v3347
    %v3899 = vunpack.c.h.b16 %v3347
    %v3900 = vunpack.c.l.b16 %v3348
    %v3901 = vunpack.c.h.b16 %v3348
    %v3902 = vunpack.c.l.b16 %v3349
    %v3903 = vunpack.c.h.b16 %v3349
    %v3904 = vunpack.c.l.b16 %v3350
    %v3905 = vunpack.c.h.b16 %v3350
    %v3906 = vunpack.c.l.b16 %v3351
    %v3907 = vunpack.c.h.b16 %v3351
    %v3908 = vunpack.c.l.b16 %v3352
    %v3909 = vunpack.c.h.b16 %v3352
    %v3910 = vunpack.c.l.b16 %v3353
    %v3911 = vunpack.c.h.b16 %v3353
    %v3912 = vunpack.c.l.b16 %v3354
    %v3913 = vunpack.c.h.b16 %v3354
    %v3914 = vunpack.c.l.b16 %v3355
    %v3915 = vunpack.c.h.b16 %v3355
    %v3916 = vunpack.c.l.b16 %v3356
    %v3917 = vunpack.c.h.b16 %v3356
    %v3918 = vunpack.c.l.b16 %v3357
    %v3919 = vunpack.c.h.b16 %v3357
    %v3920 = vunpack.c.l.b16 %v3358
    %v3921 = vunpack.c.h.b16 %v3358
    %v3922 = vunpack.c.l.b16 %v3359
    %v3923 = vunpack.c.h.b16 %v3359
    %v3924 = vunpack.c.l.b16 %v3360
    %v3925 = vunpack.c.h.b16 %v3360
    %v3926 = vunpack.c.l.b16 %v3361
    %v3927 = vunpack.c.h.b16 %v3361
    %v3928 = vunpack.c.l.b16 %v3362
    %v3929 = vunpack.c.h.b16 %v3362
    %v3930 = vunpack.c.l.b16 %v3363
    %v3931 = vunpack.c.h.b16 %v3363
    %v3932 = vunpack.c.l.b16 %v3364
    %v3933 = vunpack.c.h.b16 %v3364
    %v3934 = vunpack.c.l.b16 %v3365
    %v3935 = vunpack.c.h.b16 %v3365
    %v3936 = vunpack.c.l.b16 %v3366
    %v3937 = vunpack.c.h.b16 %v3366
    %v3938 = vunpack.c.l.b16 %v3367
    %v3939 = vunpack.c.h.b16 %v3367
    %v3940 = vunpack.c.l.b16 %v3368
    %v3941 = vunpack.c.h.b16 %v3368
    %v3942 = vunpack.c.l.b16 %v3369
    %v3943 = vunpack.c.h.b16 %v3369
    %v3944 = vunpack.c.l.b16 %v3370
    %v3945 = vunpack.c.h.b16 %v3370
    %v3946 = vunpack.c.l.b16 %v3371
    %v3947 = vunpack.c.h.b16 %v3371
    %v3948 = vunpack.c.l.b16 %v3372
    %v3949 = vunpack.c.h.b16 %v3372
    %v3950 = vunpack.c.l.b16 %v3373
    %v3951 = vunpack.c.h.b16 %v3373
    %v3952 = vunpack.c.l.b16 %v3374
    %v3953 = vunpack.c.h.b16 %v3374
    %v3954 = vunpack.c.l.b16 %v3375
    %v3955 = vunpack.c.h.b16 %v3375
    %v3956 = vunpack.c.l.b16 %v3376
    %v3957 = vunpack.c.h.b16 %v3376
    %v3958 = vunpack.c.l.b16 %v3377
    %v3959 = vunpack.c.h.b16 %v3377
    %v3960 = vunpack.c.l.b16 %v3378
    %v3961 = vunpack.c.h.b16 %v3378
    %v3962 = vunpack.c.l.b16 %v3379
    %v3963 = vunpack.c.h.b16 %v3379
    %v3964 = vunpack.c.l.b16 %v3380
    %v3965 = vunpack.c.h.b16 %v3380
    %v3966 = vunpack.c.l.b16 %v3381
    %v3967 = vunpack.c.h.b16 %v3381
    %v3968 = vunpack.c.l.b16 %v3382
    %v3969 = vunpack.c.h.b16 %v3382
    %v3970 = vunpack.c.l.b16 %v3383
    %v3971 = vunpack.c.h.b16 %v3383
    %v3972 = vunpack.c.l.b16 %v3384
    %v3973 = vunpack.c.h.b16 %v3384
    %v3974 = vunpack.c.l.b16 %v3385
    %v3975 = vunpack.c.h.b16 %v3385
    %v3976 = vunpack.c.l.b16 %v3386
    %v3977 = vunpack.c.h.b16 %v3386
    %v3978 = vunpack.c.l.b16 %v3387
    %v3979 = vunpack.c.h.b16 %v3387
    %v3980 = vunpack.c.l.b16 %v3388
    %v3981 = vunpack.c.h.b16 %v3388
    %v3982 = vunpack.c.l.b16 %v3389
    %v3983 = vunpack.c.h.b16 %v3389
    %v3984 = vunpack.c.l.b16 %v3390
    %v3985 = vunpack.c.h.b16 %v3390
    %v3986 = vunpack.c.l.b16 %v3391
    %v3987 = vunpack.c.h.b16 %v3391
    %v3988 = vunpack.c.l.b16 %v3392
    %v3989 = vunpack.c.h.b16 %v3392
    %v3990 = vunpack.c.l.b16 %v3393
    %v3991 = vunpack.c.h.b16 %v3393
    %v3992 = vunpack.c.l.b16 %v3394
    %v3993 = vunpack.c.h.b16 %v3394
    %v3994 = vunpack.c.l.b16 %v3395
    %v3995 = vunpack.c.h.b16 %v3395
    %v3996 = vunpack.c.l.b16 %v3396
    %v3997 = vunpack.c.h.b16 %v3396
    %v3998 = vunpack.c.l.b16 %v3397
    %v3999 = vunpack.c.h.b16 %v3397
    %v4000 = vunpack.c.l.b16 %v3398
    %v4001 = vunpack.c.h.b16 %v3398
    %v4002 = vunpack.c.l.b16 %v3399
    %v4003 = vunpack.c.h.b16 %v3399
    %v4004 = vunpack.c.l.b16 %v3400
    %v4005 = vunpack.c.h.b16 %v3400
    %v4006 = vunpack.c.l.b16 %v3401
    %v4007 = vunpack.c.h.b16 %v3401
    %v4008 = vunpack.c.l.b16 %v3402
    %v4009 = vunpack.c.h.b16 %v3402
    %v4010 = vunpack.c.l.b16 %v3403
    %v4011 = vunpack.c.h.b16 %v3403
    %v4012 = vunpack.c.l.b16 %v3404
    %v4013 = vunpack.c.h.b16 %v3404
    %v4014 = vunpack.c.l.b16 %v3405
    %v4015 = vunpack.c.h.b16 %v3405
    %v4016 = vunpack.c.l.b16 %v3406
    %v4017 = vunpack.c.h.b16 %v3406
    %v4018 = vunpack.c.l.b16 %v3407
    %v4019 = vunpack.c.h.b16 %v3407
    %v4020 = vunpack.c.l.b16 %v3408
    %v4021 = vunpack.c.h.b16 %v3408
    %v4022 = vunpack.c.l.b16 %v3409
    %v4023 = vunpack.c.h.b16 %v3409
    %v4024 = vunpack.c.l.b16 %v3410
    %v4025 = vunpack.c.h.b16 %v3410
    %v4026 = vunpack.c.l.b16 %v3411
    %v4027 = vunpack.c.h.b16 %v3411
    %v4028 = vunpack.c.l.b16 %v3412
    %v4029 = vunpack.c.h.b16 %v3412
    %v4030 = vunpack.c.l.b16 %v3413
    %v4031 = vunpack.c.h.b16 %v3413
    %v4032 = vunpack.c.l.b16 %v3414
    %v4033 = vunpack.c.h.b16 %v3414
    %v4034 = vunpack.c.l.b16 %v3415
    %v4035 = vunpack.c.h.b16 %v3415
    %v4036 = vunpack.c.l.b16 %v3416
    %v4037 = vunpack.c.h.b16 %v3416
    %v4038 = vunpack.c.l.b16 %v3417
    %v4039 = vunpack.c.h.b16 %v3417
    %v4040 = vunpack.c.l.b16 %v3418
    %v4041 = vunpack.c.h.b16 %v3418
    %v4042 = vunpack.c.l.b16 %v3419
    %v4043 = vunpack.c.h.b16 %v3419
    %v4044 = vunpack.c.l.b16 %v3420
    %v4045 = vunpack.c.h.b16 %v3420
    %v4046 = vunpack.c.l.b16 %v3421
    %v4047 = vunpack.c.h.b16 %v3421
    %v4048 = vunpack.c.l.b16 %v3422
    %v4049 = vunpack.c.h.b16 %v3422
    %v4050 = vunpack.c.l.b16 %v3423
    %v4051 = vunpack.c.h.b16 %v3423
    %v4052 = vunpack.c.l.b16 %v3424
    %v4053 = vunpack.c.h.b16 %v3424
    %v4054 = vunpack.c.l.b16 %v3425
    %v4055 = vunpack.c.h.b16 %v3425
    %v4056 = vunpack.c.l.b16 %v3426
    %v4057 = vunpack.c.h.b16 %v3426
    %v4058 = vunpack.c.l.b16 %v3427
    %v4059 = vunpack.c.h.b16 %v3427
    %v4060 = vunpack.c.l.b16 %v3428
    %v4061 = vunpack.c.h.b16 %v3428
    %v4062 = vunpack.c.l.b16 %v3429
    %v4063 = vunpack.c.h.b16 %v3429
    %v4064 = vunpack.c.l.b16 %v3430
    %v4065 = vunpack.c.h.b16 %v3430
    %v4066 = vunpack.c.l.b16 %v3431
    %v4067 = vunpack.c.h.b16 %v3431
    %v4068 = vunpack.c.l.b16 %v3432
    %v4069 = vunpack.c.h.b16 %v3432
    %v4070 = vunpack.c.l.b16 %v3433
    %v4071 = vunpack.c.h.b16 %v3433
    %v4072 = vunpack.c.l.b16 %v3434
    %v4073 = vunpack.c.h.b16 %v3434
    %v4074 = vunpack.c.l.b16 %v3435
    %v4075 = vunpack.c.h.b16 %v3435
    %v4076 = vunpack.c.l.b16 %v3436
    %v4077 = vunpack.c.h.b16 %v3436
    %v4078 = vunpack.c.l.b16 %v3437
    %v4079 = vunpack.c.h.b16 %v3437
    %v4080 = vunpack.c.l.b16 %v3438
    %v4081 = vunpack.c.h.b16 %v3438
    %v4082 = vunpack.c.l.b16 %v3439
    %v4083 = vunpack.c.h.b16 %v3439
    %v4084 = vunpack.c.l.b16 %v3440
    %v4085 = vunpack.c.h.b16 %v3440
    %v4086 = vunpack.c.l.b16 %v3441
    %v4087 = vunpack.c.h.b16 %v3441
    %v4088 = vunpack.c.l.b16 %v3442
    %v4089 = vunpack.c.h.b16 %v3442
    %v4090 = vunpack.c.l.b16 %v3443
    %v4091 = vunpack.c.h.b16 %v3443
    %v4092 = vunpack.c.l.b16 %v3444
    %v4093 = vunpack.c.h.b16 %v3444
    %v4094 = vunpack.c.l.b16 %v3445
    %v4095 = vunpack.c.h.b16 %v3445
    %v4096 = vunpack.c.l.b16 %v3446
    %v4097 = vunpack.c.h.b16 %v3446
    %v4098 = vunpack.c.l.b16 %v3447
    %v4099 = vunpack.c.h.b16 %v3447
    %v4100 = vunpack.c.l.b16 %v3448
    %v4101 = vunpack.c.h.b16 %v3448
    %v4102 = vunpack.c.l.b16 %v3449
    %v4103 = vunpack.c.h.b16 %v3449
    %v4104 = vunpack.c.l.b16 %v3450
    %v4105 = vunpack.c.h.b16 %v3450
    %v4106 = vunpack.c.l.b16 %v3451
    %v4107 = vunpack.c.h.b16 %v3451
    %v4108 = vunpack.c.l.b16 %v3452
    %v4109 = vunpack.c.h.b16 %v3452
    %v4110 = vunpack.c.l.b16 %v3453
    %v4111 = vunpack.c.h.b16 %v3453
    %v4112 = vunpack.c.l.b16 %v3454
    %v4113 = vunpack.c.h.b16 %v3454
    %v4114 = vunpack.c.l.b16 %v3455
    %v4115 = vunpack.c.h.b16 %v3455
    %v4116 = vunpack.c.l.b16 %v3456
    %v4117 = vunpack.c.h.b16 %v3456
    %v4118 = vunpack.c.l.b16 %v3457
    %v4119 = vunpack.c.h.b16 %v3457
    %v4120 = vunpack.c.l.b16 %v3458
    %v4121 = vunpack.c.h.b16 %v3458
    %v4122 = vunpack.c.l.b16 %v3459
    %v4123 = vunpack.c.h.b16 %v3459
    %v4124 = vunpack.c.l.b16 %v3460
    %v4125 = vunpack.c.h.b16 %v3460
    %v4126 = vunpack.c.l.b16 %v3461
    %v4127 = vunpack.c.h.b16 %v3461
    %v4128 = vunpack.c.l.b16 %v3462
    %v4129 = vunpack.c.h.b16 %v3462
    %v4130 = vunpack.c.l.b16 %v3463
    %v4131 = vunpack.c.h.b16 %v3463
    %v4132 = vunpack.c.l.b16 %v3464
    %v4133 = vunpack.c.h.b16 %v3464
    %v4134 = vunpack.c.l.b16 %v3465
    %v4135 = vunpack.c.h.b16 %v3465
    %v4136 = vunpack.c.l.b16 %v3466
    %v4137 = vunpack.c.h.b16 %v3466
    %v4138 = vunpack.c.l.b16 %v3467
    %v4139 = vunpack.c.h.b16 %v3467
    %v4140 = vunpack.c.l.b16 %v3468
    %v4141 = vunpack.c.h.b16 %v3468
    %v4142 = vunpack.c.l.b16 %v3469
    %v4143 = vunpack.c.h.b16 %v3469
    %v4144 = vunpack.c.l.b16 %v3470
    %v4145 = vunpack.c.h.b16 %v3470
    %v4146 = vunpack.c.l.b16 %v3471
    %v4147 = vunpack.c.h.b16 %v3471
    %v4148 = vunpack.c.l.b16 %v3472
    %v4149 = vunpack.c.h.b16 %v3472
    %v4150 = vunpack.c.l.b16 %v3473
    %v4151 = vunpack.c.h.b16 %v3473
    %v4152 = vunpack.c.l.b16 %v3474
    %v4153 = vunpack.c.h.b16 %v3474
    %v4154 = vunpack.c.l.b16 %v3475
    %v4155 = vunpack.c.h.b16 %v3475
    %v4156 = vunpack.c.l.b16 %v3476
    %v4157 = vunpack.c.h.b16 %v3476
    %v4158 = vunpack.c.l.b16 %v3477
    %v4159 = vunpack.c.h.b16 %v3477
    %v4160 = vunpack.c.l.b16 %v3478
    %v4161 = vunpack.c.h.b16 %v3478
    %v4162 = vunpack.c.l.b16 %v3479
    %v4163 = vunpack.c.h.b16 %v3479
    %v4164 = vunpack.c.l.b16 %v3480
    %v4165 = vunpack.c.h.b16 %v3480
    %v4166 = vunpack.c.l.b16 %v3481
    %v4167 = vunpack.c.h.b16 %v3481
    %v4168 = vunpack.c.l.b16 %v3482
    %v4169 = vunpack.c.h.b16 %v3482
    %v4170 = vunpack.c.l.b16 %v3483
    %v4171 = vunpack.c.h.b16 %v3483
    %v4172 = vunpack.c.l.b16 %v3484
    %v4173 = vunpack.c.h.b16 %v3484
    %v4174 = vunpack.c.l.b16 %v3485
    %v4175 = vunpack.c.h.b16 %v3485
    %v4176 = vunpack.c.l.b16 %v3486
    %v4177 = vunpack.c.h.b16 %v3486
    %v4178 = vunpack.c.l.b16 %v3487
    %v4179 = vunpack.c.h.b16 %v3487
    %v4180 = vunpack.c.l.b16 %v3488
    %v4181 = vunpack.c.h.b16 %v3488
    %v4182 = vunpack.c.l.b16 %v3489
    %v4183 = vunpack.c.h.b16 %v3489
    %v4184 = vunpack.c.l.b16 %v3490
    %v4185 = vunpack.c.h.b16 %v3490
    %v4186 = vunpack.c.l.b16 %v3491
    %v4187 = vunpack.c.h.b16 %v3491
    %v4188 = vunpack.c.l.b16 %v3492
    %v4189 = vunpack.c.h.b16 %v3492
    %v4190 = vunpack.c.l.b16 %v3493
    %v4191 = vunpack.c.h.b16 %v3493
    %v4192 = vunpack.c.l.b16 %v3494
    %v4193 = vunpack.c.h.b16 %v3494
    %v4194 = vunpack.c.l.b16 %v3495
    %v4195 = vunpack.c.h.b16 %v3495
    %v4196 = vunpack.c.l.b16 %v3496
    %v4197 = vunpack.c.h.b16 %v3496
    %v4198 = vunpack.c.l.b16 %v3497
    %v4199 = vunpack.c.h.b16 %v3497
    %v4200 = vunpack.c.l.b16 %v3498
    %v4201 = vunpack.c.h.b16 %v3498
    %v4202 = vunpack.c.l.b16 %v3499
    %v4203 = vunpack.c.h.b16 %v3499
    %v4204 = vunpack.c.l.b16 %v3500
    %v4205 = vunpack.c.h.b16 %v3500
    %v4206 = vunpack.c.l.b16 %v3501
    %v4207 = vunpack.c.h.b16 %v3501
    %v4208 = vunpack.c.l.b16 %v3502
    %v4209 = vunpack.c.h.b16 %v3502
    %v4210 = vunpack.c.l.b16 %v3503
    %v4211 = vunpack.c.h.b16 %v3503
    %v4212 = vunpack.c.l.b16 %v3504
    %v4213 = vunpack.c.h.b16 %v3504
    %v4214 = vunpack.c.l.b16 %v3505
    %v4215 = vunpack.c.h.b16 %v3505
    %v4216 = vunpack.c.l.b16 %v3506
    %v4217 = vunpack.c.h.b16 %v3506
    %v4218 = vunpack.c.l.b16 %v3507
    %v4219 = vunpack.c.h.b16 %v3507
    %v4220 = vunpack.c.l.b16 %v3508
    %v4221 = vunpack.c.h.b16 %v3508
    %v4222 = vunpack.c.l.b16 %v3509
    %v4223 = vunpack.c.h.b16 %v3509
    %v4224 = vunpack.c.l.b16 %v3510
    %v4225 = vunpack.c.h.b16 %v3510
    %v4226 = vunpack.c.l.b16 %v3511
    %v4227 = vunpack.c.h.b16 %v3511
    %v4228 = vunpack.c.l.b16 %v3512
    %v4229 = vunpack.c.h.b16 %v3512
    %v4230 = vunpack.c.l.b16 %v3513
    %v4231 = vunpack.c.h.b16 %v3513
    %v4232 = vunpack.c.l.b16 %v3514
    %v4233 = vunpack.c.h.b16 %v3514
    %v4234 = vunpack.c.l.b16 %v3515
    %v4235 = vunpack.c.h.b16 %v3515
    %v4236 = vunpack.c.l.b16 %v3516
    %v4237 = vunpack.c.h.b16 %v3516
    %v4238 = vunpack.c.l.b16 %v3517
    %v4239 = vunpack.c.h.b16 %v3517
    %v4240 = vunpack.c.l.b16 %v3518
    %v4241 = vunpack.c.h.b16 %v3518
    %v4242 = vunpack.c.l.b16 %v3519
    %v4243 = vunpack.c.h.b16 %v3519
    %v4244 = vunpack.c.l.b16 %v3520
    %v4245 = vunpack.c.h.b16 %v3520
    %v4246 = vunpack.c.l.b16 %v3521
    %v4247 = vunpack.c.h.b16 %v3521
    %v4248 = vunpack.c.l.b16 %v3522
    %v4249 = vunpack.c.h.b16 %v3522
    %v4250 = vunpack.c.l.b16 %v3523
    %v4251 = vunpack.c.h.b16 %v3523
    %v4252 = vunpack.c.l.b16 %v3524
    %v4253 = vunpack.c.h.b16 %v3524
    %v4254 = vunpack.c.l.b16 %v3525
    %v4255 = vunpack.c.h.b16 %v3525
    %v4256 = vunpack.c.l.b16 %v3526
    %v4257 = vunpack.c.h.b16 %v3526
    %v4258 = vunpack.c.l.b16 %v3527
    %v4259 = vunpack.c.h.b16 %v3527
    %v4260 = vunpack.c.l.b16 %v3528
    %v4261 = vunpack.c.h.b16 %v3528
    %v4262 = vunpack.c.l.b16 %v3529
    %v4263 = vunpack.c.h.b16 %v3529
    %v4264 = vunpack.c.l.b16 %v3530
    %v4265 = vunpack.c.h.b16 %v3530
    %v4266 = vunpack.c.l.b16 %v3531
    %v4267 = vunpack.c.h.b16 %v3531
    %v4268 = vunpack.c.l.b16 %v3532
    %v4269 = vunpack.c.h.b16 %v3532
    %v4270 = vunpack.c.l.b16 %v3533
    %v4271 = vunpack.c.h.b16 %v3533
    %v4272 = vunpack.c.l.b16 %v3534
    %v4273 = vunpack.c.h.b16 %v3534
    %v4274 = vunpack.c.l.b16 %v3535
    %v4275 = vunpack.c.h.b16 %v3535
    %v4276 = vunpack.c.l.b16 %v3536
    %v4277 = vunpack.c.h.b16 %v3536
    %v4278 = vunpack.c.l.b16 %v3537
    %v4279 = vunpack.c.h.b16 %v3537
    %v4280 = vunpack.c.l.b16 %v3538
    %v4281 = vunpack.c.h.b16 %v3538
    %v4282 = vunpack.c.l.b16 %v3539
    %v4283 = vunpack.c.h.b16 %v3539
    %v4284 = vunpack.c.l.b16 %v3540
    %v4285 = vunpack.c.h.b16 %v3540
    %v4286 = vunpack.c.l.b16 %v3541
    %v4287 = vunpack.c.h.b16 %v3541
    %v4288 = vunpack.c.l.b16 %v3542
    %v4289 = vunpack.c.h.b16 %v3542
    %v4290 = vunpack.c.l.b16 %v3543
    %v4291 = vunpack.c.h.b16 %v3543
    %v4292 = vunpack.c.l.b16 %v3544
    %v4293 = vunpack.c.h.b16 %v3544
    %v4294 = vunpack.c.l.b16 %v3545
    %v4295 = vunpack.c.h.b16 %v3545
    %v4296 = vunpack.c.l.b16 %v3546
    %v4297 = vunpack.c.h.b16 %v3546
    %v4298 = vunpack.c.l.b16 %v3547
    %v4299 = vunpack.c.h.b16 %v3547
    %v4300 = vunpack.c.l.b16 %v3548
    %v4301 = vunpack.c.h.b16 %v3548
    %v4302 = vunpack.c.l.b16 %v3549
    %v4303 = vunpack.c.h.b16 %v3549
    %v4304 = vunpack.c.l.b16 %v3550
    %v4305 = vunpack.c.h.b16 %v3550
    %v4306 = vunpack.c.l.b16 %v3551
    %v4307 = vunpack.c.h.b16 %v3551
    %v4308 = vunpack.c.l.b16 %v3552
    %v4309 = vunpack.c.h.b16 %v3552
    %v4310 = vunpack.c.l.b16 %v3553
    %v4311 = vunpack.c.h.b16 %v3553
    %v4312 = vunpack.c.l.b16 %v3554
    %v4313 = vunpack.c.h.b16 %v3554
    %v4314 = vunpack.c.l.b16 %v3555
    %v4315 = vunpack.c.h.b16 %v3555
    %v4316 = vunpack.c.l.b16 %v3556
    %v4317 = vunpack.c.h.b16 %v3556
    %v4318 = vunpack.c.l.b16 %v3557
    %v4319 = vunpack.c.h.b16 %v3557
    %v4320 = vunpack.c.l.b16 %v3558
    %v4321 = vunpack.c.h.b16 %v3558
    %v4322 = vunpack.c.l.b16 %v3559
    %v4323 = vunpack.c.h.b16 %v3559
    %v4324 = vunpack.c.l.b16 %v3560
    %v4325 = vunpack.c.h.b16 %v3560
    %v4326 = vunpack.c.l.b16 %v3561
    %v4327 = vunpack.c.h.b16 %v3561
    %v4328 = vunpack.c.l.b16 %v3562
    %v4329 = vunpack.c.h.b16 %v3562
    %v4330 = vunpack.c.l.b16 %v3563
    %v4331 = vunpack.c.h.b16 %v3563
    %v4332 = vunpack.c.l.b16 %v3564
    %v4333 = vunpack.c.h.b16 %v3564
    %v4334 = vunpack.c.l.b16 %v3565
    %v4335 = vunpack.c.h.b16 %v3565
    %v4336 = vunpack.c.l.b16 %v3566
    %v4337 = vunpack.c.h.b16 %v3566
    %v4338 = vunpack.c.l.b16 %v3567
    %v4339 = vunpack.c.h.b16 %v3567
    %v4340 = vunpack.c.l.b16 %v3568
    %v4341 = vunpack.c.h.b16 %v3568
    %v4342 = vunpack.c.l.b16 %v3569
    %v4343 = vunpack.c.h.b16 %v3569
    %v4344 = vunpack.c.l.b16 %v3570
    %v4345 = vunpack.c.h.b16 %v3570
    %v4346 = vunpack.c.l.b16 %v3571
    %v4347 = vunpack.c.h.b16 %v3571
    %v4348 = vunpack.c.l.b16 %v3572
    %v4349 = vunpack.c.h.b16 %v3572
    %v4350 = vunpack.c.l.b16 %v3573
    %v4351 = vunpack.c.h.b16 %v3573
    %v4352 = vpack.c.b16 %v3844, %v3840
    %v4353 = vpack.c.b16 %v3845, %v3841
    %v4354 = vpack.c.b16 %v3846, %v3842
    %v4355 = vpack.c.b16 %v3847, %v3843
    %v4356 = vpack.c.b16 %v3852, %v3848
    %v4357 = vpack.c.b16 %v3853, %v3849
    %v4358 = vpack.c.b16 %v3854, %v3850
    %v4359 = vpack.c.b16 %v3855, %v3851
    %v4360 = vpack.c.b16 %v3860, %v3856
    %v4361 = vpack.c.b16 %v3861, %v3857
    %v4362 = vpack.c.b16 %v3862, %v3858
    %v4363 = vpack.c.b16 %v3863, %v3859
    %v4364 = vpack.c.b16 %v3868, %v3864
    %v4365 = vpack.c.b16 %v3869, %v3865
    %v4366 = vpack.c.b16 %v3870, %v3866
    %v4367 = vpack.c.b16 %v3871, %v3867
    %v4368 = vpack.c.b16 %v3876, %v3872
    %v4369 = vpack.c.b16 %v3877, %v3873
    %v4370 = vpack.c.b16 %v3878, %v3874
    %v4371 = vpack.c.b16 %v3879, %v3875
    %v4372 = vpack.c.b16 %v3884, %v3880
    %v4373 = vpack.c.b16 %v3885, %v3881
    %v4374 = vpack.c.b16 %v3886, %v3882
    %v4375 = vpack.c.b16 %v3887, %v3883
    %v4376 = vpack.c.b16 %v3892, %v3888
    %v4377 = vpack.c.b16 %v3893, %v3889
    %v4378 = vpack.c.b16 %v3894, %v3890
    %v4379 = vpack.c.b16 %v3895, %v3891
    %v4380 = vpack.c.b16 %v3900, %v3896
    %v4381 = vpack.c.b16 %v3901, %v3897
    %v4382 = vpack.c.b16 %v3902, %v3898
    %v4383 = vpack.c.b16 %v3903, %v3899
    %v4384 = vpack.c.b16 %v3908, %v3904
    %v4385 = vpack.c.b16 %v3909, %v3905
    %v4386 = vpack.c.b16 %v3910, %v3906
    %v4387 = vpack.c.b16 %v3911, %v3907
    %v4388 = vpack.c.b16 %v3916, %v3912
    %v4389 = vpack.c.b16 %v3917, %v3913
    %v4390 = vpack.c.b16 %v3918, %v3914
    %v4391 = vpack.c.b16 %v3919, %v3915
    %v4392 = vpack.c.b16 %v3924, %v3920
    %v4393 = vpack.c.b16 %v3925, %v3921
    %v4394 = vpack.c.b16 %v3926, %v3922
    %v4395 = vpack.c.b16 %v3927, %v3923
    %v4396 = vpack.c.b16 %v3932, %v3928
    %v4397 = vpack.c.b16 %v3933, %v3929
    %v4398 = vpack.c.b16 %v3934, %v3930
    %v4399 = vpack.c.b16 %v3935, %v3931
    %v4400 = vpack.c.b16 %v3940, %v3936
    %v4401 = vpack.c.b16 %v3941, %v3937
    %v4402 = vpack.c.b16 %v3942, %v3938
    %v4403 = vpack.c.b16 %v3943, %v3939
    %v4404 = vpack.c.b16 %v3948, %v3944
    %v4405 = vpack.c.b16 %v3949, %v3945
    %v4406 = vpack.c.b16 %v3950, %v3946
    %v4407 = vpack.c.b16 %v3951, %v3947
    %v4408 = vpack.c.b16 %v3956, %v3952
    %v4409 = vpack.c.b16 %v3957, %v3953
    %v4410 = vpack.c.b16 %v3958, %v3954
    %v4411 = vpack.c.b16 %v3959, %v3955
    %v4412 = vpack.c.b16 %v3964, %v3960
    %v4413 = vpack.c.b16 %v3965, %v3961
    %v4414 = vpack.c.b16 %v3966, %v3962
    %v4415 = vpack.c.b16 %v3967, %v3963
    %v4416 = vpack.c.b16 %v3972, %v3968
    %v4417 = vpack.c.b16 %v3973, %v3969
    %v4418 = vpack.c.b16 %v3974, %v3970
    %v4419 = vpack.c.b16 %v3975, %v3971
    %v4420 = vpack.c.b16 %v3980, %v3976
    %v4421 = vpack.c.b16 %v3981, %v3977
    %v4422 = vpack.c.b16 %v3982, %v3978
    %v4423 = vpack.c.b16 %v3983, %v3979
    %v4424 = vpack.c.b16 %v3988, %v3984
    %v4425 = vpack.c.b16 %v3989, %v3985
    %v4426 = vpack.c.b16 %v3990, %v3986
    %v4427 = vpack.c.b16 %v3991, %v3987
    %v4428 = vpack.c.b16 %v3996, %v3992
    %v4429 = vpack.c.b16 %v3997, %v3993
    %v4430 = vpack.c.b16 %v3998, %v3994
    %v4431 = vpack.c.b16 %v3999, %v3995
    %v4432 = vpack.c.b16 %v4004, %v4000
    %v4433 = vpack.c.b16 %v4005, %v4001
    %v4434 = vpack.c.b16 %v4006, %v4002
    %v4435 = vpack.c.b16 %v4007, %v4003
    %v4436 = vpack.c.b16 %v4012, %v4008
    %v4437 = vpack.c.b16 %v4013, %v4009
    %v4438 = vpack.c.b16 %v4014, %v4010
    %v4439 = vpack.c.b16 %v4015, %v4011
    %v4440 = vpack.c.b16 %v4020, %v4016
    %v4441 = vpack.c.b16 %v4021, %v4017
    %v4442 = vpack.c.b16 %v4022, %v4018
    %v4443 = vpack.c.b16 %v4023, %v4019
    %v4444 = vpack.c.b16 %v4028, %v4024
    %v4445 = vpack.c.b16 %v4029, %v4025
    %v4446 = vpack.c.b16 %v4030, %v4026
    %v4447 = vpack.c.b16 %v4031, %v4027
    %v4448 = vpack.c.b16 %v4036, %v4032
    %v4449 = vpack.c.b16 %v4037, %v4033
    %v4450 = vpack.c.b16 %v4038, %v4034
    %v4451 = vpack.c.b16 %v4039, %v4035
    %v4452 = vpack.c.b16 %v4044, %v4040
    %v4453 = vpack.c.b16 %v4045, %v4041
    %v4454 = vpack.c.b16 %v4046, %v4042
    %v4455 = vpack.c.b16 %v4047, %v4043
    %v4456 = vpack.c.b16 %v4052, %v4048
    %v4457 = vpack.c.b16 %v4053, %v4049
    %v4458 = vpack.c.b16 %v4054, %v4050
    %v4459 = vpack.c.b16 %v4055, %v4051
    %v4460 = vpack.c.b16 %v4060, %v4056
    %v4461 = vpack.c.b16 %v4061, %v4057
    %v4462 = vpack.c.b16 %v4062, %v4058
    %v4463 = vpack.c.b16 %v4063, %v4059
    %v4464 = vpack.c.b16 %v4068, %v4064
    %v4465 = vpack.c.b16 %v4069, %v4065
    %v4466 = vpack.c.b16 %v4070, %v4066
    %v4467 = vpack.c.b16 %v4071, %v4067
    %v4468 = vpack.c.b16 %v4076, %v4072
    %v4469 = vpack.c.b16 %v4077, %v4073
    %v4470 = vpack.c.b16 %v4078, %v4074
    %v4471 = vpack.c.b16 %v4079, %v4075
    %v4472 = vpack.c.b16 %v4084, %v4080
    %v4473 = vpack.c.b16 %v4085, %v4081
    %v4474 = vpack.c.b16 %v4086, %v4082
    %v4475 = vpack.c.b16 %v4087, %v4083
    %v4476 = vpack.c.b16 %v4092, %v4088
    %v4477 = vpack.c.b16 %v4093, %v4089
    %v4478 = vpack.c.b16 %v4094, %v4090
    %v4479 = vpack.c.b16 %v4095, %v4091
    %v4480 = vpack.c.b16 %v4100, %v4096
    %v4481 = vpack.c.b16 %v4101, %v4097
    %v4482 = vpack.c.b16 %v4102, %v4098
    %v4483 = vpack.c.b16 %v4103, %v4099
    %v4484 = vpack.c.b16 %v4108, %v4104
    %v4485 = vpack.c.b16 %v4109, %v4105
    %v4486 = vpack.c.b16 %v4110, %v4106
    %v4487 = vpack.c.b16 %v4111, %v4107
    %v4488 = vpack.c.b16 %v4116, %v4112
    %v4489 = vpack.c.b16 %v4117, %v4113
    %v4490 = vpack.c.b16 %v4118, %v4114
    %v4491 = vpack.c.b16 %v4119, %v4115
    %v4492 = vpack.c.b16 %v4124, %v4120
    %v4493 = vpack.c.b16 %v4125, %v4121
    %v4494 = vpack.c.b16 %v4126, %v4122
    %v4495 = vpack.c.b16 %v4127, %v4123
    %v4496 = vpack.c.b16 %v4132, %v4128
    %v4497 = vpack.c.b16 %v4133, %v4129
    %v4498 = vpack.c.b16 %v4134, %v4130
    %v4499 = vpack.c.b16 %v4135, %v4131
    %v4500 = vpack.c.b16 %v4140, %v4136
    %v4501 = vpack.c.b16 %v4141, %v4137
    %v4502 = vpack.c.b16 %v4142, %v4138
    %v4503 = vpack.c.b16 %v4143, %v4139
    %v4504 = vpack.c.b16 %v4148, %v4144
    %v4505 = vpack.c.b16 %v4149, %v4145
    %v4506 = vpack.c.b16 %v4150, %v4146
    %v4507 = vpack.c.b16 %v4151, %v4147
    %v4508 = vpack.c.b16 %v4156, %v4152
    %v4509 = vpack.c.b16 %v4157, %v4153
    %v4510 = vpack.c.b16 %v4158, %v4154
    %v4511 = vpack.c.b16 %v4159, %v4155
    %v4512 = vpack.c.b16 %v4164, %v4160
    %v4513 = vpack.c.b16 %v4165, %v4161
    %v4514 = vpack.c.b16 %v4166, %v4162
    %v4515 = vpack.c.b16 %v4167, %v4163
    %v4516 = vpack.c.b16 %v4172, %v4168
    %v4517 = vpack.c.b16 %v4173, %v4169
    %v4518 = vpack.c.b16 %v4174, %v4170
    %v4519 = vpack.c.b16 %v4175, %v4171
    %v4520 = vpack.c.b16 %v4180, %v4176
    %v4521 = vpack.c.b16 %v4181, %v4177
    %v4522 = vpack.c.b16 %v4182, %v4178
    %v4523 = vpack.c.b16 %v4183, %v4179
    %v4524 = vpack.c.b16 %v4188, %v4184
    %v4525 = vpack.c.b16 %v4189, %v4185
    %v4526 = vpack.c.b16 %v4190, %v4186
    %v4527 = vpack.c.b16 %v4191, %v4187
    %v4528 = vpack.c.b16 %v4196, %v4192
    %v4529 = vpack.c.b16 %v4197, %v4193
    %v4530 = vpack.c.b16 %v4198, %v4194
    %v4531 = vpack.c.b16 %v4199, %v4195
    %v4532 = vpack.c.b16 %v4204, %v4200
    %v4533 = vpack.c.b16 %v4205, %v4201
    %v4534 = vpack.c.b16 %v4206, %v4202
    %v4535 = vpack.c.b16 %v4207, %v4203
    %v4536 = vpack.c.b16 %v4212, %v4208
    %v4537 = vpack.c.b16 %v4213, %v4209
    %v4538 = vpack.c.b16 %v4214, %v4210
    %v4539 = vpack.c.b16 %v4215, %v4211
    %v4540 = vpack.c.b16 %v4220, %v4216
    %v4541 = vpack.c.b16 %v4221, %v4217
    %v4542 = vpack.c.b16 %v4222, %v4218
    %v4543 = vpack.c.b16 %v4223, %v4219
    %v4544 = vpack.c.b16 %v4228, %v4224
    %v4545 = vpack.c.b16 %v4229, %v4225
    %v4546 = vpack.c.b16 %v4230, %v4226
    %v4547 = vpack.c.b16 %v4231, %v4227
    %v4548 = vpack.c.b16 %v4236, %v4232
    %v4549 = vpack.c.b16 %v4237, %v4233
    %v4550 = vpack.c.b16 %v4238, %v4234
    %v4551 = vpack.c.b16 %v4239, %v4235
    %v4552 = vpack.c.b16 %v4244, %v4240
    %v4553 = vpack.c.b16 %v4245, %v4241
    %v4554 = vpack.c.b16 %v4246, %v4242
    %v4555 = vpack.c.b16 %v4247, %v4243
    %v4556 = vpack.c.b16 %v4252, %v4248
    %v4557 = vpack.c.b16 %v4253, %v4249
    %v4558 = vpack.c.b16 %v4254, %v4250
    %v4559 = vpack.c.b16 %v4255, %v4251
    %v4560 = vpack.c.b16 %v4260, %v4256
    %v4561 = vpack.c.b16 %v4261, %v4257
    %v4562 = vpack.c.b16 %v4262, %v4258
    %v4563 = vpack.c.b16 %v4263, %v4259
    %v4564 = vpack.c.b16 %v4268, %v4264
    %v4565 = vpack.c.b16 %v4269, %v4265
    %v4566 = vpack.c.b16 %v4270, %v4266
    %v4567 = vpack.c.b16 %v4271, %v4267
    %v4568 = vpack.c.b16 %v4276, %v4272
    %v4569 = vpack.c.b16 %v4277, %v4273
    %v4570 = vpack.c.b16 %v4278, %v4274
    %v4571 = vpack.c.b16 %v4279, %v4275
    %v4572 = vpack.c.b16 %v4284, %v4280
    %v4573 = vpack.c.b16 %v4285, %v4281
    %v4574 = vpack.c.b16 %v4286, %v4282
    %v4575 = vpack.c.b16 %v4287, %v4283
    %v4576 = vpack.c.b16 %v4292, %v4288
    %v4577 = vpack.c.b16 %v4293, %v4289
    %v4578 = vpack.c.b16 %v4294, %v4290
    %v4579 = vpack.c.b16 %v4295, %v4291
    %v4580 = vpack.c.b16 %v4300, %v4296
    %v4581 = vpack.c.b16 %v4301, %v4297
    %v4582 = vpack.c.b16 %v4302, %v4298
    %v4583 = vpack.c.b16 %v4303, %v4299
    %v4584 = vpack.c.b16 %v4308, %v4304
    %v4585 = vpack.c.b16 %v4309, %v4305
    %v4586 = vpack.c.b16 %v4310, %v4306
    %v4587 = vpack.c.b16 %v4311, %v4307
    %v4588 = vpack.c.b16 %v4316, %v4312
    %v4589 = vpack.c.b16 %v4317, %v4313
    %v4590 = vpack.c.b16 %v4318, %v4314
    %v4591 = vpack.c.b16 %v4319, %v4315
    %v4592 = vpack.c.b16 %v4324, %v4320
    %v4593 = vpack.c.b16 %v4325, %v4321
    %v4594 = vpack.c.b16 %v4326, %v4322
    %v4595 = vpack.c.b16 %v4327, %v4323
    %v4596 = vpack.c.b16 %v4332, %v4328
    %v4597 = vpack.c.b16 %v4333, %v4329
    %v4598 = vpack.c.b16 %v4334, %v4330
    %v4599 = vpack.c.b16 %v4335, %v4331
    %v4600 = vpack.c.b16 %v4340, %v4336
    %v4601 = vpack.c.b16 %v4341, %v4337
    %v4602 = vpack.c.b16 %v4342, %v4338
    %v4603 = vpack.c.b16 %v4343, %v4339
    %v4604 = vpack.c.b16 %v4348, %v4344
    %v4605 = vpack.c.b16 %v4349, %v4345
    %v4606 = vpack.c.b16 %v4350, %v4346
    %v4607 = vpack.c.b16 %v4351, %v4347
    %4864 = vmatpush.bf16.msra.mxu0 %v4380
    %4865 = vmatpush.bf16.msra.mxu0 %v4376
    %4866 = vmatpush.bf16.msra.mxu0 %v4372
    %4867 = vmatpush.bf16.msra.mxu0 %v4368
    %4868 = vmatpush.bf16.msra.mxu0 %v4364
    %4869 = vmatpush.bf16.msra.mxu0 %v4360
    %4870 = vmatpush.bf16.msra.mxu0 %v4356
    %4871 = vmatpush.bf16.msra.mxu0 %v4352
    %4872 = vmatmul.bf16.gmra.mxu0 %v3310
    %v4873 = vpop.f32.mrf.mxu0
    %v4874 = vadd.f32 %v3576, %v4873
    %v4875 = vpop.f32.mrf.mxu0
    %4876 = vdwg.mxu0
    %4877 = vmatpush.bf16.msra.mxu0 %v4412
    %4878 = vmatpush.bf16.msra.mxu0 %v4408
    %4879 = vmatpush.bf16.msra.mxu0 %v4404
    %4880 = vmatpush.bf16.msra.mxu0 %v4400
    %4881 = vmatpush.bf16.msra.mxu0 %v4396
    %4882 = vmatpush.bf16.msra.mxu0 %v4392
    %4883 = vmatpush.bf16.msra.mxu0 %v4388
    %4884 = vmatpush.bf16.msra.mxu0 %v4384
    %4885 = vmatmul.bf16.gmra.mxu0 %v3311
    %v4886 = vpop.f32.mrf.mxu0
    %v4887 = vadd.f32 %v4874, %v4886
    %v4888 = vpop.f32.mrf.mxu0
    %4889 = vdwg.mxu0
    %4890 = vmatpush.bf16.msra.mxu0 %v4444
    %4891 = vmatpush.bf16.msra.mxu0 %v4440
    %4892 = vmatpush.bf16.msra.mxu0 %v4436
    %4893 = vmatpush.bf16.msra.mxu0 %v4432
    %4894 = vmatpush.bf16.msra.mxu0 %v4428
    %4895 = vmatpush.bf16.msra.mxu0 %v4424
    %4896 = vmatpush.bf16.msra.mxu0 %v4420
    %4897 = vmatpush.bf16.msra.mxu0 %v4416
    %4898 = vmatmul.bf16.gmra.mxu0 %v3312
    %v4899 = vpop.f32.mrf.mxu0
    %v4900 = vadd.f32 %v4887, %v4899
    %v4901 = vpop.f32.mrf.mxu0
    %4902 = vdwg.mxu0
    %4903 = vmatpush.bf16.msra.mxu0 %v4476
    %4904 = vmatpush.bf16.msra.mxu0 %v4472
    %4905 = vmatpush.bf16.msra.mxu0 %v4468
    %4906 = vmatpush.bf16.msra.mxu0 %v4464
    %4907 = vmatpush.bf16.msra.mxu0 %v4460
    %4908 = vmatpush.bf16.msra.mxu0 %v4456
    %4909 = vmatpush.bf16.msra.mxu0 %v4452
    %4910 = vmatpush.bf16.msra.mxu0 %v4448
    %4911 = vmatmul.bf16.gmra.mxu0 %v3313
    %v4912 = vpop.f32.mrf.mxu0
    %v4913 = vadd.f32 %v4900, %v4912
    %v4914 = vpop.f32.mrf.mxu0
    %4915 = vdwg.mxu0
    %4916 = vmatpush.bf16.msra.mxu0 %v4508
    %4917 = vmatpush.bf16.msra.mxu0 %v4504
    %4918 = vmatpush.bf16.msra.mxu0 %v4500
    %4919 = vmatpush.bf16.msra.mxu0 %v4496
    %4920 = vmatpush.bf16.msra.mxu0 %v4492
    %4921 = vmatpush.bf16.msra.mxu0 %v4488
    %4922 = vmatpush.bf16.msra.mxu0 %v4484
    %4923 = vmatpush.bf16.msra.mxu0 %v4480
    %4924 = vmatmul.bf16.gmra.mxu0 %v3314
    %v4925 = vpop.f32.mrf.mxu0
    %v4926 = vadd.f32 %v4913, %v4925
    %v4927 = vpop.f32.mrf.mxu0
    %4928 = vdwg.mxu0
    %4929 = vmatpush.bf16.msra.mxu0 %v4540
    %4930 = vmatpush.bf16.msra.mxu0 %v4536
    %4931 = vmatpush.bf16.msra.mxu0 %v4532
    %4932 = vmatpush.bf16.msra.mxu0 %v4528
    %4933 = vmatpush.bf16.msra.mxu0 %v4524
    %4934 = vmatpush.bf16.msra.mxu0 %v4520
    %4935 = vmatpush.bf16.msra.mxu0 %v4516
    %4936 = vmatpush.bf16.msra.mxu0 %v4512
    %4937 = vmatmul.bf16.gmra.mxu0 %v3315
    %v4938 = vpop.f32.mrf.mxu0
    %v4939 = vadd.f32 %v4926, %v4938
    %v4940 = vpop.f32.mrf.mxu0
    %4941 = vdwg.mxu0
    %4942 = vmatpush.bf16.msra.mxu0 %v4572
    %4943 = vmatpush.bf16.msra.mxu0 %v4568
    %4944 = vmatpush.bf16.msra.mxu0 %v4564
    %4945 = vmatpush.bf16.msra.mxu0 %v4560
    %4946 = vmatpush.bf16.msra.mxu0 %v4556
    %4947 = vmatpush.bf16.msra.mxu0 %v4552
    %4948 = vmatpush.bf16.msra.mxu0 %v4548
    %4949 = vmatpush.bf16.msra.mxu0 %v4544
    %4950 = vmatmul.bf16.gmra.mxu0 %v3316
    %v4951 = vpop.f32.mrf.mxu0
    %v4952 = vadd.f32 %v4939, %v4951
    %v4953 = vpop.f32.mrf.mxu0
    %4954 = vdwg.mxu0
    %4955 = vmatpush.bf16.msra.mxu0 %v4604
    %4956 = vmatpush.bf16.msra.mxu0 %v4600
    %4957 = vmatpush.bf16.msra.mxu0 %v4596
    %4958 = vmatpush.bf16.msra.mxu0 %v4592
    %4959 = vmatpush.bf16.msra.mxu0 %v4588
    %4960 = vmatpush.bf16.msra.mxu0 %v4584
    %4961 = vmatpush.bf16.msra.mxu0 %v4580
    %4962 = vmatpush.bf16.msra.mxu0 %v4576
    %4963 = vmatmul.bf16.gmra.mxu0 %v3317
    %v4964 = vpop.f32.mrf.mxu0
    %v4965 = vadd.f32 %v4952, %v4964
    %v4966 = vpop.f32.mrf.mxu0
    %4967 = vdwg.mxu0
    %4968 = vmatpush.bf16.msra.mxu0 %v4381
    %4969 = vmatpush.bf16.msra.mxu0 %v4377
    %4970 = vmatpush.bf16.msra.mxu0 %v4373
    %4971 = vmatpush.bf16.msra.mxu0 %v4369
    %4972 = vmatpush.bf16.msra.mxu0 %v4365
    %4973 = vmatpush.bf16.msra.mxu0 %v4361
    %4974 = vmatpush.bf16.msra.mxu0 %v4357
    %4975 = vmatpush.bf16.msra.mxu0 %v4353
    %4976 = vmatmul.bf16.gmra.mxu0 %v3310
    %v4977 = vpop.f32.mrf.mxu0
    %v4978 = vadd.f32 %v3577, %v4977
    %v4979 = vpop.f32.mrf.mxu0
    %4980 = vdwg.mxu0
    %4981 = vmatpush.bf16.msra.mxu0 %v4413
    %4982 = vmatpush.bf16.msra.mxu0 %v4409
    %4983 = vmatpush.bf16.msra.mxu0 %v4405
    %4984 = vmatpush.bf16.msra.mxu0 %v4401
    %4985 = vmatpush.bf16.msra.mxu0 %v4397
    %4986 = vmatpush.bf16.msra.mxu0 %v4393
    %4987 = vmatpush.bf16.msra.mxu0 %v4389
    %4988 = vmatpush.bf16.msra.mxu0 %v4385
    %4989 = vmatmul.bf16.gmra.mxu0 %v3311
    %v4990 = vpop.f32.mrf.mxu0
    %v4991 = vadd.f32 %v4978, %v4990
    %v4992 = vpop.f32.mrf.mxu0
    %4993 = vdwg.mxu0
    %4994 = vmatpush.bf16.msra.mxu0 %v4445
    %4995 = vmatpush.bf16.msra.mxu0 %v4441
    %4996 = vmatpush.bf16.msra.mxu0 %v4437
    %4997 = vmatpush.bf16.msra.mxu0 %v4433
    %4998 = vmatpush.bf16.msra.mxu0 %v4429
    %4999 = vmatpush.bf16.msra.mxu0 %v4425
    %5000 = vmatpush.bf16.msra.mxu0 %v4421
    %5001 = vmatpush.bf16.msra.mxu0 %v4417
    %5002 = vmatmul.bf16.gmra.mxu0 %v3312
    %v5003 = vpop.f32.mrf.mxu0
    %v5004 = vadd.f32 %v4991, %v5003
    %v5005 = vpop.f32.mrf.mxu0
    %5006 = vdwg.mxu0
    %5007 = vmatpush.bf16.msra.mxu0 %v4477
    %5008 = vmatpush.bf16.msra.mxu0 %v4473
    %5009 = vmatpush.bf16.msra.mxu0 %v4469
    %5010 = vmatpush.bf16.msra.mxu0 %v4465
    %5011 = vmatpush.bf16.msra.mxu0 %v4461
    %5012 = vmatpush.bf16.msra.mxu0 %v4457
    %5013 = vmatpush.bf16.msra.mxu0 %v4453
    %5014 = vmatpush.bf16.msra.mxu0 %v4449
    %5015 = vmatmul.bf16.gmra.mxu0 %v3313
    %v5016 = vpop.f32.mrf.mxu0
    %v5017 = vadd.f32 %v5004, %v5016
    %v5018 = vpop.f32.mrf.mxu0
    %5019 = vdwg.mxu0
    %5020 = vmatpush.bf16.msra.mxu0 %v4509
    %5021 = vmatpush.bf16.msra.mxu0 %v4505
    %5022 = vmatpush.bf16.msra.mxu0 %v4501
    %5023 = vmatpush.bf16.msra.mxu0 %v4497
    %5024 = vmatpush.bf16.msra.mxu0 %v4493
    %5025 = vmatpush.bf16.msra.mxu0 %v4489
    %5026 = vmatpush.bf16.msra.mxu0 %v4485
    %5027 = vmatpush.bf16.msra.mxu0 %v4481
    %5028 = vmatmul.bf16.gmra.mxu0 %v3314
    %v5029 = vpop.f32.mrf.mxu0
    %v5030 = vadd.f32 %v5017, %v5029
    %v5031 = vpop.f32.mrf.mxu0
    %5032 = vdwg.mxu0
    %5033 = vmatpush.bf16.msra.mxu0 %v4541
    %5034 = vmatpush.bf16.msra.mxu0 %v4537
    %5035 = vmatpush.bf16.msra.mxu0 %v4533
    %5036 = vmatpush.bf16.msra.mxu0 %v4529
    %5037 = vmatpush.bf16.msra.mxu0 %v4525
    %5038 = vmatpush.bf16.msra.mxu0 %v4521
    %5039 = vmatpush.bf16.msra.mxu0 %v4517
    %5040 = vmatpush.bf16.msra.mxu0 %v4513
    %5041 = vmatmul.bf16.gmra.mxu0 %v3315
    %v5042 = vpop.f32.mrf.mxu0
    %v5043 = vadd.f32 %v5030, %v5042
    %v5044 = vpop.f32.mrf.mxu0
    %5045 = vdwg.mxu0
    %5046 = vmatpush.bf16.msra.mxu0 %v4573
    %5047 = vmatpush.bf16.msra.mxu0 %v4569
    %5048 = vmatpush.bf16.msra.mxu0 %v4565
    %5049 = vmatpush.bf16.msra.mxu0 %v4561
    %5050 = vmatpush.bf16.msra.mxu0 %v4557
    %5051 = vmatpush.bf16.msra.mxu0 %v4553
    %5052 = vmatpush.bf16.msra.mxu0 %v4549
    %5053 = vmatpush.bf16.msra.mxu0 %v4545
    %5054 = vmatmul.bf16.gmra.mxu0 %v3316
    %v5055 = vpop.f32.mrf.mxu0
    %v5056 = vadd.f32 %v5043, %v5055
    %v5057 = vpop.f32.mrf.mxu0
    %5058 = vdwg.mxu0
    %5059 = vmatpush.bf16.msra.mxu0 %v4605
    %5060 = vmatpush.bf16.msra.mxu0 %v4601
    %5061 = vmatpush.bf16.msra.mxu0 %v4597
    %5062 = vmatpush.bf16.msra.mxu0 %v4593
    %5063 = vmatpush.bf16.msra.mxu0 %v4589
    %5064 = vmatpush.bf16.msra.mxu0 %v4585
    %5065 = vmatpush.bf16.msra.mxu0 %v4581
    %5066 = vmatpush.bf16.msra.mxu0 %v4577
    %5067 = vmatmul.bf16.gmra.mxu0 %v3317
    %v5068 = vpop.f32.mrf.mxu0
    %v5069 = vadd.f32 %v5056, %v5068
    %v5070 = vpop.f32.mrf.mxu0
    %5071 = vdwg.mxu0
    %5072 = vmatpush.bf16.msra.mxu0 %v4382
    %5073 = vmatpush.bf16.msra.mxu0 %v4378
    %5074 = vmatpush.bf16.msra.mxu0 %v4374
    %5075 = vmatpush.bf16.msra.mxu0 %v4370
    %5076 = vmatpush.bf16.msra.mxu0 %v4366
    %5077 = vmatpush.bf16.msra.mxu0 %v4362
    %5078 = vmatpush.bf16.msra.mxu0 %v4358
    %5079 = vmatpush.bf16.msra.mxu0 %v4354
    %5080 = vmatmul.bf16.gmra.mxu0 %v3310
    %v5081 = vpop.f32.mrf.mxu0
    %v5082 = vadd.f32 %v3578, %v5081
    %v5083 = vpop.f32.mrf.mxu0
    %5084 = vdwg.mxu0
    %5085 = vmatpush.bf16.msra.mxu0 %v4414
    %5086 = vmatpush.bf16.msra.mxu0 %v4410
    %5087 = vmatpush.bf16.msra.mxu0 %v4406
    %5088 = vmatpush.bf16.msra.mxu0 %v4402
    %5089 = vmatpush.bf16.msra.mxu0 %v4398
    %5090 = vmatpush.bf16.msra.mxu0 %v4394
    %5091 = vmatpush.bf16.msra.mxu0 %v4390
    %5092 = vmatpush.bf16.msra.mxu0 %v4386
    %5093 = vmatmul.bf16.gmra.mxu0 %v3311
    %v5094 = vpop.f32.mrf.mxu0
    %v5095 = vadd.f32 %v5082, %v5094
    %v5096 = vpop.f32.mrf.mxu0
    %5097 = vdwg.mxu0
    %5098 = vmatpush.bf16.msra.mxu0 %v4446
    %5099 = vmatpush.bf16.msra.mxu0 %v4442
    %5100 = vmatpush.bf16.msra.mxu0 %v4438
    %5101 = vmatpush.bf16.msra.mxu0 %v4434
    %5102 = vmatpush.bf16.msra.mxu0 %v4430
    %5103 = vmatpush.bf16.msra.mxu0 %v4426
    %5104 = vmatpush.bf16.msra.mxu0 %v4422
    %5105 = vmatpush.bf16.msra.mxu0 %v4418
    %5106 = vmatmul.bf16.gmra.mxu0 %v3312
    %v5107 = vpop.f32.mrf.mxu0
    %v5108 = vadd.f32 %v5095, %v5107
    %v5109 = vpop.f32.mrf.mxu0
    %5110 = vdwg.mxu0
    %5111 = vmatpush.bf16.msra.mxu0 %v4478
    %5112 = vmatpush.bf16.msra.mxu0 %v4474
    %5113 = vmatpush.bf16.msra.mxu0 %v4470
    %5114 = vmatpush.bf16.msra.mxu0 %v4466
    %5115 = vmatpush.bf16.msra.mxu0 %v4462
    %5116 = vmatpush.bf16.msra.mxu0 %v4458
    %5117 = vmatpush.bf16.msra.mxu0 %v4454
    %5118 = vmatpush.bf16.msra.mxu0 %v4450
    %5119 = vmatmul.bf16.gmra.mxu0 %v3313
    %v5120 = vpop.f32.mrf.mxu0
    %v5121 = vadd.f32 %v5108, %v5120
    %v5122 = vpop.f32.mrf.mxu0
    %5123 = vdwg.mxu0
    %5124 = vmatpush.bf16.msra.mxu0 %v4510
    %5125 = vmatpush.bf16.msra.mxu0 %v4506
    %5126 = vmatpush.bf16.msra.mxu0 %v4502
    %5127 = vmatpush.bf16.msra.mxu0 %v4498
    %5128 = vmatpush.bf16.msra.mxu0 %v4494
    %5129 = vmatpush.bf16.msra.mxu0 %v4490
    %5130 = vmatpush.bf16.msra.mxu0 %v4486
    %5131 = vmatpush.bf16.msra.mxu0 %v4482
    %5132 = vmatmul.bf16.gmra.mxu0 %v3314
    %v5133 = vpop.f32.mrf.mxu0
    %v5134 = vadd.f32 %v5121, %v5133
    %v5135 = vpop.f32.mrf.mxu0
    %5136 = vdwg.mxu0
    %5137 = vmatpush.bf16.msra.mxu0 %v4542
    %5138 = vmatpush.bf16.msra.mxu0 %v4538
    %5139 = vmatpush.bf16.msra.mxu0 %v4534
    %5140 = vmatpush.bf16.msra.mxu0 %v4530
    %5141 = vmatpush.bf16.msra.mxu0 %v4526
    %5142 = vmatpush.bf16.msra.mxu0 %v4522
    %5143 = vmatpush.bf16.msra.mxu0 %v4518
    %5144 = vmatpush.bf16.msra.mxu0 %v4514
    %5145 = vmatmul.bf16.gmra.mxu0 %v3315
    %v5146 = vpop.f32.mrf.mxu0
    %v5147 = vadd.f32 %v5134, %v5146
    %v5148 = vpop.f32.mrf.mxu0
    %5149 = vdwg.mxu0
    %5150 = vmatpush.bf16.msra.mxu0 %v4574
    %5151 = vmatpush.bf16.msra.mxu0 %v4570
    %5152 = vmatpush.bf16.msra.mxu0 %v4566
    %5153 = vmatpush.bf16.msra.mxu0 %v4562
    %5154 = vmatpush.bf16.msra.mxu0 %v4558
    %5155 = vmatpush.bf16.msra.mxu0 %v4554
    %5156 = vmatpush.bf16.msra.mxu0 %v4550
    %5157 = vmatpush.bf16.msra.mxu0 %v4546
    %5158 = vmatmul.bf16.gmra.mxu0 %v3316
    %v5159 = vpop.f32.mrf.mxu0
    %v5160 = vadd.f32 %v5147, %v5159
    %v5161 = vpop.f32.mrf.mxu0
    %5162 = vdwg.mxu0
    %5163 = vmatpush.bf16.msra.mxu0 %v4606
    %5164 = vmatpush.bf16.msra.mxu0 %v4602
    %5165 = vmatpush.bf16.msra.mxu0 %v4598
    %5166 = vmatpush.bf16.msra.mxu0 %v4594
    %5167 = vmatpush.bf16.msra.mxu0 %v4590
    %5168 = vmatpush.bf16.msra.mxu0 %v4586
    %5169 = vmatpush.bf16.msra.mxu0 %v4582
    %5170 = vmatpush.bf16.msra.mxu0 %v4578
    %5171 = vmatmul.bf16.gmra.mxu0 %v3317
    %v5172 = vpop.f32.mrf.mxu0
    %v5173 = vadd.f32 %v5160, %v5172
    %v5174 = vpop.f32.mrf.mxu0
    %5175 = vdwg.mxu0
    %5176 = vmatpush.bf16.msra.mxu0 %v4383
    %5177 = vmatpush.bf16.msra.mxu0 %v4379
    %5178 = vmatpush.bf16.msra.mxu0 %v4375
    %5179 = vmatpush.bf16.msra.mxu0 %v4371
    %5180 = vmatpush.bf16.msra.mxu0 %v4367
    %5181 = vmatpush.bf16.msra.mxu0 %v4363
    %5182 = vmatpush.bf16.msra.mxu0 %v4359
    %5183 = vmatpush.bf16.msra.mxu0 %v4355
    %5184 = vmatmul.bf16.gmra.mxu0 %v3310
    %v5185 = vpop.f32.mrf.mxu0
    %v5186 = vadd.f32 %v3579, %v5185
    %v5187 = vpop.f32.mrf.mxu0
    %5188 = vdwg.mxu0
    %5189 = vmatpush.bf16.msra.mxu0 %v4415
    %5190 = vmatpush.bf16.msra.mxu0 %v4411
    %5191 = vmatpush.bf16.msra.mxu0 %v4407
    %5192 = vmatpush.bf16.msra.mxu0 %v4403
    %5193 = vmatpush.bf16.msra.mxu0 %v4399
    %5194 = vmatpush.bf16.msra.mxu0 %v4395
    %5195 = vmatpush.bf16.msra.mxu0 %v4391
    %5196 = vmatpush.bf16.msra.mxu0 %v4387
    %5197 = vmatmul.bf16.gmra.mxu0 %v3311
    %v5198 = vpop.f32.mrf.mxu0
    %v5199 = vadd.f32 %v5186, %v5198
    %v5200 = vpop.f32.mrf.mxu0
    %5201 = vdwg.mxu0
    %5202 = vmatpush.bf16.msra.mxu0 %v4447
    %5203 = vmatpush.bf16.msra.mxu0 %v4443
    %5204 = vmatpush.bf16.msra.mxu0 %v4439
    %5205 = vmatpush.bf16.msra.mxu0 %v4435
    %5206 = vmatpush.bf16.msra.mxu0 %v4431
    %5207 = vmatpush.bf16.msra.mxu0 %v4427
    %5208 = vmatpush.bf16.msra.mxu0 %v4423
    %5209 = vmatpush.bf16.msra.mxu0 %v4419
    %5210 = vmatmul.bf16.gmra.mxu0 %v3312
    %v5211 = vpop.f32.mrf.mxu0
    %v5212 = vadd.f32 %v5199, %v5211
    %v5213 = vpop.f32.mrf.mxu0
    %5214 = vdwg.mxu0
    %5215 = vmatpush.bf16.msra.mxu0 %v4479
    %5216 = vmatpush.bf16.msra.mxu0 %v4475
    %5217 = vmatpush.bf16.msra.mxu0 %v4471
    %5218 = vmatpush.bf16.msra.mxu0 %v4467
    %5219 = vmatpush.bf16.msra.mxu0 %v4463
    %5220 = vmatpush.bf16.msra.mxu0 %v4459
    %5221 = vmatpush.bf16.msra.mxu0 %v4455
    %5222 = vmatpush.bf16.msra.mxu0 %v4451
    %5223 = vmatmul.bf16.gmra.mxu0 %v3313
    %v5224 = vpop.f32.mrf.mxu0
    %v5225 = vadd.f32 %v5212, %v5224
    %v5226 = vpop.f32.mrf.mxu0
    %5227 = vdwg.mxu0
    %5228 = vmatpush.bf16.msra.mxu0 %v4511
    %5229 = vmatpush.bf16.msra.mxu0 %v4507
    %5230 = vmatpush.bf16.msra.mxu0 %v4503
    %5231 = vmatpush.bf16.msra.mxu0 %v4499
    %5232 = vmatpush.bf16.msra.mxu0 %v4495
    %5233 = vmatpush.bf16.msra.mxu0 %v4491
    %5234 = vmatpush.bf16.msra.mxu0 %v4487
    %5235 = vmatpush.bf16.msra.mxu0 %v4483
    %5236 = vmatmul.bf16.gmra.mxu0 %v3314
    %v5237 = vpop.f32.mrf.mxu0
    %v5238 = vadd.f32 %v5225, %v5237
    %v5239 = vpop.f32.mrf.mxu0
    %5240 = vdwg.mxu0
    %5241 = vmatpush.bf16.msra.mxu0 %v4543
    %5242 = vmatpush.bf16.msra.mxu0 %v4539
    %5243 = vmatpush.bf16.msra.mxu0 %v4535
    %5244 = vmatpush.bf16.msra.mxu0 %v4531
    %5245 = vmatpush.bf16.msra.mxu0 %v4527
    %5246 = vmatpush.bf16.msra.mxu0 %v4523
    %5247 = vmatpush.bf16.msra.mxu0 %v4519
    %5248 = vmatpush.bf16.msra.mxu0 %v4515
    %5249 = vmatmul.bf16.gmra.mxu0 %v3315
    %v5250 = vpop.f32.mrf.mxu0
    %v5251 = vadd.f32 %v5238, %v5250
    %v5252 = vpop.f32.mrf.mxu0
    %5253 = vdwg.mxu0
    %5254 = vmatpush.bf16.msra.mxu0 %v4575
    %5255 = vmatpush.bf16.msra.mxu0 %v4571
    %5256 = vmatpush.bf16.msra.mxu0 %v4567
    %5257 = vmatpush.bf16.msra.mxu0 %v4563
    %5258 = vmatpush.bf16.msra.mxu0 %v4559
    %5259 = vmatpush.bf16.msra.mxu0 %v4555
    %5260 = vmatpush.bf16.msra.mxu0 %v4551
    %5261 = vmatpush.bf16.msra.mxu0 %v4547
    %5262 = vmatmul.bf16.gmra.mxu0 %v3316
    %v5263 = vpop.f32.mrf.mxu0
    %v5264 = vadd.f32 %v5251, %v5263
    %v5265 = vpop.f32.mrf.mxu0
    %5266 = vdwg.mxu0
    %5267 = vmatpush.bf16.msra.mxu0 %v4607
    %5268 = vmatpush.bf16.msra.mxu0 %v4603
    %5269 = vmatpush.bf16.msra.mxu0 %v4599
    %5270 = vmatpush.bf16.msra.mxu0 %v4595
    %5271 = vmatpush.bf16.msra.mxu0 %v4591
    %5272 = vmatpush.bf16.msra.mxu0 %v4587
    %5273 = vmatpush.bf16.msra.mxu0 %v4583
    %5274 = vmatpush.bf16.msra.mxu0 %v4579
    %5275 = vmatmul.bf16.gmra.mxu0 %v3317
    %v5276 = vpop.f32.mrf.mxu0
    %v5277 = vadd.f32 %v5264, %v5276
    %v5278 = vpop.f32.mrf.mxu0
    %5279 = vdwg.mxu0
    %v5280 = vmax.f32 %v4965, 0.0
    %v5281 = vmax.f32 %v5069, 0.0
    %v5282 = vmax.f32 %v5173, 0.0
    %v5283 = vmax.f32 %v5277, 0.0
    %v5284 = vpack.c.bf16 %v5280, %v5280
    %v5285 = vpack.c.bf16 %v5281, %v5281
    %v5286 = vpack.c.bf16 %v5282, %v5282
    %v5287 = vpack.c.bf16 %v5283, %v5283
    %v5288 = vld [vmem:[#allocation10] sm:$0xff]
    %v5289 = vld [vmem:[#allocation10 + $0x8] sm:$0xff]
    %v5290 = vld [vmem:[#allocation10 + $0x10] sm:$0xff]
    %v5291 = vld [vmem:[#allocation10 + $0x18] sm:$0xff]
    %v5292 = vld [vmem:[#allocation10 + $0x20] sm:$0xff]
    %v5293 = vld [vmem:[#allocation10 + $0x28] sm:$0xff]
    %v5294 = vld [vmem:[#allocation10 + $0x30] sm:$0xff]
    %v5295 = vld [vmem:[#allocation10 + $0x38] sm:$0xff]
    %v5296 = vld [vmem:[#allocation10 + $0x40] sm:$0xff]
    %v5297 = vld [vmem:[#allocation10 + $0x48] sm:$0xff]
    %v5298 = vld [vmem:[#allocation10 + $0x50] sm:$0xff]
    %v5299 = vld [vmem:[#allocation10 + $0x58] sm:$0xff]
    %v5300 = vld [vmem:[#allocation10 + $0x60] sm:$0xff]
    %v5301 = vld [vmem:[#allocation10 + $0x68] sm:$0xff]
    %v5302 = vld [vmem:[#allocation10 + $0x70] sm:$0xff]
    %v5303 = vld [vmem:[#allocation10 + $0x78] sm:$0xff]
    %v5304 = vld [vmem:[#allocation10 + $0x80] sm:$0xff]
    %v5305 = vld [vmem:[#allocation10 + $0x88] sm:$0xff]
    %v5306 = vld [vmem:[#allocation10 + $0x90] sm:$0xff]
    %v5307 = vld [vmem:[#allocation10 + $0x98] sm:$0xff]
    %v5308 = vld [vmem:[#allocation10 + $0xa0] sm:$0xff]
    %v5309 = vld [vmem:[#allocation10 + $0xa8] sm:$0xff]
    %v5310 = vld [vmem:[#allocation10 + $0xb0] sm:$0xff]
    %v5311 = vld [vmem:[#allocation10 + $0xb8] sm:$0xff]
    %v5312 = vld [vmem:[#allocation10 + $0xc0] sm:$0xff]
    %v5313 = vld [vmem:[#allocation10 + $0xc8] sm:$0xff]
    %v5314 = vld [vmem:[#allocation10 + $0xd0] sm:$0xff]
    %v5315 = vld [vmem:[#allocation10 + $0xd8] sm:$0xff]
    %v5316 = vld [vmem:[#allocation10 + $0xe0] sm:$0xff]
    %v5317 = vld [vmem:[#allocation10 + $0xe8] sm:$0xff]
    %v5318 = vld [vmem:[#allocation10 + $0xf0] sm:$0xff]
    %v5319 = vld [vmem:[#allocation10 + $0xf8] sm:$0xff]
    %v5320 = vld [vmem:[#allocation10 + $0x100] sm:$0xff]
    %v5321 = vld [vmem:[#allocation10 + $0x108] sm:$0xff]
    %v5322 = vld [vmem:[#allocation10 + $0x110] sm:$0xff]
    %v5323 = vld [vmem:[#allocation10 + $0x118] sm:$0xff]
    %v5324 = vld [vmem:[#allocation10 + $0x120] sm:$0xff]
    %v5325 = vld [vmem:[#allocation10 + $0x128] sm:$0xff]
    %v5326 = vld [vmem:[#allocation10 + $0x130] sm:$0xff]
    %v5327 = vld [vmem:[#allocation10 + $0x138] sm:$0xff]
    %v5328 = vld [vmem:[#allocation10 + $0x140] sm:$0xff]
    %v5329 = vld [vmem:[#allocation10 + $0x148] sm:$0xff]
    %v5330 = vld [vmem:[#allocation10 + $0x150] sm:$0xff]
    %v5331 = vld [vmem:[#allocation10 + $0x158] sm:$0xff]
    %v5332 = vld [vmem:[#allocation10 + $0x160] sm:$0xff]
    %v5333 = vld [vmem:[#allocation10 + $0x168] sm:$0xff]
    %v5334 = vld [vmem:[#allocation10 + $0x170] sm:$0xff]
    %v5335 = vld [vmem:[#allocation10 + $0x178] sm:$0xff]
    %v5336 = vld [vmem:[#allocation10 + $0x180] sm:$0xff]
    %v5337 = vld [vmem:[#allocation10 + $0x188] sm:$0xff]
    %v5338 = vld [vmem:[#allocation10 + $0x190] sm:$0xff]
    %v5339 = vld [vmem:[#allocation10 + $0x198] sm:$0xff]
    %v5340 = vld [vmem:[#allocation10 + $0x1a0] sm:$0xff]
    %v5341 = vld [vmem:[#allocation10 + $0x1a8] sm:$0xff]
    %v5342 = vld [vmem:[#allocation10 + $0x1b0] sm:$0xff]
    %v5343 = vld [vmem:[#allocation10 + $0x1b8] sm:$0xff]
    %v5344 = vld [vmem:[#allocation10 + $0x1c0] sm:$0xff]
    %v5345 = vld [vmem:[#allocation10 + $0x1c8] sm:$0xff]
    %v5346 = vld [vmem:[#allocation10 + $0x1d0] sm:$0xff]
    %v5347 = vld [vmem:[#allocation10 + $0x1d8] sm:$0xff]
    %v5348 = vld [vmem:[#allocation10 + $0x1e0] sm:$0xff]
    %v5349 = vld [vmem:[#allocation10 + $0x1e8] sm:$0xff]
    %v5350 = vld [vmem:[#allocation10 + $0x1f0] sm:$0xff]
    %v5351 = vld [vmem:[#allocation10 + $0x1f8] sm:$0xff]
    %v5352 = vld [vmem:[#allocation11] sm:$0x3]
    %v5354 = vperm.slane %v5352, 0
    %v5355 = vperm.slane %v5352, 1
    %v5422 = vunpack.c.l.b16 %v5288
    %v5423 = vunpack.c.h.b16 %v5288
    %v5424 = vunpack.c.l.b16 %v5289
    %v5425 = vunpack.c.h.b16 %v5289
    %v5426 = vunpack.c.l.b16 %v5290
    %v5427 = vunpack.c.h.b16 %v5290
    %v5428 = vunpack.c.l.b16 %v5291
    %v5429 = vunpack.c.h.b16 %v5291
    %v5430 = vunpack.c.l.b16 %v5292
    %v5431 = vunpack.c.h.b16 %v5292
    %v5432 = vunpack.c.l.b16 %v5293
    %v5433 = vunpack.c.h.b16 %v5293
    %v5434 = vunpack.c.l.b16 %v5294
    %v5435 = vunpack.c.h.b16 %v5294
    %v5436 = vunpack.c.l.b16 %v5295
    %v5437 = vunpack.c.h.b16 %v5295
    %v5438 = vunpack.c.l.b16 %v5296
    %v5439 = vunpack.c.h.b16 %v5296
    %v5440 = vunpack.c.l.b16 %v5297
    %v5441 = vunpack.c.h.b16 %v5297
    %v5442 = vunpack.c.l.b16 %v5298
    %v5443 = vunpack.c.h.b16 %v5298
    %v5444 = vunpack.c.l.b16 %v5299
    %v5445 = vunpack.c.h.b16 %v5299
    %v5446 = vunpack.c.l.b16 %v5300
    %v5447 = vunpack.c.h.b16 %v5300
    %v5448 = vunpack.c.l.b16 %v5301
    %v5449 = vunpack.c.h.b16 %v5301
    %v5450 = vunpack.c.l.b16 %v5302
    %v5451 = vunpack.c.h.b16 %v5302
    %v5452 = vunpack.c.l.b16 %v5303
    %v5453 = vunpack.c.h.b16 %v5303
    %v5454 = vunpack.c.l.b16 %v5304
    %v5455 = vunpack.c.h.b16 %v5304
    %v5456 = vunpack.c.l.b16 %v5305
    %v5457 = vunpack.c.h.b16 %v5305
    %v5458 = vunpack.c.l.b16 %v5306
    %v5459 = vunpack.c.h.b16 %v5306
    %v5460 = vunpack.c.l.b16 %v5307
    %v5461 = vunpack.c.h.b16 %v5307
    %v5462 = vunpack.c.l.b16 %v5308
    %v5463 = vunpack.c.h.b16 %v5308
    %v5464 = vunpack.c.l.b16 %v5309
    %v5465 = vunpack.c.h.b16 %v5309
    %v5466 = vunpack.c.l.b16 %v5310
    %v5467 = vunpack.c.h.b16 %v5310
    %v5468 = vunpack.c.l.b16 %v5311
    %v5469 = vunpack.c.h.b16 %v5311
    %v5470 = vunpack.c.l.b16 %v5312
    %v5471 = vunpack.c.h.b16 %v5312
    %v5472 = vunpack.c.l.b16 %v5313
    %v5473 = vunpack.c.h.b16 %v5313
    %v5474 = vunpack.c.l.b16 %v5314
    %v5475 = vunpack.c.h.b16 %v5314
    %v5476 = vunpack.c.l.b16 %v5315
    %v5477 = vunpack.c.h.b16 %v5315
    %v5478 = vunpack.c.l.b16 %v5316
    %v5479 = vunpack.c.h.b16 %v5316
    %v5480 = vunpack.c.l.b16 %v5317
    %v5481 = vunpack.c.h.b16 %v5317
    %v5482 = vunpack.c.l.b16 %v5318
    %v5483 = vunpack.c.h.b16 %v5318
    %v5484 = vunpack.c.l.b16 %v5319
    %v5485 = vunpack.c.h.b16 %v5319
    %v5486 = vunpack.c.l.b16 %v5320
    %v5487 = vunpack.c.h.b16 %v5320
    %v5488 = vunpack.c.l.b16 %v5321
    %v5489 = vunpack.c.h.b16 %v5321
    %v5490 = vunpack.c.l.b16 %v5322
    %v5491 = vunpack.c.h.b16 %v5322
    %v5492 = vunpack.c.l.b16 %v5323
    %v5493 = vunpack.c.h.b16 %v5323
    %v5494 = vunpack.c.l.b16 %v5324
    %v5495 = vunpack.c.h.b16 %v5324
    %v5496 = vunpack.c.l.b16 %v5325
    %v5497 = vunpack.c.h.b16 %v5325
    %v5498 = vunpack.c.l.b16 %v5326
    %v5499 = vunpack.c.h.b16 %v5326
    %v5500 = vunpack.c.l.b16 %v5327
    %v5501 = vunpack.c.h.b16 %v5327
    %v5502 = vunpack.c.l.b16 %v5328
    %v5503 = vunpack.c.h.b16 %v5328
    %v5504 = vunpack.c.l.b16 %v5329
    %v5505 = vunpack.c.h.b16 %v5329
    %v5506 = vunpack.c.l.b16 %v5330
    %v5507 = vunpack.c.h.b16 %v5330
    %v5508 = vunpack.c.l.b16 %v5331
    %v5509 = vunpack.c.h.b16 %v5331
    %v5510 = vunpack.c.l.b16 %v5332
    %v5511 = vunpack.c.h.b16 %v5332
    %v5512 = vunpack.c.l.b16 %v5333
    %v5513 = vunpack.c.h.b16 %v5333
    %v5514 = vunpack.c.l.b16 %v5334
    %v5515 = vunpack.c.h.b16 %v5334
    %v5516 = vunpack.c.l.b16 %v5335
    %v5517 = vunpack.c.h.b16 %v5335
    %v5518 = vunpack.c.l.b16 %v5336
    %v5519 = vunpack.c.h.b16 %v5336
    %v5520 = vunpack.c.l.b16 %v5337
    %v5521 = vunpack.c.h.b16 %v5337
    %v5522 = vunpack.c.l.b16 %v5338
    %v5523 = vunpack.c.h.b16 %v5338
    %v5524 = vunpack.c.l.b16 %v5339
    %v5525 = vunpack.c.h.b16 %v5339
    %v5526 = vunpack.c.l.b16 %v5340
    %v5527 = vunpack.c.h.b16 %v5340
    %v5528 = vunpack.c.l.b16 %v5341
    %v5529 = vunpack.c.h.b16 %v5341
    %v5530 = vunpack.c.l.b16 %v5342
    %v5531 = vunpack.c.h.b16 %v5342
    %v5532 = vunpack.c.l.b16 %v5343
    %v5533 = vunpack.c.h.b16 %v5343
    %v5534 = vunpack.c.l.b16 %v5344
    %v5535 = vunpack.c.h.b16 %v5344
    %v5536 = vunpack.c.l.b16 %v5345
    %v5537 = vunpack.c.h.b16 %v5345
    %v5538 = vunpack.c.l.b16 %v5346
    %v5539 = vunpack.c.h.b16 %v5346
    %v5540 = vunpack.c.l.b16 %v5347
    %v5541 = vunpack.c.h.b16 %v5347
    %v5542 = vunpack.c.l.b16 %v5348
    %v5543 = vunpack.c.h.b16 %v5348
    %v5544 = vunpack.c.l.b16 %v5349
    %v5545 = vunpack.c.h.b16 %v5349
    %v5546 = vunpack.c.l.b16 %v5350
    %v5547 = vunpack.c.h.b16 %v5350
    %v5548 = vunpack.c.l.b16 %v5351
    %v5549 = vunpack.c.h.b16 %v5351
    %v5550 = vpack.c.b16 %v5424, %v5422
    %v5551 = vpack.c.b16 %v5425, %v5423
    %v5552 = vpack.c.b16 %v5428, %v5426
    %v5553 = vpack.c.b16 %v5429, %v5427
    %v5554 = vpack.c.b16 %v5432, %v5430
    %v5555 = vpack.c.b16 %v5433, %v5431
    %v5556 = vpack.c.b16 %v5436, %v5434
    %v5557 = vpack.c.b16 %v5437, %v5435
    %v5558 = vpack.c.b16 %v5440, %v5438
    %v5559 = vpack.c.b16 %v5441, %v5439
    %v5560 = vpack.c.b16 %v5444, %v5442
    %v5561 = vpack.c.b16 %v5445, %v5443
    %v5562 = vpack.c.b16 %v5448, %v5446
    %v5563 = vpack.c.b16 %v5449, %v5447
    %v5564 = vpack.c.b16 %v5452, %v5450
    %v5565 = vpack.c.b16 %v5453, %v5451
    %v5566 = vpack.c.b16 %v5456, %v5454
    %v5567 = vpack.c.b16 %v5457, %v5455
    %v5568 = vpack.c.b16 %v5460, %v5458
    %v5569 = vpack.c.b16 %v5461, %v5459
    %v5570 = vpack.c.b16 %v5464, %v5462
    %v5571 = vpack.c.b16 %v5465, %v5463
    %v5572 = vpack.c.b16 %v5468, %v5466
    %v5573 = vpack.c.b16 %v5469, %v5467
    %v5574 = vpack.c.b16 %v5472, %v5470
    %v5575 = vpack.c.b16 %v5473, %v5471
    %v5576 = vpack.c.b16 %v5476, %v5474
    %v5577 = vpack.c.b16 %v5477, %v5475
    %v5578 = vpack.c.b16 %v5480, %v5478
    %v5579 = vpack.c.b16 %v5481, %v5479
    %v5580 = vpack.c.b16 %v5484, %v5482
    %v5581 = vpack.c.b16 %v5485, %v5483
    %v5582 = vpack.c.b16 %v5488, %v5486
    %v5583 = vpack.c.b16 %v5489, %v5487
    %v5584 = vpack.c.b16 %v5492, %v5490
    %v5585 = vpack.c.b16 %v5493, %v5491
    %v5586 = vpack.c.b16 %v5496, %v5494
    %v5587 = vpack.c.b16 %v5497, %v5495
    %v5588 = vpack.c.b16 %v5500, %v5498
    %v5589 = vpack.c.b16 %v5501, %v5499
    %v5590 = vpack.c.b16 %v5504, %v5502
    %v5591 = vpack.c.b16 %v5505, %v5503
    %v5592 = vpack.c.b16 %v5508, %v5506
    %v5593 = vpack.c.b16 %v5509, %v5507
    %v5594 = vpack.c.b16 %v5512, %v5510
    %v5595 = vpack.c.b16 %v5513, %v5511
    %v5596 = vpack.c.b16 %v5516, %v5514
    %v5597 = vpack.c.b16 %v5517, %v5515
    %v5598 = vpack.c.b16 %v5520, %v5518
    %v5599 = vpack.c.b16 %v5521, %v5519
    %v5600 = vpack.c.b16 %v5524, %v5522
    %v5601 = vpack.c.b16 %v5525, %v5523
    %v5602 = vpack.c.b16 %v5528, %v5526
    %v5603 = vpack.c.b16 %v5529, %v5527
    %v5604 = vpack.c.b16 %v5532, %v5530
    %v5605 = vpack.c.b16 %v5533, %v5531
    %v5606 = vpack.c.b16 %v5536, %v5534
    %v5607 = vpack.c.b16 %v5537, %v5535
    %v5608 = vpack.c.b16 %v5540, %v5538
    %v5609 = vpack.c.b16 %v5541, %v5539
    %v5610 = vpack.c.b16 %v5544, %v5542
    %v5611 = vpack.c.b16 %v5545, %v5543
    %v5612 = vpack.c.b16 %v5548, %v5546
    %v5613 = vpack.c.b16 %v5549, %v5547
    %5678 = vmatpush.bf16.msra.mxu0 %v5564
    %5679 = vmatpush.bf16.msra.mxu0 %v5562
    %5680 = vmatpush.bf16.msra.mxu0 %v5560
    %5681 = vmatpush.bf16.msra.mxu0 %v5558
    %5682 = vmatpush.bf16.msra.mxu0 %v5556
    %5683 = vmatpush.bf16.msra.mxu0 %v5554
    %5684 = vmatpush.bf16.msra.mxu0 %v5552
    %5685 = vmatpush.bf16.msra.mxu0 %v5550
    %5686 = vmatmul.bf16.gmra.mxu0 %v5284
    %v5687 = vpop.f32.mrf.mxu0
    %v5688 = vadd.f32 %v5354, %v5687
    %v5689 = vpop.f32.mrf.mxu0
    %5690 = vdwg.mxu0
    %5691 = vmatpush.bf16.msra.mxu0 %v5580
    %5692 = vmatpush.bf16.msra.mxu0 %v5578
    %5693 = vmatpush.bf16.msra.mxu0 %v5576
    %5694 = vmatpush.bf16.msra.mxu0 %v5574
    %5695 = vmatpush.bf16.msra.mxu0 %v5572
    %5696 = vmatpush.bf16.msra.mxu0 %v5570
    %5697 = vmatpush.bf16.msra.mxu0 %v5568
    %5698 = vmatpush.bf16.msra.mxu0 %v5566
    %5699 = vmatmul.bf16.gmra.mxu0 %v5285
    %v5700 = vpop.f32.mrf.mxu0
    %v5701 = vadd.f32 %v5688, %v5700
    %v5702 = vpop.f32.mrf.mxu0
    %5703 = vdwg.mxu0
    %5704 = vmatpush.bf16.msra.mxu0 %v5596
    %5705 = vmatpush.bf16.msra.mxu0 %v5594
    %5706 = vmatpush.bf16.msra.mxu0 %v5592
    %5707 = vmatpush.bf16.msra.mxu0 %v5590
    %5708 = vmatpush.bf16.msra.mxu0 %v5588
    %5709 = vmatpush.bf16.msra.mxu0 %v5586
    %5710 = vmatpush.bf16.msra.mxu0 %v5584
    %5711 = vmatpush.bf16.msra.mxu0 %v5582
    %5712 = vmatmul.bf16.gmra.mxu0 %v5286
    %v5713 = vpop.f32.mrf.mxu0
    %v5714 = vadd.f32 %v5701, %v5713
    %v5715 = vpop.f32.mrf.mxu0
    %5716 = vdwg.mxu0
    %5717 = vmatpush.bf16.msra.mxu0 %v5612
    %5718 = vmatpush.bf16.msra.mxu0 %v5610
    %5719 = vmatpush.bf16.msra.mxu0 %v5608
    %5720 = vmatpush.bf16.msra.mxu0 %v5606
    %5721 = vmatpush.bf16.msra.mxu0 %v5604
    %5722 = vmatpush.bf16.msra.mxu0 %v5602
    %5723 = vmatpush.bf16.msra.mxu0 %v5600
    %5724 = vmatpush.bf16.msra.mxu0 %v5598
    %5725 = vmatmul.bf16.gmra.mxu0 %v5287
    %v5726 = vpop.f32.mrf.mxu0
    %v5727 = vadd.f32 %v5714, %v5726
    %v5728 = vpop.f32.mrf.mxu0
    %5729 = vdwg.mxu0
    %5730 = vmatpush.bf16.msra.mxu0 %v5565
    %5731 = vmatpush.bf16.msra.mxu0 %v5563
    %5732 = vmatpush.bf16.msra.mxu0 %v5561
    %5733 = vmatpush.bf16.msra.mxu0 %v5559
    %5734 = vmatpush.bf16.msra.mxu0 %v5557
    %5735 = vmatpush.bf16.msra.mxu0 %v5555
    %5736 = vmatpush.bf16.msra.mxu0 %v5553
    %5737 = vmatpush.bf16.msra.mxu0 %v5551
    %5738 = vmatmul.bf16.gmra.mxu0 %v5284
    %v5739 = vpop.f32.mrf.mxu0
    %v5740 = vadd.f32 %v5355, %v5739
    %v5741 = vpop.f32.mrf.mxu0
    %5742 = vdwg.mxu0
    %5743 = vmatpush.bf16.msra.mxu0 %v5581
    %5744 = vmatpush.bf16.msra.mxu0 %v5579
    %5745 = vmatpush.bf16.msra.mxu0 %v5577
    %5746 = vmatpush.bf16.msra.mxu0 %v5575
    %5747 = vmatpush.bf16.msra.mxu0 %v5573
    %5748 = vmatpush.bf16.msra.mxu0 %v5571
    %5749 = vmatpush.bf16.msra.mxu0 %v5569
    %5750 = vmatpush.bf16.msra.mxu0 %v5567
    %5751 = vmatmul.bf16.gmra.mxu0 %v5285
    %v5752 = vpop.f32.mrf.mxu0
    %v5753 = vadd.f32 %v5740, %v5752
    %v5754 = vpop.f32.mrf.mxu0
    %5755 = vdwg.mxu0
    %5756 = vmatpush.bf16.msra.mxu0 %v5597
    %5757 = vmatpush.bf16.msra.mxu0 %v5595
    %5758 = vmatpush.bf16.msra.mxu0 %v5593
    %5759 = vmatpush.bf16.msra.mxu0 %v5591
    %5760 = vmatpush.bf16.msra.mxu0 %v5589
    %5761 = vmatpush.bf16.msra.mxu0 %v5587
    %5762 = vmatpush.bf16.msra.mxu0 %v5585
    %5763 = vmatpush.bf16.msra.mxu0 %v5583
    %5764 = vmatmul.bf16.gmra.mxu0 %v5286
    %v5765 = vpop.f32.mrf.mxu0
    %v5766 = vadd.f32 %v5753, %v5765
    %v5767 = vpop.f32.mrf.mxu0
    %5768 = vdwg.mxu0
    %5769 = vmatpush.bf16.msra.mxu0 %v5613
    %5770 = vmatpush.bf16.msra.mxu0 %v5611
    %5771 = vmatpush.bf16.msra.mxu0 %v5609
    %5772 = vmatpush.bf16.msra.mxu0 %v5607
    %5773 = vmatpush.bf16.msra.mxu0 %v5605
    %5774 = vmatpush.bf16.msra.mxu0 %v5603
    %5775 = vmatpush.bf16.msra.mxu0 %v5601
    %5776 = vmatpush.bf16.msra.mxu0 %v5599
    %5777 = vmatmul.bf16.gmra.mxu0 %v5287
    %v5778 = vpop.f32.mrf.mxu0
    %v5779 = vadd.f32 %v5766, %v5778
    %v5780 = vpop.f32.mrf.mxu0
    %5781 = vdwg.mxu0
    %v5782 = vmax.f32 %v5727, 0.0
    %v5783 = vmax.f32 %v5779, 0.0
    %v5784 = vpack.c.bf16 %v5782, %v5782
    %v5785 = vpack.c.bf16 %v5783, %v5783
    %v5786 = vld [vmem:[#allocation13] sm:$0xf]
    %v5787 = vld [vmem:[#allocation13 + $0x4] sm:$0xf]
    %v5788 = vld [vmem:[#allocation13 + $0x8] sm:$0xf]
    %v5789 = vld [vmem:[#allocation13 + $0xc] sm:$0xf]
    %v5790 = vld [vmem:[#allocation13 + $0x10] sm:$0xf]
    %v5791 = vld [vmem:[#allocation13 + $0x14] sm:$0xf]
    %v5792 = vld [vmem:[#allocation13 + $0x18] sm:$0xf]
    %v5793 = vld [vmem:[#allocation13 + $0x1c] sm:$0xf]
    %v5794 = vld [vmem:[#allocation13 + $0x20] sm:$0xf]
    %v5795 = vld [vmem:[#allocation13 + $0x24] sm:$0xf]
    %v5796 = vld [vmem:[#allocation13 + $0x28] sm:$0xf]
    %v5797 = vld [vmem:[#allocation13 + $0x2c] sm:$0xf]
    %v5798 = vld [vmem:[#allocation13 + $0x30] sm:$0xf]
    %v5799 = vld [vmem:[#allocation13 + $0x34] sm:$0xf]
    %v5800 = vld [vmem:[#allocation13 + $0x38] sm:$0xf]
    %v5801 = vld [vmem:[#allocation13 + $0x3c] sm:$0xf]
    %v5802 = vld [vmem:[#allocation13 + $0x40] sm:$0xf]
    %v5803 = vld [vmem:[#allocation13 + $0x44] sm:$0xf]
    %v5804 = vld [vmem:[#allocation13 + $0x48] sm:$0xf]
    %v5805 = vld [vmem:[#allocation13 + $0x4c] sm:$0xf]
    %v5806 = vld [vmem:[#allocation13 + $0x50] sm:$0xf]
    %v5807 = vld [vmem:[#allocation13 + $0x54] sm:$0xf]
    %v5808 = vld [vmem:[#allocation13 + $0x58] sm:$0xf]
    %v5809 = vld [vmem:[#allocation13 + $0x5c] sm:$0xf]
    %v5810 = vld [vmem:[#allocation13 + $0x60] sm:$0xf]
    %v5811 = vld [vmem:[#allocation13 + $0x64] sm:$0xf]
    %v5812 = vld [vmem:[#allocation13 + $0x68] sm:$0xf]
    %v5813 = vld [vmem:[#allocation13 + $0x6c] sm:$0xf]
    %v5814 = vld [vmem:[#allocation13 + $0x70] sm:$0xf]
    %v5815 = vld [vmem:[#allocation13 + $0x74] sm:$0xf]
    %v5816 = vld [vmem:[#allocation13 + $0x78] sm:$0xf]
    %v5817 = vld [vmem:[#allocation13 + $0x7c] sm:$0xf]
    %v5818 = vld [vmem:[#allocation14] sm:$0x1]
    %v5820 = vperm.slane %v5818, 0
    %v5854 = vunpack.c.l.b16 %v5786
    %v5855 = vunpack.c.l.b16 %v5787
    %v5856 = vunpack.c.l.b16 %v5788
    %v5857 = vunpack.c.l.b16 %v5789
    %v5858 = vunpack.c.l.b16 %v5790
    %v5859 = vunpack.c.l.b16 %v5791
    %v5860 = vunpack.c.l.b16 %v5792
    %v5861 = vunpack.c.l.b16 %v5793
    %v5862 = vunpack.c.l.b16 %v5794
    %v5863 = vunpack.c.l.b16 %v5795
    %v5864 = vunpack.c.l.b16 %v5796
    %v5865 = vunpack.c.l.b16 %v5797
    %v5866 = vunpack.c.l.b16 %v5798
    %v5867 = vunpack.c.l.b16 %v5799
    %v5868 = vunpack.c.l.b16 %v5800
    %v5869 = vunpack.c.l.b16 %v5801
    %v5870 = vunpack.c.l.b16 %v5802
    %v5871 = vunpack.c.l.b16 %v5803
    %v5872 = vunpack.c.l.b16 %v5804
    %v5873 = vunpack.c.l.b16 %v5805
    %v5874 = vunpack.c.l.b16 %v5806
    %v5875 = vunpack.c.l.b16 %v5807
    %v5876 = vunpack.c.l.b16 %v5808
    %v5877 = vunpack.c.l.b16 %v5809
    %v5878 = vunpack.c.l.b16 %v5810
    %v5879 = vunpack.c.l.b16 %v5811
    %v5880 = vunpack.c.l.b16 %v5812
    %v5881 = vunpack.c.l.b16 %v5813
    %v5882 = vunpack.c.l.b16 %v5814
    %v5883 = vunpack.c.l.b16 %v5815
    %v5884 = vunpack.c.l.b16 %v5816
    %v5885 = vunpack.c.l.b16 %v5817
    %v5886 = vpack.c.b16 %v5855, %v5854
    %v5887 = vpack.c.b16 %v5857, %v5856
    %v5888 = vpack.c.b16 %v5859, %v5858
    %v5889 = vpack.c.b16 %v5861, %v5860
    %v5890 = vpack.c.b16 %v5863, %v5862
    %v5891 = vpack.c.b16 %v5865, %v5864
    %v5892 = vpack.c.b16 %v5867, %v5866
    %v5893 = vpack.c.b16 %v5869, %v5868
    %v5894 = vpack.c.b16 %v5871, %v5870
    %v5895 = vpack.c.b16 %v5873, %v5872
    %v5896 = vpack.c.b16 %v5875, %v5874
    %v5897 = vpack.c.b16 %v5877, %v5876
    %v5898 = vpack.c.b16 %v5879, %v5878
    %v5899 = vpack.c.b16 %v5881, %v5880
    %v5900 = vpack.c.b16 %v5883, %v5882
    %v5901 = vpack.c.b16 %v5885, %v5884
    %5918 = vmatpush.bf16.msra.mxu0 %v5893
    %5919 = vmatpush.bf16.msra.mxu0 %v5892
    %5920 = vmatpush.bf16.msra.mxu0 %v5891
    %5921 = vmatpush.bf16.msra.mxu0 %v5890
    %5922 = vmatpush.bf16.msra.mxu0 %v5889
    %5923 = vmatpush.bf16.msra.mxu0 %v5888
    %5924 = vmatpush.bf16.msra.mxu0 %v5887
    %5925 = vmatpush.bf16.msra.mxu0 %v5886
    %5926 = vmatmul.bf16.gmra.mxu0 %v5784
    %v5927 = vpop.f32.mrf.mxu0
    %v5928 = vadd.f32 %v5820, %v5927
    %v5929 = vpop.f32.mrf.mxu0
    %5930 = vdwg.mxu0
    %5931 = vmatpush.bf16.msra.mxu0 %v5901
    %5932 = vmatpush.bf16.msra.mxu0 %v5900
    %5933 = vmatpush.bf16.msra.mxu0 %v5899
    %5934 = vmatpush.bf16.msra.mxu0 %v5898
    %5935 = vmatpush.bf16.msra.mxu0 %v5897
    %5936 = vmatpush.bf16.msra.mxu0 %v5896
    %5937 = vmatpush.bf16.msra.mxu0 %v5895
    %5938 = vmatpush.bf16.msra.mxu0 %v5894
    %5939 = vmatmul.bf16.gmra.mxu0 %v5785
    %v5940 = vpop.f32.mrf.mxu0
    %v5941 = vadd.f32 %v5928, %v5940
    %v5942 = vpop.f32.mrf.mxu0
    %5943 = vdwg.mxu0
    %v5944 = vmax.f32 %v5941, 0.0
    %v5945 = vpack.c.bf16 %v5944, %v5944
    %v5946 = vld [vmem:[#allocation16] sm:$0xf]
    %v5947 = vld [vmem:[#allocation16 + $0x4] sm:$0xf]
    %v5948 = vld [vmem:[#allocation16 + $0x8] sm:$0xf]
    %v5949 = vld [vmem:[#allocation16 + $0xc] sm:$0xf]
    %v5950 = vld [vmem:[#allocation16 + $0x10] sm:$0xf]
    %v5951 = vld [vmem:[#allocation16 + $0x14] sm:$0xf]
    %v5952 = vld [vmem:[#allocation16 + $0x18] sm:$0xf]
    %v5953 = vld [vmem:[#allocation16 + $0x1c] sm:$0xf]
    %v5954 = vld [vmem:[#allocation16 + $0x20] sm:$0xf]
    %v5955 = vld [vmem:[#allocation16 + $0x24] sm:$0xf]
    %v5956 = vld [vmem:[#allocation16 + $0x28] sm:$0xf]
    %v5957 = vld [vmem:[#allocation16 + $0x2c] sm:$0xf]
    %v5958 = vld [vmem:[#allocation16 + $0x30] sm:$0xf]
    %v5959 = vld [vmem:[#allocation16 + $0x34] sm:$0xf]
    %v5960 = vld [vmem:[#allocation16 + $0x38] sm:$0xf]
    %v5961 = vld [vmem:[#allocation16 + $0x3c] sm:$0xf]
    %v5962 = vld [vmem:[#allocation17] sm:$0x1]
    %v5964 = vperm.slane %v5962, 0
    %v5982 = vunpack.c.l.b16 %v5946
    %v5983 = vunpack.c.l.b16 %v5947
    %v5984 = vunpack.c.l.b16 %v5948
    %v5985 = vunpack.c.l.b16 %v5949
    %v5986 = vunpack.c.l.b16 %v5950
    %v5987 = vunpack.c.l.b16 %v5951
    %v5988 = vunpack.c.l.b16 %v5952
    %v5989 = vunpack.c.l.b16 %v5953
    %v5990 = vunpack.c.l.b16 %v5954
    %v5991 = vunpack.c.l.b16 %v5955
    %v5992 = vunpack.c.l.b16 %v5956
    %v5993 = vunpack.c.l.b16 %v5957
    %v5994 = vunpack.c.l.b16 %v5958
    %v5995 = vunpack.c.l.b16 %v5959
    %v5996 = vunpack.c.l.b16 %v5960
    %v5997 = vunpack.c.l.b16 %v5961
    %v5998 = vpack.c.b16 %v5983, %v5982
    %v5999 = vpack.c.b16 %v5985, %v5984
    %v6000 = vpack.c.b16 %v5987, %v5986
    %v6001 = vpack.c.b16 %v5989, %v5988
    %v6002 = vpack.c.b16 %v5991, %v5990
    %v6003 = vpack.c.b16 %v5993, %v5992
    %v6004 = vpack.c.b16 %v5995, %v5994
    %v6005 = vpack.c.b16 %v5997, %v5996
    %6014 = vmatpush.bf16.msra.mxu0 %v6005
    %6015 = vmatpush.bf16.msra.mxu0 %v6004
    %6016 = vmatpush.bf16.msra.mxu0 %v6003
    %6017 = vmatpush.bf16.msra.mxu0 %v6002
    %6018 = vmatpush.bf16.msra.mxu0 %v6001
    %6019 = vmatpush.bf16.msra.mxu0 %v6000
    %6020 = vmatpush.bf16.msra.mxu0 %v5999
    %6021 = vmatpush.bf16.msra.mxu0 %v5998
    %6022 = vmatmul.bf16.gmra.mxu0 %v5945
    %v6023 = vpop.f32.mrf.mxu0
    %v6024 = vadd.f32 %v5964, %v6023
    %v6025 = vpop.f32.mrf.mxu0
    %6026 = vdwg.mxu0
    %6027 = vst [vmem:[#allocation19] sm:$0xff] %v6024
    // Predicated region
    $region86: #{ff_net_forward.1} parent=1 // pred_check
      _
    $region87: #{ff_net_forward.1} parent=1 // pred_check_branch
      %6029 = sbr.rel (0) target = $region89
    $region88: #{ff_net_forward.1} parent=1 // pred_region
      %6031 = vsyncadd [#allocation4], 0
      %s6033 = sshll.u32 [#allocation19], 4
      %s6034 = int_to_ptr.vmem [resolvable:$true] %s6033
      %s6035 = sshll.u32 %s11, 4
      %s6036 = int_to_ptr.hbm [resolvable:$true] %s6035
      %6038 = dma.vmem_to_hbm [thread:$0]  %s6034, 128, %s6036, [#allocation4]
    $region89: #{ff_net_forward.1} parent=1 // pred_fallthru
      _
    // Predicated region
    $region90: #{ff_net_forward.1} parent=1 // pred_check
      _
    $region91: #{ff_net_forward.1} parent=1 // pred_check_branch
      %6040 = sbr.rel (0) target = $region93
    $region92: #{ff_net_forward.1} parent=1 // pred_region
      %6042 = dma.done [#allocation4], 128
    $region93: #{ff_net_forward.1} parent=1 // pred_fallthru
      _
    %6043 = vsyncpa [#allocation3], 1
    %6044 = vsyncpa [#allocation6], 1
    %6045 = vsyncpa [#allocation9], 1
    %6046 = vsyncpa [#allocation12], 1
    %6047 = vsyncpa [#allocation15], 1
    %6048 = vsyncpa [#allocation18], 1
    %6049 = vsyncpa [#allocation4], 1

</llo_original>
